<compile_context>
chip_gen: v6e
topology: v6e:2x2x1
jax: 0.10.0
libtpu: 0.0.40
codegen_flags: <defaults>
</compile_context>

<pallas_src>
import numpy as np
import jax
import jax.numpy as jnp
from jax.experimental import pallas as pl
from jax.experimental.pallas import tpu as pltpu

EPS = 1e-5
_VMEM_LIMIT_BYTES = 48 * 1024 * 1024   # above the 16/32 MiB scoped default,
                                       # below v7x's 64 MiB physical VMEM.

# pltpu.CompilerParams on current jax; fall back for older releases.
_CompilerParams = getattr(pltpu, "CompilerParams", None) or getattr(
    pltpu, "TPUCompilerParams")


def _cp(dimension_semantics):
    return _CompilerParams(dimension_semantics=dimension_semantics,
                           vmem_limit_bytes=_VMEM_LIMIT_BYTES)


# --------------------------------------------------------------------------
# Shared conv helper: 3x3, stride 1, zero pad 1, on one (H, W, Cin) tile.
# --------------------------------------------------------------------------
def _conv3x3_tile(x, w_ref, cols_ref):
    """im2col-in-VMEM 3x3 conv on a single spatial tile.

    cols_ref is a VMEM scratch of shape (H+2, W, 3*Cin) holding
        cols[r, w, kw*Cin + ci] = xpad[r, w + kw, ci]
    where xpad is the (H+2, W+2, Cin) zero-padded tile.  Row slices
    cols[kh:kh+H] then give a (H*W, 3*Cin) LHS, so the conv is 3 MXU matmuls
    with contraction depth K = 3*Cin (instead of 9 matmuls with K = Cin).
    w_ref holds packed weights (3, 3*Cin, Cout) = w_hwio.reshape(...).
    Returns the (H*W, Cout) float32 accumulator.
    """
    H, W, Cin = x.shape
    Cout = w_ref.shape[-1]
    dt = cols_ref.dtype
    x = x.astype(dt)

    # Zero halo: top/bottom rows plus the out-of-range column of the kw=0 and
    # kw=2 shifted views.  Rewritten every grid step (cheap) so the kernel has
    # no cross-iteration state and remains "parallel"/megacore safe.
    cols_ref[0:1, :, :] = jnp.zeros((1, W, 3 * Cin), dt)
    cols_ref[H + 1:H + 2, :, :] = jnp.zeros((1, W, 3 * Cin), dt)
    cols_ref[:, 0:1, 0:Cin] = jnp.zeros((H + 2, 1, Cin), dt)
    cols_ref[:, W - 1:W, 2 * Cin:3 * Cin] = jnp.zeros((H + 2, 1, Cin), dt)

    # Interior: the three W-shifted views, built once (hoisted out of the tap
    # loop) entirely in VMEM -- no jnp.pad HBM round trip.
    cols_ref[1:H + 1, 1:W, 0:Cin] = x[:, 0:W - 1, :]
    cols_ref[1:H + 1, 0:W, Cin:2 * Cin] = x
    cols_ref[1:H + 1, 0:W - 1, 2 * Cin:3 * Cin] = x[:, 1:W, :]

    acc = jnp.zeros((H * W, Cout), jnp.float32)
    for kh in range(3):                       # static unroll: 3 MXU matmuls
        acc = acc + jnp.dot(
            cols_ref[kh:kh + H, :, :].reshape(H * W, 3 * Cin),
            w_ref[kh],
            preferred_element_type=jnp.float32)
    return acc


def _store_partial_stats(stats_ref, acc):
    """One-pass per-tile BN partials: (sum, sum of squares) over rows."""
    stats_ref[0, 0:1, :] = jnp.sum(acc, axis=0, keepdims=True)
    stats_ref[0, 1:2, :] = jnp.sum(acc * acc, axis=0, keepdims=True)


# --------------------------------------------------------------------------
# Kernel 1: conv1 + BN1 partial statistics.
# --------------------------------------------------------------------------
def conv_bnstats_kernel(x_ref, w_ref, o_ref, stats_ref, cols_ref):
    _, H, W, Cout = o_ref.shape
    acc = _conv3x3_tile(x_ref[0], w_ref, cols_ref)
    o_ref[0] = acc.reshape(H, W, Cout).astype(o_ref.dtype)
    _store_partial_stats(stats_ref, acc)


def conv3x3_bnstats(x_nhwc, w_packed):
    N, H, W, Cin = x_nhwc.shape
    Cout = w_packed.shape[-1]
    return pl.pallas_call(
        conv_bnstats_kernel,
        grid=(N,),
        in_specs=[
            pl.BlockSpec((1, H, W, Cin), lambda n: (n, 0, 0, 0)),
            pl.BlockSpec(w_packed.shape, lambda n: (0, 0, 0)),   # VMEM-resident
        ],
        out_specs=(
            pl.BlockSpec((1, H, W, Cout), lambda n: (n, 0, 0, 0)),
            pl.BlockSpec((1, 2, Cout), lambda n: (n, 0, 0)),
        ),
        out_shape=(
            jax.ShapeDtypeStruct((N, H, W, Cout), x_nhwc.dtype),
            jax.ShapeDtypeStruct((N, 2, Cout), jnp.float32),
        ),
        scratch_shapes=[pltpu.VMEM((H + 2, W, 3 * Cin), x_nhwc.dtype)],
        compiler_params=_cp(("parallel",)),
    )(x_nhwc, w_packed)


# --------------------------------------------------------------------------
# Kernel 2: bn1 (folded scale/shift) + ReLU + conv2 + BN2 partial statistics.
# --------------------------------------------------------------------------
def bnrelu_conv_bnstats_kernel(x_ref, scale_ref, shift_ref, w_ref,
                               o_ref, stats_ref, cols_ref):
    _, H, W, Cout = o_ref.shape
    x = x_ref[0].astype(jnp.float32)
    scale = scale_ref[...].reshape(1, 1, -1)
    shift = shift_ref[...].reshape(1, 1, -1)
    y = jnp.maximum(x * scale + shift, 0.0)     # bn1 + ReLU fused into conv2
    acc = _conv3x3_tile(y, w_ref, cols_ref)
    o_ref[0] = acc.reshape(H, W, Cout).astype(o_ref.dtype)
    _store_partial_stats(stats_ref, acc)


def bnrelu_conv3x3_bnstats(x_nhwc, scale, shift, w_packed):
    N, H, W, Cin = x_nhwc.shape
    Cout = w_packed.shape[-1]
    return pl.pallas_call(
        bnrelu_conv_bnstats_kernel,
        grid=(N,),
        in_specs=[
            pl.BlockSpec((1, H, W, Cin), lambda n: (n, 0, 0, 0)),
            pl.BlockSpec((1, Cin), lambda n: (0, 0)),
            pl.BlockSpec((1, Cin), lambda n: (0, 0)),
            pl.BlockSpec(w_packed.shape, lambda n: (0, 0, 0)),   # VMEM-resident
        ],
        out_specs=(
            pl.BlockSpec((1, H, W, Cout), lambda n: (n, 0, 0, 0)),
            pl.BlockSpec((1, 2, Cout), lambda n: (n, 0, 0)),
        ),
        out_shape=(
            jax.ShapeDtypeStruct((N, H, W, Cout), x_nhwc.dtype),
            jax.ShapeDtypeStruct((N, 2, Cout), jnp.float32),
        ),
        scratch_shapes=[pltpu.VMEM((H + 2, W, 3 * Cin), x_nhwc.dtype)],
        compiler_params=_cp(("parallel",)),
    )(x_nhwc, scale, shift, w_packed)


# --------------------------------------------------------------------------
# Kernel 3: bn2 (folded scale/shift) + residual add + ReLU (elementwise).
# --------------------------------------------------------------------------
def bn_add_relu_kernel(x_ref, res_ref, scale_ref, shift_ref, o_ref):
    x = x_ref[0].astype(jnp.float32)
    r = res_ref[0].astype(jnp.float32)
    scale = scale_ref[...].reshape(1, 1, -1)
    shift = shift_ref[...].reshape(1, 1, -1)
    o_ref[0] = jnp.maximum(x * scale + shift + r, 0.0).astype(o_ref.dtype)


def bn_add_relu(x_nhwc, res_nhwc, scale, shift, tile_h=8):
    N, H, W, C = x_nhwc.shape
    th = min(tile_h, H)
    return pl.pallas_call(
        bn_add_relu_kernel,
        grid=(N, pl.cdiv(H, th)),
        in_specs=[
            pl.BlockSpec((1, th, W, C), lambda n, h: (n, h, 0, 0)),
            pl.BlockSpec((1, th, W, C), lambda n, h: (n, h, 0, 0)),
            pl.BlockSpec((1, C), lambda n, h: (0, 0)),
            pl.BlockSpec((1, C), lambda n, h: (0, 0)),
        ],
        out_specs=pl.BlockSpec((1, th, W, C), lambda n, h: (n, h, 0, 0)),
        out_shape=jax.ShapeDtypeStruct((N, H, W, C), x_nhwc.dtype),
        compiler_params=_cp(("parallel", "parallel")),
    )(x_nhwc, res_nhwc, scale, shift)


# --------------------------------------------------------------------------
# Cross-tile BN reduction + affine fold.  Tiny O(C) work done in plain XLA so
# the batch statistics stay exact under any tiling / megacore sharding.
# --------------------------------------------------------------------------
def _bn_fold(partial_stats, count, gamma, beta):
    s = jnp.sum(partial_stats[:, 0, :], axis=0)          # (C,) sum
    ss = jnp.sum(partial_stats[:, 1, :], axis=0)         # (C,) sum of squares
    mean = s / count
    var = ss / count - mean * mean                       # biased (training BN)
    scale = gamma * jax.lax.rsqrt(var + EPS)
    shift = beta - mean * scale
    return scale.reshape(1, -1), shift.reshape(1, -1)


# --------------------------------------------------------------------------
# BasicBlock forward (stride=1, padding=1, dilation=1, downsample=None).
# --------------------------------------------------------------------------
def basic_block_forward(x_nchw, params):
    x = jnp.transpose(x_nchw, (0, 2, 3, 1))              # NCHW -> NHWC
    N, H, W, _ = x.shape
    count = N * H * W

    # Pack HWIO weights to (3, 3*Cin, Cout) so the kw taps share one K axis.
    w1, w2 = params["w1"], params["w2"]
    w1p = w1.reshape(3, 3 * w1.shape[2], w1.shape[3])
    w2p = w2.reshape(3, 3 * w2.shape[2], w2.shape[3])

    c1, st1 = conv3x3_bnstats(x, w1p)
    scale1, shift1 = _bn_fold(st1, count, params["g1"], params["b1"])
    c2, st2 = bnrelu_conv3x3_bnstats(c1, scale1, shift1, w2p)
    scale2, shift2 = _bn_fold(st2, count, params["g2"], params["b2"])
    out = bn_add_relu(c2, x, scale2, shift2)
    return jnp.transpose(out, (0, 3, 1, 2))              # NHWC -> NCHW


# --------------------------------------------------------------------------
# Pure-JAX reference (for correctness check).
# --------------------------------------------------------------------------
def _bn_ref(x, gamma, beta):
    mean = jnp.mean(x, axis=(0, 1, 2), keepdims=True)
    var = jnp.mean((x - mean) ** 2, axis=(0, 1, 2), keepdims=True)
    return (x - mean) * jax.lax.rsqrt(var + EPS) * gamma.reshape(1, 1, 1, -1) \
        + beta.reshape(1, 1, 1, -1)


def _ref_forward(x_nchw, params):
    x = jnp.transpose(x_nchw, (0, 2, 3, 1))
    dn = jax.lax.conv_dimension_numbers(x.shape, params["w1"].shape,
                                        ("NHWC", "HWIO", "NHWC"))
    o = jax.lax.conv_general_dilated(x, params["w1"], (1, 1), [(1, 1), (1, 1)],
                                     dimension_numbers=dn)
    o = jax.nn.relu(_bn_ref(o, params["g1"], params["b1"]))
    o = jax.lax.conv_general_dilated(o, params["w2"], (1, 1), [(1, 1), (1, 1)],
                                     dimension_numbers=dn)
    o = jax.nn.relu(_bn_ref(o, params["g2"], params["b2"]) + x)
    return jnp.transpose(o, (0, 3, 1, 2))


if __name__ == "__main__":
    # Small deterministic test: batch=2, inplanes=planes=4, spatial 16x16.
    N, C, H, W = 2, 4, 16, 16
    key = jax.random.PRNGKey(0)
    kx, kw1, kw2 = jax.random.split(key, 3)

    x = jax.random.normal(kx, (N, C, H, W), dtype=jnp.float32)

    # PyTorch conv weights are OIHW -> HWIO for the NHWC kernels.
    w1_oihw = jax.random.normal(kw1, (C, C, 3, 3), dtype=jnp.float32) * 0.1
    w2_oihw = jax.random.normal(kw2, (C, C, 3, 3), dtype=jnp.float32) * 0.1
    params = {
        "w1": jnp.transpose(w1_oihw, (2, 3, 1, 0)),
        "w2": jnp.transpose(w2_oihw, (2, 3, 1, 0)),
        # BatchNorm2d default init: weight=1, bias=0.
        "g1": jnp.ones((C,), jnp.float32),
        "b1": jnp.zeros((C,), jnp.float32),
        "g2": jnp.ones((C,), jnp.float32),
        "b2": jnp.zeros((C,), jnp.float32),
    }

    fwd = jax.jit(basic_block_forward)
    out = jax.block_until_ready(fwd(x, params))
    ref = jax.block_until_ready(_ref_forward(x, params))

    assert out.shape == (N, C, H, W)
    np.testing.assert_allclose(np.asarray(out), np.asarray(ref),
                               rtol=1e-4, atol=1e-4)
    print("KERNEL_OK")
</pallas_src>

<mosaic_0001>
module attributes {stable_mosaic.version = 11 : i64} {
  func.func @conv_bnstats_kernel(%arg0: i32, %arg1: memref<1x16x16x4xf32, #tpu.memory_space<vmem>>, %arg2: memref<3x12x4xf32, #tpu.memory_space<vmem>>, %arg3: memref<1x16x16x4xf32, #tpu.memory_space<vmem>>, %arg4: memref<1x2x4xf32, #tpu.memory_space<vmem>>, %arg5: memref<18x16x12xf32, #tpu.memory_space<vmem>>) attributes {dimension_semantics = [#tpu.dimension_semantics<parallel>], iteration_bounds = array<i64: 2>, scalar_prefetch = 0 : i64, scratch_operands = 1 : i64, tpu.core_type = #tpu.core_type<tc>, window_params = [{transform_indices = @transform_0, window_bounds = array<i64: 1, 16, 16, 4>}, {pipeline_mode = #tpu.pipeline_mode<synchronous>, transform_indices = @transform_1, window_bounds = array<i64: 3, 12, 4>}, {transform_indices = @transform_2, window_bounds = array<i64: 1, 16, 16, 4>}, {transform_indices = @transform_3, window_bounds = array<i64: 1, 2, 4>}]} {
    %c0 = arith.constant 0 : index
    %c0_0 = arith.constant 0 : index
    %c0_1 = arith.constant 0 : index
    %c0_2 = arith.constant 0 : index
    %0 = vector.load %arg1[%c0, %c0_0, %c0_1, %c0_2] : memref<1x16x16x4xf32, #tpu.memory_space<vmem>>, vector<1x16x16x4xf32>
    %1 = vector.shape_cast %0 : vector<1x16x16x4xf32> to vector<16x16x4xf32>
    %cst = arith.constant 0.000000e+00 : f32
    %2 = vector.broadcast %cst : f32 to vector<1x16x12xf32>
    %c0_3 = arith.constant 0 : index
    %c0_4 = arith.constant 0 : index
    %c0_5 = arith.constant 0 : index
    %3 = vector.load %arg5[%c0_3, %c0_4, %c0_5] : memref<18x16x12xf32, #tpu.memory_space<vmem>>, vector<1x16x12xf32>
    tpu.vector_store %arg5[%c0_3, %c0_4, %c0_5], %2 {strides = array<i32>} : memref<18x16x12xf32, #tpu.memory_space<vmem>>, vector<1x16x12xf32>,
    %cst_6 = arith.constant 0.000000e+00 : f32
    %4 = vector.broadcast %cst_6 : f32 to vector<1x16x12xf32>
    %c17 = arith.constant 17 : index
    %c0_7 = arith.constant 0 : index
    %c0_8 = arith.constant 0 : index
    %5 = vector.load %arg5[%c17, %c0_7, %c0_8] : memref<18x16x12xf32, #tpu.memory_space<vmem>>, vector<1x16x12xf32>
    tpu.vector_store %arg5[%c17, %c0_7, %c0_8], %4 {strides = array<i32>} : memref<18x16x12xf32, #tpu.memory_space<vmem>>, vector<1x16x12xf32>,
    %cst_9 = arith.constant 0.000000e+00 : f32
    %6 = vector.broadcast %cst_9 : f32 to vector<18x1x4xf32>
    %c0_10 = arith.constant 0 : index
    %c0_11 = arith.constant 0 : index
    %c0_12 = arith.constant 0 : index
    %7 = vector.load %arg5[%c0_10, %c0_11, %c0_12] : memref<18x16x12xf32, #tpu.memory_space<vmem>>, vector<18x1x4xf32>
    tpu.vector_store %arg5[%c0_10, %c0_11, %c0_12], %6 {strides = array<i32>} : memref<18x16x12xf32, #tpu.memory_space<vmem>>, vector<18x1x4xf32>,
    %cst_13 = arith.constant 0.000000e+00 : f32
    %8 = vector.broadcast %cst_13 : f32 to vector<18x1x4xf32>
    %c0_14 = arith.constant 0 : index
    %c15 = arith.constant 15 : index
    %c8 = arith.constant 8 : index
    %9 = vector.load %arg5[%c0_14, %c15, %c8] : memref<18x16x12xf32, #tpu.memory_space<vmem>>, vector<18x1x4xf32>
    tpu.vector_store %arg5[%c0_14, %c15, %c8], %8 {strides = array<i32>} : memref<18x16x12xf32, #tpu.memory_space<vmem>>, vector<18x1x4xf32>,
    %10 = vector.extract_strided_slice %1 {offsets = [0, 0, 0], sizes = [16, 15, 4], strides = [1, 1, 1]} : vector<16x16x4xf32> to vector<16x15x4xf32>
    %c1 = arith.constant 1 : index
    %c1_15 = arith.constant 1 : index
    %c0_16 = arith.constant 0 : index
    %11 = vector.load %arg5[%c1, %c1_15, %c0_16] : memref<18x16x12xf32, #tpu.memory_space<vmem>>, vector<16x15x4xf32>
    tpu.vector_store %arg5[%c1, %c1_15, %c0_16], %10 {strides = array<i32>} : memref<18x16x12xf32, #tpu.memory_space<vmem>>, vector<16x15x4xf32>,
    %c1_17 = arith.constant 1 : index
    %c0_18 = arith.constant 0 : index
    %c4 = arith.constant 4 : index
    %12 = vector.load %arg5[%c1_17, %c0_18, %c4] : memref<18x16x12xf32, #tpu.memory_space<vmem>>, vector<16x16x4xf32>
    tpu.vector_store %arg5[%c1_17, %c0_18, %c4], %1 {strides = array<i32>} : memref<18x16x12xf32, #tpu.memory_space<vmem>>, vector<16x16x4xf32>,
    %13 = vector.extract_strided_slice %1 {offsets = [0, 1, 0], sizes = [16, 15, 4], strides = [1, 1, 1]} : vector<16x16x4xf32> to vector<16x15x4xf32>
    %c1_19 = arith.constant 1 : index
    %c0_20 = arith.constant 0 : index
    %c8_21 = arith.constant 8 : index
    %14 = vector.load %arg5[%c1_19, %c0_20, %c8_21] : memref<18x16x12xf32, #tpu.memory_space<vmem>>, vector<16x15x4xf32>
    tpu.vector_store %arg5[%c1_19, %c0_20, %c8_21], %13 {strides = array<i32>} : memref<18x16x12xf32, #tpu.memory_space<vmem>>, vector<16x15x4xf32>,
    %cst_22 = arith.constant 0.000000e+00 : f32
    %15 = vector.broadcast %cst_22 : f32 to vector<256x4xf32>
    %c0_23 = arith.constant 0 : index
    %c0_24 = arith.constant 0 : index
    %c0_25 = arith.constant 0 : index
    %16 = vector.load %arg5[%c0_23, %c0_24, %c0_25] : memref<18x16x12xf32, #tpu.memory_space<vmem>>, vector<16x16x12xf32>
    %17 = vector.shape_cast %16 : vector<16x16x12xf32> to vector<256x12xf32>
    %c0_26 = arith.constant 0 : index
    %c0_27 = arith.constant 0 : index
    %c0_28 = arith.constant 0 : index
    %18 = vector.load %arg2[%c0_26, %c0_27, %c0_28] : memref<3x12x4xf32, #tpu.memory_space<vmem>>, vector<1x12x4xf32>
    %19 = vector.shape_cast %18 : vector<1x12x4xf32> to vector<12x4xf32>
    %cst_29 = arith.constant dense<0.000000e+00> : vector<256x4xf32>
    %20 = tpu.matmul %17, %19, %cst_29 {dimension_numbers = #tpu.dot_dimension_numbers<[1], [0], [0], [1], [0, 0, 1, 1], [], []>} : vector<256x12xf32>, vector<12x4xf32>, vector<256x4xf32> -> vector<256x4xf32>
    %21 = arith.addf %15, %20 : vector<256x4xf32>
    %c1_30 = arith.constant 1 : index
    %c0_31 = arith.constant 0 : index
    %c0_32 = arith.constant 0 : index
    %22 = vector.load %arg5[%c1_30, %c0_31, %c0_32] : memref<18x16x12xf32, #tpu.memory_space<vmem>>, vector<16x16x12xf32>
    %23 = vector.shape_cast %22 : vector<16x16x12xf32> to vector<256x12xf32>
    %c1_33 = arith.constant 1 : index
    %c0_34 = arith.constant 0 : index
    %c0_35 = arith.constant 0 : index
    %24 = vector.load %arg2[%c1_33, %c0_34, %c0_35] : memref<3x12x4xf32, #tpu.memory_space<vmem>>, vector<1x12x4xf32>
    %25 = vector.shape_cast %24 : vector<1x12x4xf32> to vector<12x4xf32>
    %cst_36 = arith.constant dense<0.000000e+00> : vector<256x4xf32>
    %26 = tpu.matmul %23, %25, %cst_36 {dimension_numbers = #tpu.dot_dimension_numbers<[1], [0], [0], [1], [0, 0, 1, 1], [], []>} : vector<256x12xf32>, vector<12x4xf32>, vector<256x4xf32> -> vector<256x4xf32>
    %27 = arith.addf %21, %26 : vector<256x4xf32>
    %c2 = arith.constant 2 : index
    %c0_37 = arith.constant 0 : index
    %c0_38 = arith.constant 0 : index
    %28 = vector.load %arg5[%c2, %c0_37, %c0_38] : memref<18x16x12xf32, #tpu.memory_space<vmem>>, vector<16x16x12xf32>
    %29 = vector.shape_cast %28 : vector<16x16x12xf32> to vector<256x12xf32>
    %c2_39 = arith.constant 2 : index
    %c0_40 = arith.constant 0 : index
    %c0_41 = arith.constant 0 : index
    %30 = vector.load %arg2[%c2_39, %c0_40, %c0_41] : memref<3x12x4xf32, #tpu.memory_space<vmem>>, vector<1x12x4xf32>
    %31 = vector.shape_cast %30 : vector<1x12x4xf32> to vector<12x4xf32>
    %cst_42 = arith.constant dense<0.000000e+00> : vector<256x4xf32>
    %32 = tpu.matmul %29, %31, %cst_42 {dimension_numbers = #tpu.dot_dimension_numbers<[1], [0], [0], [1], [0, 0, 1, 1], [], []>} : vector<256x12xf32>, vector<12x4xf32>, vector<256x4xf32> -> vector<256x4xf32>
    %33 = arith.addf %27, %32 : vector<256x4xf32>
    %34 = vector.shape_cast %33 : vector<256x4xf32> to vector<16x16x4xf32>
    %c0_43 = arith.constant 0 : index
    %c0_44 = arith.constant 0 : index
    %c0_45 = arith.constant 0 : index
    %c0_46 = arith.constant 0 : index
    %35 = vector.load %arg3[%c0_43, %c0_44, %c0_45, %c0_46] : memref<1x16x16x4xf32, #tpu.memory_space<vmem>>, vector<1x16x16x4xf32>
    %36 = vector.shape_cast %35 : vector<1x16x16x4xf32> to vector<16x16x4xf32>
    %37 = vector.shape_cast %34 : vector<16x16x4xf32> to vector<1x16x16x4xf32>
    tpu.vector_store %arg3[%c0_43, %c0_44, %c0_45, %c0_46], %37 {strides = array<i32>} : memref<1x16x16x4xf32, #tpu.memory_space<vmem>>, vector<1x16x16x4xf32>,
    %cst_47 = arith.constant dense<0.000000e+00> : vector<4xf32>
    %38 = vector.multi_reduction <add>, %33, %cst_47 [0] : vector<256x4xf32> to vector<4xf32>
    %39 = vector.shape_cast %38 : vector<4xf32> to vector<1x4xf32>
    %c0_48 = arith.constant 0 : index
    %c0_49 = arith.constant 0 : index
    %c0_50 = arith.constant 0 : index
    %40 = vector.load %arg4[%c0_48, %c0_49, %c0_50] : memref<1x2x4xf32, #tpu.memory_space<vmem>>, vector<1x1x4xf32>
    %41 = vector.shape_cast %40 : vector<1x1x4xf32> to vector<1x4xf32>
    %42 = vector.shape_cast %39 : vector<1x4xf32> to vector<1x1x4xf32>
    tpu.vector_store %arg4[%c0_48, %c0_49, %c0_50], %42 {strides = array<i32>} : memref<1x2x4xf32, #tpu.memory_space<vmem>>, vector<1x1x4xf32>,
    %43 = arith.mulf %33, %33 : vector<256x4xf32>
    %cst_51 = arith.constant dense<0.000000e+00> : vector<4xf32>
    %44 = vector.multi_reduction <add>, %43, %cst_51 [0] : vector<256x4xf32> to vector<4xf32>
    %45 = vector.shape_cast %44 : vector<4xf32> to vector<1x4xf32>
    %c0_52 = arith.constant 0 : index
    %c1_53 = arith.constant 1 : index
    %c0_54 = arith.constant 0 : index
    %46 = vector.load %arg4[%c0_52, %c1_53, %c0_54] : memref<1x2x4xf32, #tpu.memory_space<vmem>>, vector<1x1x4xf32>
    %47 = vector.shape_cast %46 : vector<1x1x4xf32> to vector<1x4xf32>
    %48 = vector.shape_cast %45 : vector<1x4xf32> to vector<1x1x4xf32>
    tpu.vector_store %arg4[%c0_52, %c1_53, %c0_54], %48 {strides = array<i32>} : memref<1x2x4xf32, #tpu.memory_space<vmem>>, vector<1x1x4xf32>,
    return
  }
  func.func @transform_0(%arg0: i32) -> (i32, i32, i32, i32) {
    %c0_i32 = arith.constant 0 : i32
    %c0_i32_0 = arith.constant 0 : i32
    %c0_i32_1 = arith.constant 0 : i32
    %c0_i32_2 = arith.constant 0 : i32
    return %arg0, %c0_i32, %c0_i32_0, %c0_i32_1 : i32, i32, i32, i32
  }
  func.func @transform_1(%arg0: i32) -> (i32, i32, i32) {
    %c0_i32 = arith.constant 0 : i32
    %c0_i32_0 = arith.constant 0 : i32
    %c0_i32_1 = arith.constant 0 : i32
    %c0_i32_2 = arith.constant 0 : i32
    return %c0_i32, %c0_i32_0, %c0_i32_1 : i32, i32, i32
  }
  func.func @transform_2(%arg0: i32) -> (i32, i32, i32, i32) {
    %c0_i32 = arith.constant 0 : i32
    %c0_i32_0 = arith.constant 0 : i32
    %c0_i32_1 = arith.constant 0 : i32
    %c0_i32_2 = arith.constant 0 : i32
    return %arg0, %c0_i32, %c0_i32_0, %c0_i32_1 : i32, i32, i32, i32
  }
  func.func @transform_3(%arg0: i32) -> (i32, i32, i32) {
    %c0_i32 = arith.constant 0 : i32
    %c0_i32_0 = arith.constant 0 : i32
    %c0_i32_1 = arith.constant 0 : i32
    return %arg0, %c0_i32, %c0_i32_0 : i32, i32, i32
  }
}

module attributes {stable_mosaic.version = 11 : i64} {
  func.func @bn_add_relu_kernel(%arg0: i32, %arg1: i32, %arg2: memref<1x8x16x4xf32, #tpu.memory_space<vmem>>, %arg3: memref<1x8x16x4xf32, #tpu.memory_space<vmem>>, %arg4: memref<1x4xf32, #tpu.memory_space<vmem>>, %arg5: memref<1x4xf32, #tpu.memory_space<vmem>>, %arg6: memref<1x8x16x4xf32, #tpu.memory_space<vmem>>) attributes {dimension_semantics = [#tpu.dimension_semantics<parallel>, #tpu.dimension_semantics<parallel>], iteration_bounds = array<i64: 2, 2>, scalar_prefetch = 0 : i64, scratch_operands = 0 : i64, tpu.core_type = #tpu.core_type<tc>, window_params = [{transform_indices = @transform_0, window_bounds = array<i64: 1, 8, 16, 4>}, {transform_indices = @transform_1, window_bounds = array<i64: 1, 8, 16, 4>}, {pipeline_mode = #tpu.pipeline_mode<synchronous>, transform_indices = @transform_2, window_bounds = array<i64: 1, 4>}, {pipeline_mode = #tpu.pipeline_mode<synchronous>, transform_indices = @transform_3, window_bounds = array<i64: 1, 4>}, {transform_indices = @transform_4, window_bounds = array<i64: 1, 8, 16, 4>}]} {
    %c0 = arith.constant 0 : index
    %c0_0 = arith.constant 0 : index
    %c0_1 = arith.constant 0 : index
    %c0_2 = arith.constant 0 : index
    %0 = vector.load %arg2[%c0, %c0_0, %c0_1, %c0_2] : memref<1x8x16x4xf32, #tpu.memory_space<vmem>>, vector<1x8x16x4xf32>
    %1 = vector.shape_cast %0 : vector<1x8x16x4xf32> to vector<8x16x4xf32>
    %c0_3 = arith.constant 0 : index
    %c0_4 = arith.constant 0 : index
    %c0_5 = arith.constant 0 : index
    %c0_6 = arith.constant 0 : index
    %2 = vector.load %arg3[%c0_3, %c0_4, %c0_5, %c0_6] : memref<1x8x16x4xf32, #tpu.memory_space<vmem>>, vector<1x8x16x4xf32>
    %3 = vector.shape_cast %2 : vector<1x8x16x4xf32> to vector<8x16x4xf32>
    %c0_7 = arith.constant 0 : index
    %c0_8 = arith.constant 0 : index
    %4 = vector.load %arg4[%c0_7, %c0_8] : memref<1x4xf32, #tpu.memory_space<vmem>>, vector<1x4xf32>
    %5 = vector.shape_cast %4 : vector<1x4xf32> to vector<1x1x4xf32>
    %c0_9 = arith.constant 0 : index
    %c0_10 = arith.constant 0 : index
    %6 = vector.load %arg5[%c0_9, %c0_10] : memref<1x4xf32, #tpu.memory_space<vmem>>, vector<1x4xf32>
    %7 = vector.shape_cast %6 : vector<1x4xf32> to vector<1x1x4xf32>
    %8 = vector.broadcast %5 : vector<1x1x4xf32> to vector<8x16x4xf32>
    %9 = arith.mulf %1, %8 : vector<8x16x4xf32>
    %10 = vector.broadcast %7 : vector<1x1x4xf32> to vector<8x16x4xf32>
    %11 = arith.addf %9, %10 : vector<8x16x4xf32>
    %12 = arith.addf %11, %3 : vector<8x16x4xf32>
    %cst = arith.constant 0.000000e+00 : f32
    %13 = vector.broadcast %cst : f32 to vector<8x16x4xf32>
    %14 = arith.maximumf %12, %13 : vector<8x16x4xf32>
    %c0_11 = arith.constant 0 : index
    %c0_12 = arith.constant 0 : index
    %c0_13 = arith.constant 0 : index
    %c0_14 = arith.constant 0 : index
    %15 = vector.load %arg6[%c0_11, %c0_12, %c0_13, %c0_14] : memref<1x8x16x4xf32, #tpu.memory_space<vmem>>, vector<1x8x16x4xf32>
    %16 = vector.shape_cast %15 : vector<1x8x16x4xf32> to vector<8x16x4xf32>
    %17 = vector.shape_cast %14 : vector<8x16x4xf32> to vector<1x8x16x4xf32>
    tpu.vector_store %arg6[%c0_11, %c0_12, %c0_13, %c0_14], %17 {strides = array<i32>} : memref<1x8x16x4xf32, #tpu.memory_space<vmem>>, vector<1x8x16x4xf32>,
    return
  }
  func.func @transform_0(%arg0: i32, %arg1: i32) -> (i32, i32, i32, i32) {
    %c0_i32 = arith.constant 0 : i32
    %c0_i32_0 = arith.constant 0 : i32
    %c0_i32_1 = arith.constant 0 : i32
    return %arg0, %arg1, %c0_i32, %c0_i32_0 : i32, i32, i32, i32
  }
  func.func @transform_1(%arg0: i32, %arg1: i32) -> (i32, i32, i32, i32) {
    %c0_i32 = arith.constant 0 : i32
    %c0_i32_0 = arith.constant 0 : i32
    %c0_i32_1 = arith.constant 0 : i32
    return %arg0, %arg1, %c0_i32, %c0_i32_0 : i32, i32, i32, i32
  }
  func.func @transform_2(%arg0: i32, %arg1: i32) -> (i32, i32) {
    %c0_i32 = arith.constant 0 : i32
    %c0_i32_0 = arith.constant 0 : i32
    %c0_i32_1 = arith.constant 0 : i32
    return %c0_i32, %c0_i32_0 : i32, i32
  }
  func.func @transform_3(%arg0: i32, %arg1: i32) -> (i32, i32) {
    %c0_i32 = arith.constant 0 : i32
    %c0_i32_0 = arith.constant 0 : i32
    %c0_i32_1 = arith.constant 0 : i32
    return %c0_i32, %c0_i32_0 : i32, i32
  }
  func.func @transform_4(%arg0: i32, %arg1: i32) -> (i32, i32, i32, i32) {
    %c0_i32 = arith.constant 0 : i32
    %c0_i32_0 = arith.constant 0 : i32
    %c0_i32_1 = arith.constant 0 : i32
    return %arg0, %arg1, %c0_i32, %c0_i32_0 : i32, i32, i32, i32
  }
}

module attributes {stable_mosaic.version = 11 : i64} {
  func.func @bnrelu_conv_bnstats_kernel(%arg0: i32, %arg1: memref<1x16x16x4xf32, #tpu.memory_space<vmem>>, %arg2: memref<1x4xf32, #tpu.memory_space<vmem>>, %arg3: memref<1x4xf32, #tpu.memory_space<vmem>>, %arg4: memref<3x12x4xf32, #tpu.memory_space<vmem>>, %arg5: memref<1x16x16x4xf32, #tpu.memory_space<vmem>>, %arg6: memref<1x2x4xf32, #tpu.memory_space<vmem>>, %arg7: memref<18x16x12xf32, #tpu.memory_space<vmem>>) attributes {dimension_semantics = [#tpu.dimension_semantics<parallel>], iteration_bounds = array<i64: 2>, scalar_prefetch = 0 : i64, scratch_operands = 1 : i64, tpu.core_type = #tpu.core_type<tc>, window_params = [{transform_indices = @transform_0, window_bounds = array<i64: 1, 16, 16, 4>}, {pipeline_mode = #tpu.pipeline_mode<synchronous>, transform_indices = @transform_1, window_bounds = array<i64: 1, 4>}, {pipeline_mode = #tpu.pipeline_mode<synchronous>, transform_indices = @transform_2, window_bounds = array<i64: 1, 4>}, {pipeline_mode = #tpu.pipeline_mode<synchronous>, transform_indices = @transform_3, window_bounds = array<i64: 3, 12, 4>}, {transform_indices = @transform_4, window_bounds = array<i64: 1, 16, 16, 4>}, {transform_indices = @transform_5, window_bounds = array<i64: 1, 2, 4>}]} {
    %c0 = arith.constant 0 : index
    %c0_0 = arith.constant 0 : index
    %c0_1 = arith.constant 0 : index
    %c0_2 = arith.constant 0 : index
    %0 = vector.load %arg1[%c0, %c0_0, %c0_1, %c0_2] : memref<1x16x16x4xf32, #tpu.memory_space<vmem>>, vector<1x16x16x4xf32>
    %1 = vector.shape_cast %0 : vector<1x16x16x4xf32> to vector<16x16x4xf32>
    %c0_3 = arith.constant 0 : index
    %c0_4 = arith.constant 0 : index
    %2 = vector.load %arg2[%c0_3, %c0_4] : memref<1x4xf32, #tpu.memory_space<vmem>>, vector<1x4xf32>
    %3 = vector.shape_cast %2 : vector<1x4xf32> to vector<1x1x4xf32>
    %c0_5 = arith.constant 0 : index
    %c0_6 = arith.constant 0 : index
    %4 = vector.load %arg3[%c0_5, %c0_6] : memref<1x4xf32, #tpu.memory_space<vmem>>, vector<1x4xf32>
    %5 = vector.shape_cast %4 : vector<1x4xf32> to vector<1x1x4xf32>
    %6 = vector.broadcast %3 : vector<1x1x4xf32> to vector<16x16x4xf32>
    %7 = arith.mulf %1, %6 : vector<16x16x4xf32>
    %8 = vector.broadcast %5 : vector<1x1x4xf32> to vector<16x16x4xf32>
    %9 = arith.addf %7, %8 : vector<16x16x4xf32>
    %cst = arith.constant 0.000000e+00 : f32
    %10 = vector.broadcast %cst : f32 to vector<16x16x4xf32>
    %11 = arith.maximumf %9, %10 : vector<16x16x4xf32>
    %cst_7 = arith.constant 0.000000e+00 : f32
    %12 = vector.broadcast %cst_7 : f32 to vector<1x16x12xf32>
    %c0_8 = arith.constant 0 : index
    %c0_9 = arith.constant 0 : index
    %c0_10 = arith.constant 0 : index
    %13 = vector.load %arg7[%c0_8, %c0_9, %c0_10] : memref<18x16x12xf32, #tpu.memory_space<vmem>>, vector<1x16x12xf32>
    tpu.vector_store %arg7[%c0_8, %c0_9, %c0_10], %12 {strides = array<i32>} : memref<18x16x12xf32, #tpu.memory_space<vmem>>, vector<1x16x12xf32>,
    %cst_11 = arith.constant 0.000000e+00 : f32
    %14 = vector.broadcast %cst_11 : f32 to vector<1x16x12xf32>
    %c17 = arith.constant 17 : index
    %c0_12 = arith.constant 0 : index
    %c0_13 = arith.constant 0 : index
    %15 = vector.load %arg7[%c17, %c0_12, %c0_13] : memref<18x16x12xf32, #tpu.memory_space<vmem>>, vector<1x16x12xf32>
    tpu.vector_store %arg7[%c17, %c0_12, %c0_13], %14 {strides = array<i32>} : memref<18x16x12xf32, #tpu.memory_space<vmem>>, vector<1x16x12xf32>,
    %cst_14 = arith.constant 0.000000e+00 : f32
    %16 = vector.broadcast %cst_14 : f32 to vector<18x1x4xf32>
    %c0_15 = arith.constant 0 : index
    %c0_16 = arith.constant 0 : index
    %c0_17 = arith.constant 0 : index
    %17 = vector.load %arg7[%c0_15, %c0_16, %c0_17] : memref<18x16x12xf32, #tpu.memory_space<vmem>>, vector<18x1x4xf32>
    tpu.vector_store %arg7[%c0_15, %c0_16, %c0_17], %16 {strides = array<i32>} : memref<18x16x12xf32, #tpu.memory_space<vmem>>, vector<18x1x4xf32>,
    %cst_18 = arith.constant 0.000000e+00 : f32
    %18 = vector.broadcast %cst_18 : f32 to vector<18x1x4xf32>
    %c0_19 = arith.constant 0 : index
    %c15 = arith.constant 15 : index
    %c8 = arith.constant 8 : index
    %19 = vector.load %arg7[%c0_19, %c15, %c8] : memref<18x16x12xf32, #tpu.memory_space<vmem>>, vector<18x1x4xf32>
    tpu.vector_store %arg7[%c0_19, %c15, %c8], %18 {strides = array<i32>} : memref<18x16x12xf32, #tpu.memory_space<vmem>>, vector<18x1x4xf32>,
    %20 = vector.extract_strided_slice %11 {offsets = [0, 0, 0], sizes = [16, 15, 4], strides = [1, 1, 1]} : vector<16x16x4xf32> to vector<16x15x4xf32>
    %c1 = arith.constant 1 : index
    %c1_20 = arith.constant 1 : index
    %c0_21 = arith.constant 0 : index
    %21 = vector.load %arg7[%c1, %c1_20, %c0_21] : memref<18x16x12xf32, #tpu.memory_space<vmem>>, vector<16x15x4xf32>
    tpu.vector_store %arg7[%c1, %c1_20, %c0_21], %20 {strides = array<i32>} : memref<18x16x12xf32, #tpu.memory_space<vmem>>, vector<16x15x4xf32>,
    %c1_22 = arith.constant 1 : index
    %c0_23 = arith.constant 0 : index
    %c4 = arith.constant 4 : index
    %22 = vector.load %arg7[%c1_22, %c0_23, %c4] : memref<18x16x12xf32, #tpu.memory_space<vmem>>, vector<16x16x4xf32>
    tpu.vector_store %arg7[%c1_22, %c0_23, %c4], %11 {strides = array<i32>} : memref<18x16x12xf32, #tpu.memory_space<vmem>>, vector<16x16x4xf32>,
    %23 = vector.extract_strided_slice %11 {offsets = [0, 1, 0], sizes = [16, 15, 4], strides = [1, 1, 1]} : vector<16x16x4xf32> to vector<16x15x4xf32>
    %c1_24 = arith.constant 1 : index
    %c0_25 = arith.constant 0 : index
    %c8_26 = arith.constant 8 : index
    %24 = vector.load %arg7[%c1_24, %c0_25, %c8_26] : memref<18x16x12xf32, #tpu.memory_space<vmem>>, vector<16x15x4xf32>
    tpu.vector_store %arg7[%c1_24, %c0_25, %c8_26], %23 {strides = array<i32>} : memref<18x16x12xf32, #tpu.memory_space<vmem>>, vector<16x15x4xf32>,
    %cst_27 = arith.constant 0.000000e+00 : f32
    %25 = vector.broadcast %cst_27 : f32 to vector<256x4xf32>
    %c0_28 = arith.constant 0 : index
    %c0_29 = arith.constant 0 : index
    %c0_30 = arith.constant 0 : index
    %26 = vector.load %arg7[%c0_28, %c0_29, %c0_30] : memref<18x16x12xf32, #tpu.memory_space<vmem>>, vector<16x16x12xf32>
    %27 = vector.shape_cast %26 : vector<16x16x12xf32> to vector<256x12xf32>
    %c0_31 = arith.constant 0 : index
    %c0_32 = arith.constant 0 : index
    %c0_33 = arith.constant 0 : index
    %28 = vector.load %arg4[%c0_31, %c0_32, %c0_33] : memref<3x12x4xf32, #tpu.memory_space<vmem>>, vector<1x12x4xf32>
    %29 = vector.shape_cast %28 : vector<1x12x4xf32> to vector<12x4xf32>
    %cst_34 = arith.constant dense<0.000000e+00> : vector<256x4xf32>
    %30 = tpu.matmul %27, %29, %cst_34 {dimension_numbers = #tpu.dot_dimension_numbers<[1], [0], [0], [1], [0, 0, 1, 1], [], []>} : vector<256x12xf32>, vector<12x4xf32>, vector<256x4xf32> -> vector<256x4xf32>
    %31 = arith.addf %25, %30 : vector<256x4xf32>
    %c1_35 = arith.constant 1 : index
    %c0_36 = arith.constant 0 : index
    %c0_37 = arith.constant 0 : index
    %32 = vector.load %arg7[%c1_35, %c0_36, %c0_37] : memref<18x16x12xf32, #tpu.memory_space<vmem>>, vector<16x16x12xf32>
    %33 = vector.shape_cast %32 : vector<16x16x12xf32> to vector<256x12xf32>
    %c1_38 = arith.constant 1 : index
    %c0_39 = arith.constant 0 : index
    %c0_40 = arith.constant 0 : index
    %34 = vector.load %arg4[%c1_38, %c0_39, %c0_40] : memref<3x12x4xf32, #tpu.memory_space<vmem>>, vector<1x12x4xf32>
    %35 = vector.shape_cast %34 : vector<1x12x4xf32> to vector<12x4xf32>
    %cst_41 = arith.constant dense<0.000000e+00> : vector<256x4xf32>
    %36 = tpu.matmul %33, %35, %cst_41 {dimension_numbers = #tpu.dot_dimension_numbers<[1], [0], [0], [1], [0, 0, 1, 1], [], []>} : vector<256x12xf32>, vector<12x4xf32>, vector<256x4xf32> -> vector<256x4xf32>
    %37 = arith.addf %31, %36 : vector<256x4xf32>
    %c2 = arith.constant 2 : index
    %c0_42 = arith.constant 0 : index
    %c0_43 = arith.constant 0 : index
    %38 = vector.load %arg7[%c2, %c0_42, %c0_43] : memref<18x16x12xf32, #tpu.memory_space<vmem>>, vector<16x16x12xf32>
    %39 = vector.shape_cast %38 : vector<16x16x12xf32> to vector<256x12xf32>
    %c2_44 = arith.constant 2 : index
    %c0_45 = arith.constant 0 : index
    %c0_46 = arith.constant 0 : index
    %40 = vector.load %arg4[%c2_44, %c0_45, %c0_46] : memref<3x12x4xf32, #tpu.memory_space<vmem>>, vector<1x12x4xf32>
    %41 = vector.shape_cast %40 : vector<1x12x4xf32> to vector<12x4xf32>
    %cst_47 = arith.constant dense<0.000000e+00> : vector<256x4xf32>
    %42 = tpu.matmul %39, %41, %cst_47 {dimension_numbers = #tpu.dot_dimension_numbers<[1], [0], [0], [1], [0, 0, 1, 1], [], []>} : vector<256x12xf32>, vector<12x4xf32>, vector<256x4xf32> -> vector<256x4xf32>
    %43 = arith.addf %37, %42 : vector<256x4xf32>
    %44 = vector.shape_cast %43 : vector<256x4xf32> to vector<16x16x4xf32>
    %c0_48 = arith.constant 0 : index
    %c0_49 = arith.constant 0 : index
    %c0_50 = arith.constant 0 : index
    %c0_51 = arith.constant 0 : index
    %45 = vector.load %arg5[%c0_48, %c0_49, %c0_50, %c0_51] : memref<1x16x16x4xf32, #tpu.memory_space<vmem>>, vector<1x16x16x4xf32>
    %46 = vector.shape_cast %45 : vector<1x16x16x4xf32> to vector<16x16x4xf32>
    %47 = vector.shape_cast %44 : vector<16x16x4xf32> to vector<1x16x16x4xf32>
    tpu.vector_store %arg5[%c0_48, %c0_49, %c0_50, %c0_51], %47 {strides = array<i32>} : memref<1x16x16x4xf32, #tpu.memory_space<vmem>>, vector<1x16x16x4xf32>,
    %cst_52 = arith.constant dense<0.000000e+00> : vector<4xf32>
    %48 = vector.multi_reduction <add>, %43, %cst_52 [0] : vector<256x4xf32> to vector<4xf32>
    %49 = vector.shape_cast %48 : vector<4xf32> to vector<1x4xf32>
    %c0_53 = arith.constant 0 : index
    %c0_54 = arith.constant 0 : index
    %c0_55 = arith.constant 0 : index
    %50 = vector.load %arg6[%c0_53, %c0_54, %c0_55] : memref<1x2x4xf32, #tpu.memory_space<vmem>>, vector<1x1x4xf32>
    %51 = vector.shape_cast %50 : vector<1x1x4xf32> to vector<1x4xf32>
    %52 = vector.shape_cast %49 : vector<1x4xf32> to vector<1x1x4xf32>
    tpu.vector_store %arg6[%c0_53, %c0_54, %c0_55], %52 {strides = array<i32>} : memref<1x2x4xf32, #tpu.memory_space<vmem>>, vector<1x1x4xf32>,
    %53 = arith.mulf %43, %43 : vector<256x4xf32>
    %cst_56 = arith.constant dense<0.000000e+00> : vector<4xf32>
    %54 = vector.multi_reduction <add>, %53, %cst_56 [0] : vector<256x4xf32> to vector<4xf32>
    %55 = vector.shape_cast %54 : vector<4xf32> to vector<1x4xf32>
    %c0_57 = arith.constant 0 : index
    %c1_58 = arith.constant 1 : index
    %c0_59 = arith.constant 0 : index
    %56 = vector.load %arg6[%c0_57, %c1_58, %c0_59] : memref<1x2x4xf32, #tpu.memory_space<vmem>>, vector<1x1x4xf32>
    %57 = vector.shape_cast %56 : vector<1x1x4xf32> to vector<1x4xf32>
    %58 = vector.shape_cast %55 : vector<1x4xf32> to vector<1x1x4xf32>
    tpu.vector_store %arg6[%c0_57, %c1_58, %c0_59], %58 {strides = array<i32>} : memref<1x2x4xf32, #tpu.memory_space<vmem>>, vector<1x1x4xf32>,
    return
  }
  func.func @transform_0(%arg0: i32) -> (i32, i32, i32, i32) {
    %c0_i32 = arith.constant 0 : i32
    %c0_i32_0 = arith.constant 0 : i32
    %c0_i32_1 = arith.constant 0 : i32
    %c0_i32_2 = arith.constant 0 : i32
    return %arg0, %c0_i32, %c0_i32_0, %c0_i32_1 : i32, i32, i32, i32
  }
  func.func @transform_1(%arg0: i32) -> (i32, i32) {
    %c0_i32 = arith.constant 0 : i32
    %c0_i32_0 = arith.constant 0 : i32
    %c0_i32_1 = arith.constant 0 : i32
    return %c0_i32, %c0_i32_0 : i32, i32
  }
  func.func @transform_2(%arg0: i32) -> (i32, i32) {
    %c0_i32 = arith.constant 0 : i32
    %c0_i32_0 = arith.constant 0 : i32
    %c0_i32_1 = arith.constant 0 : i32
    return %c0_i32, %c0_i32_0 : i32, i32
  }
  func.func @transform_3(%arg0: i32) -> (i32, i32, i32) {
    %c0_i32 = arith.constant 0 : i32
    %c0_i32_0 = arith.constant 0 : i32
    %c0_i32_1 = arith.constant 0 : i32
    %c0_i32_2 = arith.constant 0 : i32
    return %c0_i32, %c0_i32_0, %c0_i32_1 : i32, i32, i32
  }
  func.func @transform_4(%arg0: i32) -> (i32, i32, i32, i32) {
    %c0_i32 = arith.constant 0 : i32
    %c0_i32_0 = arith.constant 0 : i32
    %c0_i32_1 = arith.constant 0 : i32
    %c0_i32_2 = arith.constant 0 : i32
    return %arg0, %c0_i32, %c0_i32_0, %c0_i32_1 : i32, i32, i32, i32
  }
  func.func @transform_5(%arg0: i32) -> (i32, i32, i32) {
    %c0_i32 = arith.constant 0 : i32
    %c0_i32_0 = arith.constant 0 : i32
    %c0_i32_1 = arith.constant 0 : i32
    return %arg0, %c0_i32, %c0_i32_0 : i32, i32, i32
  }
}

</mosaic_0001>

<llo_original>
// kernel: basic_block_forward.5
$region0: #{basic_block_forward.5}
  #allocation0 [shape = 'u32[]', space=smem, size = 0x4, offset = 0x4, fixed_abs, tag = 'smem constant byte address 0x4 - core index']
  #allocation1 [shape = 'u32[144,128]{1,0:T(1,128)}', space=vmem, size = 0x12000, scoped, tag = 'internal scratch']
  %s0 = inlined_call_operand.vmem [shape: f32[2,16,16,4], index: 0, kind: input, shape index: {}]
  %s1 = inlined_call_operand.vmem [shape: f32[2,16,16,4], index: 1, kind: input, shape index: {}]
  %s2 = inlined_call_operand.vmem [shape: f32[1,4], index: 2, kind: input, shape index: {}]
  %s3 = inlined_call_operand.vmem [shape: f32[1,4], index: 3, kind: input, shape index: {}]
  %s4 = inlined_call_operand.vmem [shape: f32[2,16,16,4], index: 4, kind: output, shape index: {}]
  %s5 = sld [smem:[#allocation0]]
  $region49: #{basic_block_forward.5} parent=0
    _
  %s7 = ssub.s32 1, %s5
  %s8 = scalar_select 0, %s7, %s5
  loop: start=0, step=1, limit=6
  $region2: #{basic_block_forward.5} parent=0 // loop_pre_header
    _
  $region3: #{basic_block_forward.5} parent=0 // loop_header
    %s10 = sphi 0, %s14
    %p11 = scmp.ge.s32.totalorder %s10, 6
    %s17 = sphi 0, %s29
    %s18 = sphi 0, %s25
    %s19 = sphi 0, %s17
    %s20 = sphi 0, %s18
    %s21 = sphi 0, %s19
    %s22 = sphi 0, %s20
    %s34 = sphi 0, %s36
    %s37 = sphi 0, %s34
    %s38 = sphi 0, %s37
    %s54 = sphi 0, %s38
    %s62 = sphi 0, %s64
    %s65 = sphi 0, %s62
    %s66 = sphi 0, %s65
    %s82 = sphi 0, %s66
    %s86 = sphi 0, %s86
    %s88 = sphi 0, %s86
    %s89 = sphi 0, %s88
    %s103 = sphi 0, %s89
    %s107 = sphi 0, %s107
    %s109 = sphi 0, %s107
    %s110 = sphi 0, %s109
    %s124 = sphi 0, %s110
    %s132 = sphi 0, %s134
    %s135 = sphi 0, %s132
    %s136 = sphi 0, %s135
    %s152 = sphi 0, %s136
  $region4: #{basic_block_forward.5} parent=0 // loop_header_branch
    %13 = sbr.rel (%p11) target = $region8
  $region5: #{basic_block_forward.5} parent=0 // loop_body
    %s15 = ssub.s32 %s10, 1
    %s16 = ssub.s32 %s10, 2
    %s23 = sadd.s32 1, %s18
    %p24 = scmp.ge.s32.totalorder %s23, 2
    %s25 = scalar_select %p24, 0, %s23
    %s26 = sadd.s32 1, %s17
    %s27 = scalar_select %p24, %s26, %s17
    %p28 = scmp.ge.s32.totalorder %s27, 2
    %s29 = scalar_select %p28, 0, %s27
    %s30 = ssub.s32 %s17, %s29
    %s31 = ssub.s32 %s18, %s25
    %s32 = sor.u32 %s30, %s31
    %p33 = scmp.eq.s32.totalorder %s32, 0
    %s35 = sadd.s32 %s34, 1
    %s36 = scalar_select %p33, %s34, %s35
    %p39 = pneg %p33
    %p40 = scmp.eq.s32.totalorder %s10, 3
    %p41 = por %p39, %p40
    %p42 = scmp.ne.s32.totalorder %s34, %s37
    %p43 = scmp.eq.s32.totalorder %s10, 0
    %p44 = por %p42, %p43
    %p45 = scmp.ne.s32.totalorder %s34, %s37
    %p46 = scmp.eq.s32.totalorder %s15, 3
    %p47 = por %p45, %p46
    %p48 = scmp.ne.s32.totalorder %s37, %s38
    %p49 = scmp.eq.s32.totalorder %s15, 0
    %p50 = por %p48, %p49
    %p51 = scmp.ne.s32.totalorder %s37, %s38
    %p52 = scmp.eq.s32.totalorder %s16, 3
    %p53 = por %p51, %p52
    %p55 = scmp.ne.s32.totalorder %s38, %s54
    %p56 = scmp.eq.s32.totalorder %s16, 0
    %p57 = por %p55, %p56
    %s58 = ssub.s32 %s17, %s29
    %s59 = ssub.s32 %s18, %s25
    %s60 = sor.u32 %s58, %s59
    %p61 = scmp.eq.s32.totalorder %s60, 0
    %s63 = sadd.s32 %s62, 1
    %s64 = scalar_select %p61, %s62, %s63
    %p67 = pneg %p61
    %p68 = scmp.eq.s32.totalorder %s10, 3
    %p69 = por %p67, %p68
    %p70 = scmp.ne.s32.totalorder %s62, %s65
    %p71 = scmp.eq.s32.totalorder %s10, 0
    %p72 = por %p70, %p71
    %p73 = scmp.ne.s32.totalorder %s62, %s65
    %p74 = scmp.eq.s32.totalorder %s15, 3
    %p75 = por %p73, %p74
    %p76 = scmp.ne.s32.totalorder %s65, %s66
    %p77 = scmp.eq.s32.totalorder %s15, 0
    %p78 = por %p76, %p77
    %p79 = scmp.ne.s32.totalorder %s65, %s66
    %p80 = scmp.eq.s32.totalorder %s16, 3
    %p81 = por %p79, %p80
    %p83 = scmp.ne.s32.totalorder %s66, %s82
    %p84 = scmp.eq.s32.totalorder %s16, 0
    %p85 = por %p83, %p84
    %s87 = sadd.s32 %s86, 1
    %p90 = scmp.eq.s32.totalorder %s10, 3
    %p91 = scmp.ne.s32.totalorder %s86, %s88
    %p92 = scmp.eq.s32.totalorder %s10, 0
    %p93 = por %p91, %p92
    %p94 = scmp.ne.s32.totalorder %s86, %s88
    %p95 = scmp.eq.s32.totalorder %s15, 3
    %p96 = por %p94, %p95
    %p97 = scmp.ne.s32.totalorder %s88, %s89
    %p98 = scmp.eq.s32.totalorder %s15, 0
    %p99 = por %p97, %p98
    %p100 = scmp.ne.s32.totalorder %s88, %s89
    %p101 = scmp.eq.s32.totalorder %s16, 3
    %p102 = por %p100, %p101
    %p104 = scmp.ne.s32.totalorder %s89, %s103
    %p105 = scmp.eq.s32.totalorder %s16, 0
    %p106 = por %p104, %p105
    %s108 = sadd.s32 %s107, 1
    %p111 = scmp.eq.s32.totalorder %s10, 3
    %p112 = scmp.ne.s32.totalorder %s107, %s109
    %p113 = scmp.eq.s32.totalorder %s10, 0
    %p114 = por %p112, %p113
    %p115 = scmp.ne.s32.totalorder %s107, %s109
    %p116 = scmp.eq.s32.totalorder %s15, 3
    %p117 = por %p115, %p116
    %p118 = scmp.ne.s32.totalorder %s109, %s110
    %p119 = scmp.eq.s32.totalorder %s15, 0
    %p120 = por %p118, %p119
    %p121 = scmp.ne.s32.totalorder %s109, %s110
    %p122 = scmp.eq.s32.totalorder %s16, 3
    %p123 = por %p121, %p122
    %p125 = scmp.ne.s32.totalorder %s110, %s124
    %p126 = scmp.eq.s32.totalorder %s16, 0
    %p127 = por %p125, %p126
    %s128 = ssub.s32 %s17, %s29
    %s129 = ssub.s32 %s18, %s25
    %s130 = sor.u32 %s128, %s129
    %p131 = scmp.eq.s32.totalorder %s130, 0
    %s133 = sadd.s32 %s132, 1
    %s134 = scalar_select %p131, %s132, %s133
    %p137 = pneg %p131
    %p138 = scmp.eq.s32.totalorder %s10, 3
    %p139 = por %p137, %p138
    %p140 = scmp.ne.s32.totalorder %s132, %s135
    %p141 = scmp.eq.s32.totalorder %s10, 0
    %p142 = por %p140, %p141
    %p143 = scmp.ne.s32.totalorder %s132, %s135
    %p144 = scmp.eq.s32.totalorder %s15, 3
    %p145 = por %p143, %p144
    %p146 = scmp.ne.s32.totalorder %s135, %s136
    %p147 = scmp.eq.s32.totalorder %s15, 0
    %p148 = por %p146, %p147
    %p149 = scmp.ne.s32.totalorder %s135, %s136
    %p150 = scmp.eq.s32.totalorder %s16, 3
    %p151 = por %p149, %p150
    %p153 = scmp.ne.s32.totalorder %s136, %s152
    %p154 = scmp.eq.s32.totalorder %s16, 0
    %p155 = por %p153, %p154
    %p156 = scmp.le.s32.totalorder 1, %s10
    %p157 = scmp.lt.s32.totalorder %s10, 5
    %p158 = pnand %p156, %p157
    %p159 = pneg %p158
    // Predicated region
    $region9: #{basic_block_forward.5} parent=5 // pred_check
      _
    $region10: #{basic_block_forward.5} parent=5 // pred_check_branch
      %161 = sbr.rel (%p158) target = $region12
    $region11: #{basic_block_forward.5} parent=5 // pred_region
      %s162 = ssub.s32 %s10, 1
      // Predicated region
      $region13: #{basic_block_forward.5} parent=11 // pred_check
        %p163 = pneg %p99
      $region14: #{basic_block_forward.5} parent=11 // pred_check_branch
        %165 = sbr.rel (%p163) target = $region16
      $region15: #{basic_block_forward.5} parent=11 // pred_region
        _
      $region16: #{basic_block_forward.5} parent=11 // pred_fallthru
        _
      // Predicated region
      $region17: #{basic_block_forward.5} parent=11 // pred_check
        %p166 = pneg %p120
      $region18: #{basic_block_forward.5} parent=11 // pred_check_branch
        %168 = sbr.rel (%p166) target = $region20
      $region19: #{basic_block_forward.5} parent=11 // pred_region
        _
      $region20: #{basic_block_forward.5} parent=11 // pred_fallthru
        _
    $region12: #{basic_block_forward.5} parent=5 // pred_fallthru
      _
    %p169 = scmp.lt.s32.totalorder %s10, 4
    // Predicated region
    $region21: #{basic_block_forward.5} parent=5 // pred_check
      %p170 = pneg %p169
    $region22: #{basic_block_forward.5} parent=5 // pred_check_branch
      %172 = sbr.rel (%p170) target = $region24
    $region23: #{basic_block_forward.5} parent=5 // pred_region
      // Predicated region
      $region25: #{basic_block_forward.5} parent=23 // pred_check
        %p173 = pneg %p44
      $region26: #{basic_block_forward.5} parent=23 // pred_check_branch
        %175 = sbr.rel (%p173) target = $region28
      $region27: #{basic_block_forward.5} parent=23 // pred_region
        %s176 = smul.u32 8, %s18
        %p177 = scmp.lt.s32.totalorder %s17, 1
        %s178 = scalar_select %p177, %s17, 1
        %p179 = scmp.lt.s32.totalorder %s176, 15
        %s180 = scalar_select %p179, %s176, 15
        %s181 = smul.addr %s180, 2
        %s182 = smul.addr %s178, 32
        %s183 = sadd.s32 %s181, %s182
        %s184 = smul.addr %s183, 8
        %s185 = scalar_lea.vmem %s0, %s184
        %s186 = smul.u32 8, %s18
      $region28: #{basic_block_forward.5} parent=23 // pred_fallthru
        _
      // Predicated region
      $region29: #{basic_block_forward.5} parent=23 // pred_check
        %p187 = pneg %p72
      $region30: #{basic_block_forward.5} parent=23 // pred_check_branch
        %189 = sbr.rel (%p187) target = $region32
      $region31: #{basic_block_forward.5} parent=23 // pred_region
        %s190 = smul.u32 8, %s18
        %p191 = scmp.lt.s32.totalorder %s17, 1
        %s192 = scalar_select %p191, %s17, 1
        %p193 = scmp.lt.s32.totalorder %s190, 15
        %s194 = scalar_select %p193, %s190, 15
        %s195 = smul.addr %s194, 2
        %s196 = smul.addr %s192, 32
        %s197 = sadd.s32 %s195, %s196
        %s198 = smul.addr %s197, 8
        %s199 = scalar_lea.vmem %s1, %s198
        %s200 = smul.u32 8, %s18
      $region32: #{basic_block_forward.5} parent=23 // pred_fallthru
        _
    $region24: #{basic_block_forward.5} parent=5 // pred_fallthru
      _
    %p201 = scmp.le.s32.totalorder 1, %s10
    %p202 = scmp.lt.s32.totalorder %s10, 5
    %p203 = pnand %p201, %p202
    %p204 = pneg %p203
    // Predicated region
    $region33: #{basic_block_forward.5} parent=5 // pred_check
      _
    $region34: #{basic_block_forward.5} parent=5 // pred_check_branch
      %206 = sbr.rel (%p203) target = $region36
    $region35: #{basic_block_forward.5} parent=5 // pred_region
      %s207 = ssub.s32 %s10, 1
      %s208 = smul.u32 8, %s20
      %p209 = scmp.lt.s32.totalorder %s19, 1
      %s210 = scalar_select %p209, %s19, 1
      %p211 = scmp.lt.s32.totalorder %s208, 15
      %s212 = scalar_select %p211, %s208, 15
      %s213 = smul.addr %s212, 2
      %s214 = smul.addr %s210, 32
      %s215 = sadd.s32 %s213, %s214
      %s216 = smul.addr %s215, 8
      %s217 = scalar_lea.vmem %s0, %s216
      %p218 = pneg %p50
      %p219 = pneg %p47
      %s220 = smul.u32 8, %s20
      %p221 = scmp.lt.s32.totalorder %s19, 1
      %s222 = scalar_select %p221, %s19, 1
      %p223 = scmp.lt.s32.totalorder %s220, 15
      %s224 = scalar_select %p223, %s220, 15
      %s225 = smul.addr %s224, 2
      %s226 = smul.addr %s222, 32
      %s227 = sadd.s32 %s225, %s226
      %s228 = smul.addr %s227, 8
      %s229 = scalar_lea.vmem %s1, %s228
      %p230 = pneg %p78
      %p231 = pneg %p75
      %p232 = pneg %p99
      %p233 = pneg %p96
      %p234 = pneg %p120
      %p235 = pneg %p117
      %p236 = pneg %p148
      %p237 = pneg %p145
      %s238 = smul.u32 8, %s20
      %p239 = scmp.lt.s32.totalorder %s19, 1
      %s240 = scalar_select %p239, %s19, 1
      %p241 = scmp.lt.s32.totalorder %s238, 15
      %s242 = scalar_select %p241, %s238, 15
      %s243 = smul.addr %s242, 2
      %s244 = smul.addr %s240, 32
      %s245 = sadd.s32 %s243, %s244
      %s246 = smul.addr %s245, 8
      %s247 = scalar_lea.vmem %s4, %s246
      %s248 = smul.u32 8, %s20
      %p249 = scmp.lt.s32.totalorder %s19, 1
      %s250 = scalar_select %p249, %s19, 1
      %p251 = scmp.lt.s32.totalorder %s248, 15
      %s252 = scalar_select %p251, %s248, 15
      %s253 = smul.addr %s252, 2
      %s254 = smul.addr %s250, 32
      %s255 = sadd.s32 %s253, %s254
      %s256 = smul.addr %s255, 8
      %s257 = scalar_lea.vmem %s0, %s256
      %s258 = smul.u32 8, %s20
      %s259 = smul.u32 8, %s20
      %p260 = scmp.lt.s32.totalorder %s19, 1
      %s261 = scalar_select %p260, %s19, 1
      %p262 = scmp.lt.s32.totalorder %s259, 15
      %s263 = scalar_select %p262, %s259, 15
      %s264 = smul.addr %s263, 2
      %s265 = smul.addr %s261, 32
      %s266 = sadd.s32 %s264, %s265
      %s267 = smul.addr %s266, 8
      %s268 = scalar_lea.vmem %s1, %s267
      %s269 = smul.u32 8, %s20
      %s270 = smul.u32 8, %s20
      %p271 = scmp.lt.s32.totalorder %s19, 1
      %s272 = scalar_select %p271, %s19, 1
      %p273 = scmp.lt.s32.totalorder %s270, 15
      %s274 = scalar_select %p273, %s270, 15
      %s275 = smul.addr %s274, 2
      %s276 = smul.addr %s272, 32
      %s277 = sadd.s32 %s275, %s276
      %s278 = smul.addr %s277, 8
      %s279 = scalar_lea.vmem %s4, %s278
      %s280 = smul.u32 8, %s20
      %v281 = vld [vmem:[%s257] sm:$0xff]
      %v282 = vld [vmem:[%s257 + $0x8] sm:$0xff]
      %v283 = vld [vmem:[%s257 + $0x10] sm:$0xff]
      %v284 = vld [vmem:[%s257 + $0x18] sm:$0xff]
      %v285 = vld [vmem:[%s257 + $0x20] sm:$0xff]
      %v286 = vld [vmem:[%s257 + $0x28] sm:$0xff]
      %v287 = vld [vmem:[%s257 + $0x30] sm:$0xff]
      %v288 = vld [vmem:[%s257 + $0x38] sm:$0xff]
      %v289 = vld [vmem:[%s257 + $0x40] sm:$0xff]
      %v290 = vld [vmem:[%s257 + $0x48] sm:$0xff]
      %v291 = vld [vmem:[%s257 + $0x50] sm:$0xff]
      %v292 = vld [vmem:[%s257 + $0x58] sm:$0xff]
      %v293 = vld [vmem:[%s257 + $0x60] sm:$0xff]
      %v294 = vld [vmem:[%s257 + $0x68] sm:$0xff]
      %v295 = vld [vmem:[%s257 + $0x70] sm:$0xff]
      %v296 = vld [vmem:[%s257 + $0x78] sm:$0xff]
      %v297 = vld [vmem:[%s268] sm:$0xff]
      %v298 = vld [vmem:[%s268 + $0x8] sm:$0xff]
      %v299 = vld [vmem:[%s268 + $0x10] sm:$0xff]
      %v300 = vld [vmem:[%s268 + $0x18] sm:$0xff]
      %v301 = vld [vmem:[%s268 + $0x20] sm:$0xff]
      %v302 = vld [vmem:[%s268 + $0x28] sm:$0xff]
      %v303 = vld [vmem:[%s268 + $0x30] sm:$0xff]
      %v304 = vld [vmem:[%s268 + $0x38] sm:$0xff]
      %v305 = vld [vmem:[%s268 + $0x40] sm:$0xff]
      %v306 = vld [vmem:[%s268 + $0x48] sm:$0xff]
      %v307 = vld [vmem:[%s268 + $0x50] sm:$0xff]
      %v308 = vld [vmem:[%s268 + $0x58] sm:$0xff]
      %v309 = vld [vmem:[%s268 + $0x60] sm:$0xff]
      %v310 = vld [vmem:[%s268 + $0x68] sm:$0xff]
      %v311 = vld [vmem:[%s268 + $0x70] sm:$0xff]
      %v312 = vld [vmem:[%s268 + $0x78] sm:$0xff]
      %v313 = vld [vmem:[%s2] sm:$0x1]
      %v314 = vld [vmem:[%s3] sm:$0x1]
      %v316 = vlaneseq
      %v317 = vshrl.u32 %v316, 7
      %v318 = vsub.s32 0, %v317
      %v319 = vrot.slane %v313, %v318
      %v321 = vmul.f32 %v281, %v319
      %v322 = vmul.f32 %v282, %v319
      %v323 = vmul.f32 %v283, %v319
      %v324 = vmul.f32 %v284, %v319
      %v325 = vmul.f32 %v285, %v319
      %v326 = vmul.f32 %v286, %v319
      %v327 = vmul.f32 %v287, %v319
      %v328 = vmul.f32 %v288, %v319
      %v329 = vmul.f32 %v289, %v319
      %v330 = vmul.f32 %v290, %v319
      %v331 = vmul.f32 %v291, %v319
      %v332 = vmul.f32 %v292, %v319
      %v333 = vmul.f32 %v293, %v319
      %v334 = vmul.f32 %v294, %v319
      %v335 = vmul.f32 %v295, %v319
      %v336 = vmul.f32 %v296, %v319
      %v338 = vlaneseq
      %v339 = vshrl.u32 %v338, 7
      %v340 = vsub.s32 0, %v339
      %v341 = vrot.slane %v314, %v340
      %v343 = vadd.f32 %v321, %v341
      %v344 = vadd.f32 %v322, %v341
      %v345 = vadd.f32 %v323, %v341
      %v346 = vadd.f32 %v324, %v341
      %v347 = vadd.f32 %v325, %v341
      %v348 = vadd.f32 %v326, %v341
      %v349 = vadd.f32 %v327, %v341
      %v350 = vadd.f32 %v328, %v341
      %v351 = vadd.f32 %v329, %v341
      %v352 = vadd.f32 %v330, %v341
      %v353 = vadd.f32 %v331, %v341
      %v354 = vadd.f32 %v332, %v341
      %v355 = vadd.f32 %v333, %v341
      %v356 = vadd.f32 %v334, %v341
      %v357 = vadd.f32 %v335, %v341
      %v358 = vadd.f32 %v336, %v341
      %v359 = vadd.f32 %v343, %v297
      %v360 = vadd.f32 %v344, %v298
      %v361 = vadd.f32 %v345, %v299
      %v362 = vadd.f32 %v346, %v300
      %v363 = vadd.f32 %v347, %v301
      %v364 = vadd.f32 %v348, %v302
      %v365 = vadd.f32 %v349, %v303
      %v366 = vadd.f32 %v350, %v304
      %v367 = vadd.f32 %v351, %v305
      %v368 = vadd.f32 %v352, %v306
      %v369 = vadd.f32 %v353, %v307
      %v370 = vadd.f32 %v354, %v308
      %v371 = vadd.f32 %v355, %v309
      %v372 = vadd.f32 %v356, %v310
      %v373 = vadd.f32 %v357, %v311
      %v374 = vadd.f32 %v358, %v312
      %v375 = vmax.f32 %v359, 0.0
      %v376 = vmax.f32 %v360, 0.0
      %v377 = vmax.f32 %v361, 0.0
      %v378 = vmax.f32 %v362, 0.0
      %v379 = vmax.f32 %v363, 0.0
      %v380 = vmax.f32 %v364, 0.0
      %v381 = vmax.f32 %v365, 0.0
      %v382 = vmax.f32 %v366, 0.0
      %v383 = vmax.f32 %v367, 0.0
      %v384 = vmax.f32 %v368, 0.0
      %v385 = vmax.f32 %v369, 0.0
      %v386 = vmax.f32 %v370, 0.0
      %v387 = vmax.f32 %v371, 0.0
      %v388 = vmax.f32 %v372, 0.0
      %v389 = vmax.f32 %v373, 0.0
      %v390 = vmax.f32 %v374, 0.0
      %vm391 = vcmask 31744
      %392 = vst.msk [vmem:[%s279] sm:$0xff] %vm391, %v375
      %393 = vst.msk [vmem:[%s279 + $0x8] sm:$0xff] %vm391, %v376
      %394 = vst.msk [vmem:[%s279 + $0x10] sm:$0xff] %vm391, %v377
      %395 = vst.msk [vmem:[%s279 + $0x18] sm:$0xff] %vm391, %v378
      %396 = vst.msk [vmem:[%s279 + $0x20] sm:$0xff] %vm391, %v379
      %397 = vst.msk [vmem:[%s279 + $0x28] sm:$0xff] %vm391, %v380
      %398 = vst.msk [vmem:[%s279 + $0x30] sm:$0xff] %vm391, %v381
      %399 = vst.msk [vmem:[%s279 + $0x38] sm:$0xff] %vm391, %v382
      %400 = vst.msk [vmem:[%s279 + $0x40] sm:$0xff] %vm391, %v383
      %401 = vst.msk [vmem:[%s279 + $0x48] sm:$0xff] %vm391, %v384
      %402 = vst.msk [vmem:[%s279 + $0x50] sm:$0xff] %vm391, %v385
      %403 = vst.msk [vmem:[%s279 + $0x58] sm:$0xff] %vm391, %v386
      %404 = vst.msk [vmem:[%s279 + $0x60] sm:$0xff] %vm391, %v387
      %405 = vst.msk [vmem:[%s279 + $0x68] sm:$0xff] %vm391, %v388
      %406 = vst.msk [vmem:[%s279 + $0x70] sm:$0xff] %vm391, %v389
      %407 = vst.msk [vmem:[%s279 + $0x78] sm:$0xff] %vm391, %v390
      %s408 = smul.u32 8, %s20
      %p409 = scmp.lt.s32.totalorder %s19, 1
      %s410 = scalar_select %p409, %s19, 1
      %p411 = scmp.lt.s32.totalorder %s408, 15
      %s412 = scalar_select %p411, %s408, 15
      %s413 = smul.addr %s412, 2
      %s414 = smul.addr %s410, 32
      %s415 = sadd.s32 %s413, %s414
      %s416 = smul.addr %s415, 8
      %s417 = scalar_lea.vmem %s4, %s416
      // Predicated region
      $region37: #{basic_block_forward.5} parent=35 // pred_check
        %p418 = pneg %p145
      $region38: #{basic_block_forward.5} parent=35 // pred_check_branch
        %420 = sbr.rel (%p418) target = $region40
      $region39: #{basic_block_forward.5} parent=35 // pred_region
        %s421 = smul.u32 8, %s20
      $region40: #{basic_block_forward.5} parent=35 // pred_fallthru
        _
    $region36: #{basic_block_forward.5} parent=5 // pred_fallthru
      _
    %p422 = scmp.le.s32.totalorder 2, %s10
    // Predicated region
    $region41: #{basic_block_forward.5} parent=5 // pred_check
      %p423 = pneg %p422
    $region42: #{basic_block_forward.5} parent=5 // pred_check_branch
      %425 = sbr.rel (%p423) target = $region44
    $region43: #{basic_block_forward.5} parent=5 // pred_region
      %s426 = ssub.s32 %s10, 2
      // Predicated region
      $region45: #{basic_block_forward.5} parent=43 // pred_check
        %p427 = pneg %p151
      $region46: #{basic_block_forward.5} parent=43 // pred_check_branch
        %429 = sbr.rel (%p427) target = $region48
      $region47: #{basic_block_forward.5} parent=43 // pred_region
        %s430 = smul.u32 8, %s22
        %p431 = scmp.lt.s32.totalorder %s21, 1
        %s432 = scalar_select %p431, %s21, 1
        %p433 = scmp.lt.s32.totalorder %s430, 15
        %s434 = scalar_select %p433, %s430, 15
        %s435 = smul.addr %s434, 2
        %s436 = smul.addr %s432, 32
        %s437 = sadd.s32 %s435, %s436
        %s438 = smul.addr %s437, 8
        %s439 = scalar_lea.vmem %s4, %s438
      $region48: #{basic_block_forward.5} parent=43 // pred_fallthru
        _
    $region44: #{basic_block_forward.5} parent=5 // pred_fallthru
      _
  $region6: #{basic_block_forward.5} parent=0 // loop_footer
    %s14 = sadd.s32 1, %s10
  $region7: #{basic_block_forward.5} parent=0 // loop_footer_branch
    %9 = sbr.rel target = $region3
  $region8: #{basic_block_forward.5} parent=0 // loop_exit
    _

// kernel: basic_block_forward.3
$region0: #{basic_block_forward.3}
  #allocation0 [shape = 'u32[]', space=smem, size = 0x4, offset = 0x4, fixed_abs, tag = 'smem constant byte address 0x4 - core index']
  #allocation1 [shape = 'u32[144,128]{1,0:T(1,128)}', space=vmem, size = 0x12000, scoped, tag = 'internal scratch']
  #allocation2 [shape = 'f32[18,16,12]{2,1,0:T(8,128)}', space=vmem, size = 0x24000, scoped, tag = 'scratch operand']
  %s0 = inlined_call_operand.vmem [shape: f32[2,16,16,4], index: 0, kind: input, shape index: {}]
  %s1 = inlined_call_operand.vmem [shape: f32[3,12,4], index: 1, kind: input, shape index: {}]
  %s2 = inlined_call_operand.vmem [shape: f32[2,16,16,4], index: 2, kind: output, shape index: {0}]
  %s3 = inlined_call_operand.vmem [shape: f32[2,2,4], index: 3, kind: output, shape index: {1}]
  %4 = xla_tuple %s2, %s3
  %s5 = sld [smem:[#allocation0]]
  $region49: #{basic_block_forward.3} parent=0
    _
  %s7 = ssub.s32 1, %s5
  %s8 = scalar_select 0, %s7, %s5
  loop: start=0, step=1, limit=4
  $region2: #{basic_block_forward.3} parent=0 // loop_pre_header
    _
  $region3: #{basic_block_forward.3} parent=0 // loop_header
    %s10 = sphi 0, %s14
    %p11 = scmp.ge.s32.totalorder %s10, 4
    %s20 = sphi 0, %s22
    %s23 = sphi 0, %s20
    %s24 = sphi 0, %s23
    %s40 = sphi 0, %s24
    %s44 = sphi 0, %s44
    %s46 = sphi 0, %s44
    %s47 = sphi 0, %s46
    %s61 = sphi 0, %s47
    %s67 = sphi 0, %s69
    %s70 = sphi 0, %s67
    %s71 = sphi 0, %s70
    %s87 = sphi 0, %s71
    %s93 = sphi 0, %s95
    %s96 = sphi 0, %s93
    %s97 = sphi 0, %s96
    %s113 = sphi 0, %s97
  $region4: #{basic_block_forward.3} parent=0 // loop_header_branch
    %13 = sbr.rel (%p11) target = $region8
  $region5: #{basic_block_forward.3} parent=0 // loop_body
    %s15 = ssub.s32 %s10, 1
    %s16 = ssub.s32 %s10, 2
    %s17 = sadd.s32 %s10, 1
    %s18 = ssub.s32 %s10, %s17
    %p19 = scmp.eq.s32.totalorder %s18, 0
    %s21 = sadd.s32 %s20, 1
    %s22 = scalar_select %p19, %s20, %s21
    %p25 = pneg %p19
    %p26 = scmp.eq.s32.totalorder %s10, 1
    %p27 = por %p25, %p26
    %p28 = scmp.ne.s32.totalorder %s20, %s23
    %p29 = scmp.eq.s32.totalorder %s10, 0
    %p30 = por %p28, %p29
    %p31 = scmp.ne.s32.totalorder %s20, %s23
    %p32 = scmp.eq.s32.totalorder %s15, 1
    %p33 = por %p31, %p32
    %p34 = scmp.ne.s32.totalorder %s23, %s24
    %p35 = scmp.eq.s32.totalorder %s15, 0
    %p36 = por %p34, %p35
    %p37 = scmp.ne.s32.totalorder %s23, %s24
    %p38 = scmp.eq.s32.totalorder %s16, 1
    %p39 = por %p37, %p38
    %p41 = scmp.ne.s32.totalorder %s24, %s40
    %p42 = scmp.eq.s32.totalorder %s16, 0
    %p43 = por %p41, %p42
    %s45 = sadd.s32 %s44, 1
    %p48 = scmp.eq.s32.totalorder %s10, 1
    %p49 = scmp.ne.s32.totalorder %s44, %s46
    %p50 = scmp.eq.s32.totalorder %s10, 0
    %p51 = por %p49, %p50
    %p52 = scmp.ne.s32.totalorder %s44, %s46
    %p53 = scmp.eq.s32.totalorder %s15, 1
    %p54 = por %p52, %p53
    %p55 = scmp.ne.s32.totalorder %s46, %s47
    %p56 = scmp.eq.s32.totalorder %s15, 0
    %p57 = por %p55, %p56
    %p58 = scmp.ne.s32.totalorder %s46, %s47
    %p59 = scmp.eq.s32.totalorder %s16, 1
    %p60 = por %p58, %p59
    %p62 = scmp.ne.s32.totalorder %s47, %s61
    %p63 = scmp.eq.s32.totalorder %s16, 0
    %p64 = por %p62, %p63
    %s65 = ssub.s32 %s10, %s17
    %p66 = scmp.eq.s32.totalorder %s65, 0
    %s68 = sadd.s32 %s67, 1
    %s69 = scalar_select %p66, %s67, %s68
    %p72 = pneg %p66
    %p73 = scmp.eq.s32.totalorder %s10, 1
    %p74 = por %p72, %p73
    %p75 = scmp.ne.s32.totalorder %s67, %s70
    %p76 = scmp.eq.s32.totalorder %s10, 0
    %p77 = por %p75, %p76
    %p78 = scmp.ne.s32.totalorder %s67, %s70
    %p79 = scmp.eq.s32.totalorder %s15, 1
    %p80 = por %p78, %p79
    %p81 = scmp.ne.s32.totalorder %s70, %s71
    %p82 = scmp.eq.s32.totalorder %s15, 0
    %p83 = por %p81, %p82
    %p84 = scmp.ne.s32.totalorder %s70, %s71
    %p85 = scmp.eq.s32.totalorder %s16, 1
    %p86 = por %p84, %p85
    %p88 = scmp.ne.s32.totalorder %s71, %s87
    %p89 = scmp.eq.s32.totalorder %s16, 0
    %p90 = por %p88, %p89
    %s91 = ssub.s32 %s10, %s17
    %p92 = scmp.eq.s32.totalorder %s91, 0
    %s94 = sadd.s32 %s93, 1
    %s95 = scalar_select %p92, %s93, %s94
    %p98 = pneg %p92
    %p99 = scmp.eq.s32.totalorder %s10, 1
    %p100 = por %p98, %p99
    %p101 = scmp.ne.s32.totalorder %s93, %s96
    %p102 = scmp.eq.s32.totalorder %s10, 0
    %p103 = por %p101, %p102
    %p104 = scmp.ne.s32.totalorder %s93, %s96
    %p105 = scmp.eq.s32.totalorder %s15, 1
    %p106 = por %p104, %p105
    %p107 = scmp.ne.s32.totalorder %s96, %s97
    %p108 = scmp.eq.s32.totalorder %s15, 0
    %p109 = por %p107, %p108
    %p110 = scmp.ne.s32.totalorder %s96, %s97
    %p111 = scmp.eq.s32.totalorder %s16, 1
    %p112 = por %p110, %p111
    %p114 = scmp.ne.s32.totalorder %s97, %s113
    %p115 = scmp.eq.s32.totalorder %s16, 0
    %p116 = por %p114, %p115
    %p117 = scmp.le.s32.totalorder 1, %s10
    %p118 = scmp.lt.s32.totalorder %s10, 3
    %p119 = pnand %p117, %p118
    %p120 = pneg %p119
    // Predicated region
    $region9: #{basic_block_forward.3} parent=5 // pred_check
      _
    $region10: #{basic_block_forward.3} parent=5 // pred_check_branch
      %122 = sbr.rel (%p119) target = $region12
    $region11: #{basic_block_forward.3} parent=5 // pred_region
      %s123 = ssub.s32 %s10, 1
      // Predicated region
      $region13: #{basic_block_forward.3} parent=11 // pred_check
        %p124 = pneg %p57
      $region14: #{basic_block_forward.3} parent=11 // pred_check_branch
        %126 = sbr.rel (%p124) target = $region16
      $region15: #{basic_block_forward.3} parent=11 // pred_region
        _
      $region16: #{basic_block_forward.3} parent=11 // pred_fallthru
        _
    $region12: #{basic_block_forward.3} parent=5 // pred_fallthru
      _
    %p127 = scmp.lt.s32.totalorder %s10, 2
    // Predicated region
    $region17: #{basic_block_forward.3} parent=5 // pred_check
      %p128 = pneg %p127
    $region18: #{basic_block_forward.3} parent=5 // pred_check_branch
      %130 = sbr.rel (%p128) target = $region20
    $region19: #{basic_block_forward.3} parent=5 // pred_region
      // Predicated region
      $region21: #{basic_block_forward.3} parent=19 // pred_check
        %p131 = pneg %p30
      $region22: #{basic_block_forward.3} parent=19 // pred_check_branch
        %133 = sbr.rel (%p131) target = $region24
      $region23: #{basic_block_forward.3} parent=19 // pred_region
        %p134 = scmp.lt.s32.totalorder %s10, 1
        %s135 = scalar_select %p134, %s10, 1
        %s136 = smul.addr %s135, 32
        %s137 = smul.addr %s136, 8
        %s138 = scalar_lea.vmem %s0, %s137
      $region24: #{basic_block_forward.3} parent=19 // pred_fallthru
        _
    $region20: #{basic_block_forward.3} parent=5 // pred_fallthru
      _
    %p139 = scmp.le.s32.totalorder 1, %s10
    %p140 = scmp.lt.s32.totalorder %s10, 3
    %p141 = pnand %p139, %p140
    %p142 = pneg %p141
    // Predicated region
    $region25: #{basic_block_forward.3} parent=5 // pred_check
      _
    $region26: #{basic_block_forward.3} parent=5 // pred_check_branch
      %144 = sbr.rel (%p141) target = $region28
    $region27: #{basic_block_forward.3} parent=5 // pred_region
      %s145 = ssub.s32 %s10, 1
      %p146 = scmp.lt.s32.totalorder %s15, 1
      %s147 = scalar_select %p146, %s15, 1
      %s148 = smul.addr %s147, 32
      %s149 = smul.addr %s148, 8
      %s150 = scalar_lea.vmem %s0, %s149
      %p151 = pneg %p36
      %p152 = pneg %p33
      %p153 = pneg %p57
      %p154 = pneg %p54
      %p155 = pneg %p83
      %p156 = pneg %p80
      %p157 = scmp.lt.s32.totalorder %s15, 1
      %s158 = scalar_select %p157, %s15, 1
      %s159 = smul.addr %s158, 32
      %s160 = smul.addr %s159, 8
      %s161 = scalar_lea.vmem %s2, %s160
      %p162 = pneg %p109
      %p163 = pneg %p106
      %p164 = scmp.lt.s32.totalorder %s15, 1
      %s165 = scalar_select %p164, %s15, 1
      %s166 = smul.addr %s165, 2
      %s167 = scalar_lea.vmem %s3, %s166
      %p168 = scmp.lt.s32.totalorder %s15, 1
      %s169 = scalar_select %p168, %s15, 1
      %s170 = smul.addr %s169, 32
      %s171 = smul.addr %s170, 8
      %s172 = scalar_lea.vmem %s0, %s171
      %p173 = scmp.lt.s32.totalorder %s15, 1
      %s174 = scalar_select %p173, %s15, 1
      %s175 = smul.addr %s174, 32
      %s176 = smul.addr %s175, 8
      %s177 = scalar_lea.vmem %s2, %s176
      %p178 = scmp.lt.s32.totalorder %s15, 1
      %s179 = scalar_select %p178, %s15, 1
      %s180 = smul.addr %s179, 2
      %s181 = scalar_lea.vmem %s3, %s180
      %v182 = vld [vmem:[%s172] sm:$0xff]
      %v183 = vld [vmem:[%s172 + $0x8] sm:$0xff]
      %v184 = vld [vmem:[%s172 + $0x10] sm:$0xff]
      %v185 = vld [vmem:[%s172 + $0x18] sm:$0xff]
      %v186 = vld [vmem:[%s172 + $0x20] sm:$0xff]
      %v187 = vld [vmem:[%s172 + $0x28] sm:$0xff]
      %v188 = vld [vmem:[%s172 + $0x30] sm:$0xff]
      %v189 = vld [vmem:[%s172 + $0x38] sm:$0xff]
      %v190 = vld [vmem:[%s172 + $0x40] sm:$0xff]
      %v191 = vld [vmem:[%s172 + $0x48] sm:$0xff]
      %v192 = vld [vmem:[%s172 + $0x50] sm:$0xff]
      %v193 = vld [vmem:[%s172 + $0x58] sm:$0xff]
      %v194 = vld [vmem:[%s172 + $0x60] sm:$0xff]
      %v195 = vld [vmem:[%s172 + $0x68] sm:$0xff]
      %v196 = vld [vmem:[%s172 + $0x70] sm:$0xff]
      %v197 = vld [vmem:[%s172 + $0x78] sm:$0xff]
      %v198 = vld [vmem:[%s172 + $0x80] sm:$0xff]
      %v199 = vld [vmem:[%s172 + $0x88] sm:$0xff]
      %v200 = vld [vmem:[%s172 + $0x90] sm:$0xff]
      %v201 = vld [vmem:[%s172 + $0x98] sm:$0xff]
      %v202 = vld [vmem:[%s172 + $0xa0] sm:$0xff]
      %v203 = vld [vmem:[%s172 + $0xa8] sm:$0xff]
      %v204 = vld [vmem:[%s172 + $0xb0] sm:$0xff]
      %v205 = vld [vmem:[%s172 + $0xb8] sm:$0xff]
      %v206 = vld [vmem:[%s172 + $0xc0] sm:$0xff]
      %v207 = vld [vmem:[%s172 + $0xc8] sm:$0xff]
      %v208 = vld [vmem:[%s172 + $0xd0] sm:$0xff]
      %v209 = vld [vmem:[%s172 + $0xd8] sm:$0xff]
      %v210 = vld [vmem:[%s172 + $0xe0] sm:$0xff]
      %v211 = vld [vmem:[%s172 + $0xe8] sm:$0xff]
      %v212 = vld [vmem:[%s172 + $0xf0] sm:$0xff]
      %v213 = vld [vmem:[%s172 + $0xf8] sm:$0xff]
      %vm214 = vcmask 97280
      %215 = vst.msk [vmem:[#allocation2] sm:$0xff] %vm214, 0.0
      %216 = vst.msk [vmem:[#allocation2 + $0x8] sm:$0xff] %vm214, 0.0
      %s217 = scalar_lea.vmem [#allocation2], 272
      %218 = vst.msk [vmem:[%s217] sm:$0xff] %vm214, 0.0
      %219 = vst.msk [vmem:[%s217 + $0x8] sm:$0xff] %vm214, 0.0
      %vm220 = vcmask 24576
      %221 = vst.msk [vmem:[#allocation2] sm:$0x1] %vm220, 0.0
      %222 = vst.msk [vmem:[#allocation2 + $0x10] sm:$0x1] %vm220, 0.0
      %223 = vst.msk [vmem:[#allocation2 + $0x20] sm:$0x1] %vm220, 0.0
      %224 = vst.msk [vmem:[#allocation2 + $0x30] sm:$0x1] %vm220, 0.0
      %225 = vst.msk [vmem:[#allocation2 + $0x40] sm:$0x1] %vm220, 0.0
      %226 = vst.msk [vmem:[#allocation2 + $0x50] sm:$0x1] %vm220, 0.0
      %227 = vst.msk [vmem:[#allocation2 + $0x60] sm:$0x1] %vm220, 0.0
      %228 = vst.msk [vmem:[#allocation2 + $0x70] sm:$0x1] %vm220, 0.0
      %229 = vst.msk [vmem:[#allocation2 + $0x80] sm:$0x1] %vm220, 0.0
      %230 = vst.msk [vmem:[#allocation2 + $0x90] sm:$0x1] %vm220, 0.0
      %231 = vst.msk [vmem:[#allocation2 + $0xa0] sm:$0x1] %vm220, 0.0
      %232 = vst.msk [vmem:[#allocation2 + $0xb0] sm:$0x1] %vm220, 0.0
      %233 = vst.msk [vmem:[#allocation2 + $0xc0] sm:$0x1] %vm220, 0.0
      %234 = vst.msk [vmem:[#allocation2 + $0xd0] sm:$0x1] %vm220, 0.0
      %235 = vst.msk [vmem:[#allocation2 + $0xe0] sm:$0x1] %vm220, 0.0
      %236 = vst.msk [vmem:[#allocation2 + $0xf0] sm:$0x1] %vm220, 0.0
      %237 = vst.msk [vmem:[#allocation2 + $0x100] sm:$0x1] %vm220, 0.0
      %238 = vst.msk [vmem:[#allocation2 + $0x110] sm:$0x1] %vm220, 0.0
      %vm239 = vcmask 90176
      %240 = vst.msk [vmem:[#allocation2 + $0xf] sm:$0x1] %vm239, 0.0
      %241 = vst.msk [vmem:[#allocation2 + $0x1f] sm:$0x1] %vm239, 0.0
      %242 = vst.msk [vmem:[#allocation2 + $0x2f] sm:$0x1] %vm239, 0.0
      %243 = vst.msk [vmem:[#allocation2 + $0x3f] sm:$0x1] %vm239, 0.0
      %244 = vst.msk [vmem:[#allocation2 + $0x4f] sm:$0x1] %vm239, 0.0
      %245 = vst.msk [vmem:[#allocation2 + $0x5f] sm:$0x1] %vm239, 0.0
      %246 = vst.msk [vmem:[#allocation2 + $0x6f] sm:$0x1] %vm239, 0.0
      %247 = vst.msk [vmem:[#allocation2 + $0x7f] sm:$0x1] %vm239, 0.0
      %248 = vst.msk [vmem:[#allocation2 + $0x8f] sm:$0x1] %vm239, 0.0
      %249 = vst.msk [vmem:[#allocation2 + $0x9f] sm:$0x1] %vm239, 0.0
      %250 = vst.msk [vmem:[#allocation2 + $0xaf] sm:$0x1] %vm239, 0.0
      %251 = vst.msk [vmem:[#allocation2 + $0xbf] sm:$0x1] %vm239, 0.0
      %252 = vst.msk [vmem:[#allocation2 + $0xcf] sm:$0x1] %vm239, 0.0
      %253 = vst.msk [vmem:[#allocation2 + $0xdf] sm:$0x1] %vm239, 0.0
      %254 = vst.msk [vmem:[#allocation2 + $0xef] sm:$0x1] %vm239, 0.0
      %255 = vst.msk [vmem:[#allocation2 + $0xff] sm:$0x1] %vm239, 0.0
      %256 = vst.msk [vmem:[#allocation2 + $0x10f] sm:$0x1] %vm239, 0.0
      %257 = vst.msk [vmem:[#allocation2 + $0x11f] sm:$0x1] %vm239, 0.0
      %s258 = scalar_lea.vmem [#allocation2], 16
      %vm259 = vcmask 31744
      %260 = vst.msk [vmem:[%s258 + $0x1] sm:$0xff] %vm259, %v182
      %vm261 = vcmask 30720
      %262 = vst.msk [vmem:[%s258 + $0x9] sm:$0x7f] %vm261, %v183
      %263 = vst.msk [vmem:[%s258 + $0x11] sm:$0xff] %vm259, %v184
      %264 = vst.msk [vmem:[%s258 + $0x19] sm:$0x7f] %vm261, %v185
      %265 = vst.msk [vmem:[%s258 + $0x21] sm:$0xff] %vm259, %v186
      %266 = vst.msk [vmem:[%s258 + $0x29] sm:$0x7f] %vm261, %v187
      %267 = vst.msk [vmem:[%s258 + $0x31] sm:$0xff] %vm259, %v188
      %268 = vst.msk [vmem:[%s258 + $0x39] sm:$0x7f] %vm261, %v189
      %269 = vst.msk [vmem:[%s258 + $0x41] sm:$0xff] %vm259, %v190
      %270 = vst.msk [vmem:[%s258 + $0x49] sm:$0x7f] %vm261, %v191
      %271 = vst.msk [vmem:[%s258 + $0x51] sm:$0xff] %vm259, %v192
      %272 = vst.msk [vmem:[%s258 + $0x59] sm:$0x7f] %vm261, %v193
      %273 = vst.msk [vmem:[%s258 + $0x61] sm:$0xff] %vm259, %v194
      %274 = vst.msk [vmem:[%s258 + $0x69] sm:$0x7f] %vm261, %v195
      %275 = vst.msk [vmem:[%s258 + $0x71] sm:$0xff] %vm259, %v196
      %276 = vst.msk [vmem:[%s258 + $0x79] sm:$0x7f] %vm261, %v197
      %277 = vst.msk [vmem:[%s258 + $0x81] sm:$0xff] %vm259, %v198
      %278 = vst.msk [vmem:[%s258 + $0x89] sm:$0x7f] %vm261, %v199
      %279 = vst.msk [vmem:[%s258 + $0x91] sm:$0xff] %vm259, %v200
      %280 = vst.msk [vmem:[%s258 + $0x99] sm:$0x7f] %vm261, %v201
      %281 = vst.msk [vmem:[%s258 + $0xa1] sm:$0xff] %vm259, %v202
      %282 = vst.msk [vmem:[%s258 + $0xa9] sm:$0x7f] %vm261, %v203
      %283 = vst.msk [vmem:[%s258 + $0xb1] sm:$0xff] %vm259, %v204
      %284 = vst.msk [vmem:[%s258 + $0xb9] sm:$0x7f] %vm261, %v205
      %285 = vst.msk [vmem:[%s258 + $0xc1] sm:$0xff] %vm259, %v206
      %286 = vst.msk [vmem:[%s258 + $0xc9] sm:$0x7f] %vm261, %v207
      %287 = vst.msk [vmem:[%s258 + $0xd1] sm:$0xff] %vm259, %v208
      %288 = vst.msk [vmem:[%s258 + $0xd9] sm:$0x7f] %vm261, %v209
      %289 = vst.msk [vmem:[%s258 + $0xe1] sm:$0xff] %vm259, %v210
      %290 = vst.msk [vmem:[%s258 + $0xe9] sm:$0x7f] %vm261, %v211
      %291 = vst.msk [vmem:[%s258 + $0xf1] sm:$0xff] %vm259, %v212
      %292 = vst.msk [vmem:[%s258 + $0xf9] sm:$0x7f] %vm261, %v213
      %325 = vrot.lane.b32.xlu0 %v182, 4
      %v326 = vpop.permute.xlu0 %325
      %327 = vrot.lane.b32.xlu0 %v183, 4
      %v328 = vpop.permute.xlu0 %327
      %329 = vrot.lane.b32.xlu0 %v184, 4
      %v330 = vpop.permute.xlu0 %329
      %331 = vrot.lane.b32.xlu0 %v185, 4
      %v332 = vpop.permute.xlu0 %331
      %333 = vrot.lane.b32.xlu0 %v186, 4
      %v334 = vpop.permute.xlu0 %333
      %335 = vrot.lane.b32.xlu0 %v187, 4
      %v336 = vpop.permute.xlu0 %335
      %337 = vrot.lane.b32.xlu0 %v188, 4
      %v338 = vpop.permute.xlu0 %337
      %339 = vrot.lane.b32.xlu0 %v189, 4
      %v340 = vpop.permute.xlu0 %339
      %341 = vrot.lane.b32.xlu0 %v190, 4
      %v342 = vpop.permute.xlu0 %341
      %343 = vrot.lane.b32.xlu0 %v191, 4
      %v344 = vpop.permute.xlu0 %343
      %345 = vrot.lane.b32.xlu0 %v192, 4
      %v346 = vpop.permute.xlu0 %345
      %347 = vrot.lane.b32.xlu0 %v193, 4
      %v348 = vpop.permute.xlu0 %347
      %349 = vrot.lane.b32.xlu0 %v194, 4
      %v350 = vpop.permute.xlu0 %349
      %351 = vrot.lane.b32.xlu0 %v195, 4
      %v352 = vpop.permute.xlu0 %351
      %353 = vrot.lane.b32.xlu0 %v196, 4
      %v354 = vpop.permute.xlu0 %353
      %355 = vrot.lane.b32.xlu0 %v197, 4
      %v356 = vpop.permute.xlu0 %355
      %357 = vrot.lane.b32.xlu0 %v198, 4
      %v358 = vpop.permute.xlu0 %357
      %359 = vrot.lane.b32.xlu0 %v199, 4
      %v360 = vpop.permute.xlu0 %359
      %361 = vrot.lane.b32.xlu0 %v200, 4
      %v362 = vpop.permute.xlu0 %361
      %363 = vrot.lane.b32.xlu0 %v201, 4
      %v364 = vpop.permute.xlu0 %363
      %365 = vrot.lane.b32.xlu0 %v202, 4
      %v366 = vpop.permute.xlu0 %365
      %367 = vrot.lane.b32.xlu0 %v203, 4
      %v368 = vpop.permute.xlu0 %367
      %369 = vrot.lane.b32.xlu0 %v204, 4
      %v370 = vpop.permute.xlu0 %369
      %371 = vrot.lane.b32.xlu0 %v205, 4
      %v372 = vpop.permute.xlu0 %371
      %373 = vrot.lane.b32.xlu0 %v206, 4
      %v374 = vpop.permute.xlu0 %373
      %375 = vrot.lane.b32.xlu0 %v207, 4
      %v376 = vpop.permute.xlu0 %375
      %377 = vrot.lane.b32.xlu0 %v208, 4
      %v378 = vpop.permute.xlu0 %377
      %379 = vrot.lane.b32.xlu0 %v209, 4
      %v380 = vpop.permute.xlu0 %379
      %381 = vrot.lane.b32.xlu0 %v210, 4
      %v382 = vpop.permute.xlu0 %381
      %383 = vrot.lane.b32.xlu0 %v211, 4
      %v384 = vpop.permute.xlu0 %383
      %385 = vrot.lane.b32.xlu0 %v212, 4
      %v386 = vpop.permute.xlu0 %385
      %387 = vrot.lane.b32.xlu0 %v213, 4
      %v388 = vpop.permute.xlu0 %387
      %vm421 = vcmask 64544
      %422 = vst.msk [vmem:[%s258] sm:$0xff] %vm421, %v326
      %423 = vst.msk [vmem:[%s258 + $0x8] sm:$0xff] %vm421, %v328
      %424 = vst.msk [vmem:[%s258 + $0x10] sm:$0xff] %vm421, %v330
      %425 = vst.msk [vmem:[%s258 + $0x18] sm:$0xff] %vm421, %v332
      %426 = vst.msk [vmem:[%s258 + $0x20] sm:$0xff] %vm421, %v334
      %427 = vst.msk [vmem:[%s258 + $0x28] sm:$0xff] %vm421, %v336
      %428 = vst.msk [vmem:[%s258 + $0x30] sm:$0xff] %vm421, %v338
      %429 = vst.msk [vmem:[%s258 + $0x38] sm:$0xff] %vm421, %v340
      %430 = vst.msk [vmem:[%s258 + $0x40] sm:$0xff] %vm421, %v342
      %431 = vst.msk [vmem:[%s258 + $0x48] sm:$0xff] %vm421, %v344
      %432 = vst.msk [vmem:[%s258 + $0x50] sm:$0xff] %vm421, %v346
      %433 = vst.msk [vmem:[%s258 + $0x58] sm:$0xff] %vm421, %v348
      %434 = vst.msk [vmem:[%s258 + $0x60] sm:$0xff] %vm421, %v350
      %435 = vst.msk [vmem:[%s258 + $0x68] sm:$0xff] %vm421, %v352
      %436 = vst.msk [vmem:[%s258 + $0x70] sm:$0xff] %vm421, %v354
      %437 = vst.msk [vmem:[%s258 + $0x78] sm:$0xff] %vm421, %v356
      %438 = vst.msk [vmem:[%s258 + $0x80] sm:$0xff] %vm421, %v358
      %439 = vst.msk [vmem:[%s258 + $0x88] sm:$0xff] %vm421, %v360
      %440 = vst.msk [vmem:[%s258 + $0x90] sm:$0xff] %vm421, %v362
      %441 = vst.msk [vmem:[%s258 + $0x98] sm:$0xff] %vm421, %v364
      %442 = vst.msk [vmem:[%s258 + $0xa0] sm:$0xff] %vm421, %v366
      %443 = vst.msk [vmem:[%s258 + $0xa8] sm:$0xff] %vm421, %v368
      %444 = vst.msk [vmem:[%s258 + $0xb0] sm:$0xff] %vm421, %v370
      %445 = vst.msk [vmem:[%s258 + $0xb8] sm:$0xff] %vm421, %v372
      %446 = vst.msk [vmem:[%s258 + $0xc0] sm:$0xff] %vm421, %v374
      %447 = vst.msk [vmem:[%s258 + $0xc8] sm:$0xff] %vm421, %v376
      %448 = vst.msk [vmem:[%s258 + $0xd0] sm:$0xff] %vm421, %v378
      %449 = vst.msk [vmem:[%s258 + $0xd8] sm:$0xff] %vm421, %v380
      %450 = vst.msk [vmem:[%s258 + $0xe0] sm:$0xff] %vm421, %v382
      %451 = vst.msk [vmem:[%s258 + $0xe8] sm:$0xff] %vm421, %v384
      %452 = vst.msk [vmem:[%s258 + $0xf0] sm:$0xff] %vm421, %v386
      %453 = vst.msk [vmem:[%s258 + $0xf8] sm:$0xff] %vm421, %v388
      %454 = vrot.lane.b32.xlu0 %v182, 8
      %v455 = vpop.permute.xlu0 %454
      %456 = vrot.lane.b32.xlu0 %v183, 8
      %v457 = vpop.permute.xlu0 %456
      %458 = vrot.lane.b32.xlu0 %v184, 8
      %v459 = vpop.permute.xlu0 %458
      %460 = vrot.lane.b32.xlu0 %v185, 8
      %v461 = vpop.permute.xlu0 %460
      %462 = vrot.lane.b32.xlu0 %v186, 8
      %v463 = vpop.permute.xlu0 %462
      %464 = vrot.lane.b32.xlu0 %v187, 8
      %v465 = vpop.permute.xlu0 %464
      %466 = vrot.lane.b32.xlu0 %v188, 8
      %v467 = vpop.permute.xlu0 %466
      %468 = vrot.lane.b32.xlu0 %v189, 8
      %v469 = vpop.permute.xlu0 %468
      %470 = vrot.lane.b32.xlu0 %v190, 8
      %v471 = vpop.permute.xlu0 %470
      %472 = vrot.lane.b32.xlu0 %v191, 8
      %v473 = vpop.permute.xlu0 %472
      %474 = vrot.lane.b32.xlu0 %v192, 8
      %v475 = vpop.permute.xlu0 %474
      %476 = vrot.lane.b32.xlu0 %v193, 8
      %v477 = vpop.permute.xlu0 %476
      %478 = vrot.lane.b32.xlu0 %v194, 8
      %v479 = vpop.permute.xlu0 %478
      %480 = vrot.lane.b32.xlu0 %v195, 8
      %v481 = vpop.permute.xlu0 %480
      %482 = vrot.lane.b32.xlu0 %v196, 8
      %v483 = vpop.permute.xlu0 %482
      %484 = vrot.lane.b32.xlu0 %v197, 8
      %v485 = vpop.permute.xlu0 %484
      %486 = vrot.lane.b32.xlu0 %v198, 8
      %v487 = vpop.permute.xlu0 %486
      %488 = vrot.lane.b32.xlu0 %v199, 8
      %v489 = vpop.permute.xlu0 %488
      %490 = vrot.lane.b32.xlu0 %v200, 8
      %v491 = vpop.permute.xlu0 %490
      %492 = vrot.lane.b32.xlu0 %v201, 8
      %v493 = vpop.permute.xlu0 %492
      %494 = vrot.lane.b32.xlu0 %v202, 8
      %v495 = vpop.permute.xlu0 %494
      %496 = vrot.lane.b32.xlu0 %v203, 8
      %v497 = vpop.permute.xlu0 %496
      %498 = vrot.lane.b32.xlu0 %v204, 8
      %v499 = vpop.permute.xlu0 %498
      %500 = vrot.lane.b32.xlu0 %v205, 8
      %v501 = vpop.permute.xlu0 %500
      %502 = vrot.lane.b32.xlu0 %v206, 8
      %v503 = vpop.permute.xlu0 %502
      %504 = vrot.lane.b32.xlu0 %v207, 8
      %v505 = vpop.permute.xlu0 %504
      %506 = vrot.lane.b32.xlu0 %v208, 8
      %v507 = vpop.permute.xlu0 %506
      %508 = vrot.lane.b32.xlu0 %v209, 8
      %v509 = vpop.permute.xlu0 %508
      %510 = vrot.lane.b32.xlu0 %v210, 8
      %v511 = vpop.permute.xlu0 %510
      %512 = vrot.lane.b32.xlu0 %v211, 8
      %v513 = vpop.permute.xlu0 %512
      %514 = vrot.lane.b32.xlu0 %v212, 8
      %v515 = vpop.permute.xlu0 %514
      %516 = vrot.lane.b32.xlu0 %v213, 8
      %v517 = vpop.permute.xlu0 %516
      %vm550 = vcmask 97345
      %551 = vst.msk [vmem:[%s258 - $0x1] sm:$0xfe] %vm550, %v455
      %vm552 = vcmask 97344
      %553 = vst.msk [vmem:[%s258 + $0x7] sm:$0xff] %vm552, %v457
      %554 = vst.msk [vmem:[%s258 + $0xf] sm:$0xfe] %vm550, %v459
      %555 = vst.msk [vmem:[%s258 + $0x17] sm:$0xff] %vm552, %v461
      %556 = vst.msk [vmem:[%s258 + $0x1f] sm:$0xfe] %vm550, %v463
      %557 = vst.msk [vmem:[%s258 + $0x27] sm:$0xff] %vm552, %v465
      %558 = vst.msk [vmem:[%s258 + $0x2f] sm:$0xfe] %vm550, %v467
      %559 = vst.msk [vmem:[%s258 + $0x37] sm:$0xff] %vm552, %v469
      %560 = vst.msk [vmem:[%s258 + $0x3f] sm:$0xfe] %vm550, %v471
      %561 = vst.msk [vmem:[%s258 + $0x47] sm:$0xff] %vm552, %v473
      %562 = vst.msk [vmem:[%s258 + $0x4f] sm:$0xfe] %vm550, %v475
      %563 = vst.msk [vmem:[%s258 + $0x57] sm:$0xff] %vm552, %v477
      %564 = vst.msk [vmem:[%s258 + $0x5f] sm:$0xfe] %vm550, %v479
      %565 = vst.msk [vmem:[%s258 + $0x67] sm:$0xff] %vm552, %v481
      %566 = vst.msk [vmem:[%s258 + $0x6f] sm:$0xfe] %vm550, %v483
      %567 = vst.msk [vmem:[%s258 + $0x77] sm:$0xff] %vm552, %v485
      %568 = vst.msk [vmem:[%s258 + $0x7f] sm:$0xfe] %vm550, %v487
      %569 = vst.msk [vmem:[%s258 + $0x87] sm:$0xff] %vm552, %v489
      %570 = vst.msk [vmem:[%s258 + $0x8f] sm:$0xfe] %vm550, %v491
      %571 = vst.msk [vmem:[%s258 + $0x97] sm:$0xff] %vm552, %v493
      %572 = vst.msk [vmem:[%s258 + $0x9f] sm:$0xfe] %vm550, %v495
      %573 = vst.msk [vmem:[%s258 + $0xa7] sm:$0xff] %vm552, %v497
      %574 = vst.msk [vmem:[%s258 + $0xaf] sm:$0xfe] %vm550, %v499
      %575 = vst.msk [vmem:[%s258 + $0xb7] sm:$0xff] %vm552, %v501
      %576 = vst.msk [vmem:[%s258 + $0xbf] sm:$0xfe] %vm550, %v503
      %577 = vst.msk [vmem:[%s258 + $0xc7] sm:$0xff] %vm552, %v505
      %578 = vst.msk [vmem:[%s258 + $0xcf] sm:$0xfe] %vm550, %v507
      %579 = vst.msk [vmem:[%s258 + $0xd7] sm:$0xff] %vm552, %v509
      %580 = vst.msk [vmem:[%s258 + $0xdf] sm:$0xfe] %vm550, %v511
      %581 = vst.msk [vmem:[%s258 + $0xe7] sm:$0xff] %vm552, %v513
      %582 = vst.msk [vmem:[%s258 + $0xef] sm:$0xfe] %vm550, %v515
      %583 = vst.msk [vmem:[%s258 + $0xf7] sm:$0xff] %vm552, %v517
      %v584 = vld [vmem:[#allocation2] sm:$0xff]
      %v585 = vld [vmem:[#allocation2 + $0x8] sm:$0xff]
      %v586 = vld [vmem:[#allocation2 + $0x10] sm:$0xff]
      %v587 = vld [vmem:[#allocation2 + $0x18] sm:$0xff]
      %v588 = vld [vmem:[#allocation2 + $0x20] sm:$0xff]
      %v589 = vld [vmem:[#allocation2 + $0x28] sm:$0xff]
      %v590 = vld [vmem:[#allocation2 + $0x30] sm:$0xff]
      %v591 = vld [vmem:[#allocation2 + $0x38] sm:$0xff]
      %v592 = vld [vmem:[#allocation2 + $0x40] sm:$0xff]
      %v593 = vld [vmem:[#allocation2 + $0x48] sm:$0xff]
      %v594 = vld [vmem:[#allocation2 + $0x50] sm:$0xff]
      %v595 = vld [vmem:[#allocation2 + $0x58] sm:$0xff]
      %v596 = vld [vmem:[#allocation2 + $0x60] sm:$0xff]
      %v597 = vld [vmem:[#allocation2 + $0x68] sm:$0xff]
      %v598 = vld [vmem:[#allocation2 + $0x70] sm:$0xff]
      %v599 = vld [vmem:[#allocation2 + $0x78] sm:$0xff]
      %v600 = vld [vmem:[#allocation2 + $0x80] sm:$0xff]
      %v601 = vld [vmem:[#allocation2 + $0x88] sm:$0xff]
      %v602 = vld [vmem:[#allocation2 + $0x90] sm:$0xff]
      %v603 = vld [vmem:[#allocation2 + $0x98] sm:$0xff]
      %v604 = vld [vmem:[#allocation2 + $0xa0] sm:$0xff]
      %v605 = vld [vmem:[#allocation2 + $0xa8] sm:$0xff]
      %v606 = vld [vmem:[#allocation2 + $0xb0] sm:$0xff]
      %v607 = vld [vmem:[#allocation2 + $0xb8] sm:$0xff]
      %v608 = vld [vmem:[#allocation2 + $0xc0] sm:$0xff]
      %v609 = vld [vmem:[#allocation2 + $0xc8] sm:$0xff]
      %v610 = vld [vmem:[#allocation2 + $0xd0] sm:$0xff]
      %v611 = vld [vmem:[#allocation2 + $0xd8] sm:$0xff]
      %v612 = vld [vmem:[#allocation2 + $0xe0] sm:$0xff]
      %v613 = vld [vmem:[#allocation2 + $0xe8] sm:$0xff]
      %v614 = vld [vmem:[#allocation2 + $0xf0] sm:$0xff]
      %v615 = vld [vmem:[#allocation2 + $0xf8] sm:$0xff]
      %v616 = vld [vmem:[%s1] sm:$0xff]
      %v617 = vld [vmem:[%s1 + $0x8] sm:$0xf]
      %v618 = vld [vmem:[%s258] sm:$0xff]
      %v619 = vld [vmem:[%s258 + $0x8] sm:$0xff]
      %v620 = vld [vmem:[%s258 + $0x10] sm:$0xff]
      %v621 = vld [vmem:[%s258 + $0x18] sm:$0xff]
      %v622 = vld [vmem:[%s258 + $0x20] sm:$0xff]
      %v623 = vld [vmem:[%s258 + $0x28] sm:$0xff]
      %v624 = vld [vmem:[%s258 + $0x30] sm:$0xff]
      %v625 = vld [vmem:[%s258 + $0x38] sm:$0xff]
      %v626 = vld [vmem:[%s258 + $0x40] sm:$0xff]
      %v627 = vld [vmem:[%s258 + $0x48] sm:$0xff]
      %v628 = vld [vmem:[%s258 + $0x50] sm:$0xff]
      %v629 = vld [vmem:[%s258 + $0x58] sm:$0xff]
      %v630 = vld [vmem:[%s258 + $0x60] sm:$0xff]
      %v631 = vld [vmem:[%s258 + $0x68] sm:$0xff]
      %v632 = vld [vmem:[%s258 + $0x70] sm:$0xff]
      %v633 = vld [vmem:[%s258 + $0x78] sm:$0xff]
      %v634 = vld [vmem:[%s258 + $0x80] sm:$0xff]
      %v635 = vld [vmem:[%s258 + $0x88] sm:$0xff]
      %v636 = vld [vmem:[%s258 + $0x90] sm:$0xff]
      %v637 = vld [vmem:[%s258 + $0x98] sm:$0xff]
      %v638 = vld [vmem:[%s258 + $0xa0] sm:$0xff]
      %v639 = vld [vmem:[%s258 + $0xa8] sm:$0xff]
      %v640 = vld [vmem:[%s258 + $0xb0] sm:$0xff]
      %v641 = vld [vmem:[%s258 + $0xb8] sm:$0xff]
      %v642 = vld [vmem:[%s258 + $0xc0] sm:$0xff]
      %v643 = vld [vmem:[%s258 + $0xc8] sm:$0xff]
      %v644 = vld [vmem:[%s258 + $0xd0] sm:$0xff]
      %v645 = vld [vmem:[%s258 + $0xd8] sm:$0xff]
      %v646 = vld [vmem:[%s258 + $0xe0] sm:$0xff]
      %v647 = vld [vmem:[%s258 + $0xe8] sm:$0xff]
      %v648 = vld [vmem:[%s258 + $0xf0] sm:$0xff]
      %v649 = vld [vmem:[%s258 + $0xf8] sm:$0xff]
      %s650 = scalar_lea.vmem %s1, 16
      %v651 = vld [vmem:[%s650] sm:$0xff]
      %v652 = vld [vmem:[%s650 + $0x8] sm:$0xf]
      %v654 = vsel %vm214, %v618, 0
      %v657 = vsel %vm214, %v619, 0
      %v660 = vsel %vm214, %v620, 0
      %v663 = vsel %vm214, %v621, 0
      %v666 = vsel %vm214, %v622, 0
      %v669 = vsel %vm214, %v623, 0
      %v672 = vsel %vm214, %v624, 0
      %v675 = vsel %vm214, %v625, 0
      %v678 = vsel %vm214, %v626, 0
      %v681 = vsel %vm214, %v627, 0
      %v684 = vsel %vm214, %v628, 0
      %v687 = vsel %vm214, %v629, 0
      %v690 = vsel %vm214, %v630, 0
      %v693 = vsel %vm214, %v631, 0
      %v696 = vsel %vm214, %v632, 0
      %v699 = vsel %vm214, %v633, 0
      %v702 = vsel %vm214, %v634, 0
      %v705 = vsel %vm214, %v635, 0
      %v708 = vsel %vm214, %v636, 0
      %v711 = vsel %vm214, %v637, 0
      %v714 = vsel %vm214, %v638, 0
      %v717 = vsel %vm214, %v639, 0
      %v720 = vsel %vm214, %v640, 0
      %v723 = vsel %vm214, %v641, 0
      %v726 = vsel %vm214, %v642, 0
      %v729 = vsel %vm214, %v643, 0
      %v732 = vsel %vm214, %v644, 0
      %v735 = vsel %vm214, %v645, 0
      %v738 = vsel %vm214, %v646, 0
      %v741 = vsel %vm214, %v647, 0
      %v744 = vsel %vm214, %v648, 0
      %v747 = vsel %vm214, %v649, 0
      %vm749 = vcmask 1043456
      %v751 = vsel %vm749, %v652, 0
      %753 = vmatprep.subr.mxu0 0.0
      %754 = vmatpush1.msra.mxu0 0.0
      %755 = vmatprep.subr.mxu0 0.0
      %756 = vmatpush1.msra.mxu0 0.0
      %757 = vmatprep.subr.mxu0 0.0
      %758 = vmatpush1.msra.mxu0 0.0
      %759 = vmatprep.subr.mxu0 0.0
      %760 = vmatpush1.msra.mxu0 0.0
      %761 = vmatprep.subr.mxu0 0.0
      %762 = vmatpush1.msra.mxu0 0.0
      %763 = vmatprep.subr.mxu0 0.0
      %764 = vmatpush1.msra.mxu0 0.0
      %765 = vmatprep.subr.mxu0 0.0
      %766 = vmatpush1.msra.mxu0 0.0
      %767 = vmatprep.subr.mxu0 0.0
      %768 = vmatpush1.msra.mxu0 0.0
      %769 = vmatprep.subr.mxu0 0.0
      %770 = vmatpush1.msra.mxu0 0.0
      %771 = vmatprep.subr.mxu0 0.0
      %772 = vmatpush1.msra.mxu0 0.0
      %773 = vmatprep.subr.mxu0 0.0
      %774 = vmatpush1.msra.mxu0 0.0
      %775 = vmatprep.subr.mxu0 0.0
      %776 = vmatpush1.msra.mxu0 0.0
      %777 = vmatprep.subr.mxu0 0.0
      %778 = vmatpush1.msra.mxu0 0.0
      %779 = vmatprep.subr.mxu0 0.0
      %780 = vmatpush1.msra.mxu0 0.0
      %781 = vmatprep.subr.mxu0 0.0
      %782 = vmatpush1.msra.mxu0 %v751
      %783 = vmatprep.subr.mxu0 0.0
      %784 = vmatpush1.msra.mxu0 %v651
      %785 = vmatprep.subr.mxu0 0.0
      %786 = vmatpush2.msra.mxu0 0.0
      %787 = vmatprep.subr.mxu0 0.0
      %788 = vmatpush2.msra.mxu0 0.0
      %789 = vmatprep.subr.mxu0 0.0
      %790 = vmatpush2.msra.mxu0 0.0
      %791 = vmatprep.subr.mxu0 0.0
      %792 = vmatpush2.msra.mxu0 0.0
      %793 = vmatprep.subr.mxu0 0.0
      %794 = vmatpush2.msra.mxu0 0.0
      %795 = vmatprep.subr.mxu0 0.0
      %796 = vmatpush2.msra.mxu0 0.0
      %797 = vmatprep.subr.mxu0 0.0
      %798 = vmatpush2.msra.mxu0 0.0
      %799 = vmatprep.subr.mxu0 0.0
      %800 = vmatpush2.msra.mxu0 0.0
      %801 = vmatprep.subr.mxu0 0.0
      %802 = vmatpush2.msra.mxu0 0.0
      %803 = vmatprep.subr.mxu0 0.0
      %804 = vmatpush2.msra.mxu0 0.0
      %805 = vmatprep.subr.mxu0 0.0
      %806 = vmatpush2.msra.mxu0 0.0
      %807 = vmatprep.subr.mxu0 0.0
      %808 = vmatpush2.msra.mxu0 0.0
      %809 = vmatprep.subr.mxu0 0.0
      %810 = vmatpush2.msra.mxu0 0.0
      %811 = vmatprep.subr.mxu0 0.0
      %812 = vmatpush2.msra.mxu0 0.0
      %813 = vmatprep.subr.mxu0 0.0
      %814 = vmatpush2.msra.mxu0 0.0
      %815 = vmatprep.subr.mxu0 0.0
      %816 = vmatpush2.msra.mxu0 0.0
      %817 = vmatprep.mubr.f32.mxu0 0.0
      %818 = vmatmul.mubr.f32.gmra.mxu0 %v654
      %v819 = vpop.f32.mrf.mxu0
      %v820 = vadd.f32 0.0, %v819
      %v821 = vpop.f32.mrf.mxu0
      %822 = vmatprep.mubr.f32.mxu0 0.0
      %823 = vmatmul.mubr.f32.gmra.mxu0 %v657
      %v824 = vpop.f32.mrf.mxu0
      %v825 = vadd.f32 0.0, %v824
      %v826 = vpop.f32.mrf.mxu0
      %827 = vmatprep.mubr.f32.mxu0 0.0
      %828 = vmatmul.mubr.f32.gmra.mxu0 %v660
      %v829 = vpop.f32.mrf.mxu0
      %v830 = vadd.f32 0.0, %v829
      %v831 = vpop.f32.mrf.mxu0
      %832 = vmatprep.mubr.f32.mxu0 0.0
      %833 = vmatmul.mubr.f32.gmra.mxu0 %v663
      %v834 = vpop.f32.mrf.mxu0
      %v835 = vadd.f32 0.0, %v834
      %v836 = vpop.f32.mrf.mxu0
      %837 = vmatprep.mubr.f32.mxu0 0.0
      %838 = vmatmul.mubr.f32.gmra.mxu0 %v666
      %v839 = vpop.f32.mrf.mxu0
      %v840 = vadd.f32 0.0, %v839
      %v841 = vpop.f32.mrf.mxu0
      %842 = vmatprep.mubr.f32.mxu0 0.0
      %843 = vmatmul.mubr.f32.gmra.mxu0 %v669
      %v844 = vpop.f32.mrf.mxu0
      %v845 = vadd.f32 0.0, %v844
      %v846 = vpop.f32.mrf.mxu0
      %847 = vmatprep.mubr.f32.mxu0 0.0
      %848 = vmatmul.mubr.f32.gmra.mxu0 %v672
      %v849 = vpop.f32.mrf.mxu0
      %v850 = vadd.f32 0.0, %v849
      %v851 = vpop.f32.mrf.mxu0
      %852 = vmatprep.mubr.f32.mxu0 0.0
      %853 = vmatmul.mubr.f32.gmra.mxu0 %v675
      %v854 = vpop.f32.mrf.mxu0
      %v855 = vadd.f32 0.0, %v854
      %v856 = vpop.f32.mrf.mxu0
      %857 = vmatprep.mubr.f32.mxu0 0.0
      %858 = vmatmul.mubr.f32.gmra.mxu0 %v678
      %v859 = vpop.f32.mrf.mxu0
      %v860 = vadd.f32 0.0, %v859
      %v861 = vpop.f32.mrf.mxu0
      %862 = vmatprep.mubr.f32.mxu0 0.0
      %863 = vmatmul.mubr.f32.gmra.mxu0 %v681
      %v864 = vpop.f32.mrf.mxu0
      %v865 = vadd.f32 0.0, %v864
      %v866 = vpop.f32.mrf.mxu0
      %867 = vmatprep.mubr.f32.mxu0 0.0
      %868 = vmatmul.mubr.f32.gmra.mxu0 %v684
      %v869 = vpop.f32.mrf.mxu0
      %v870 = vadd.f32 0.0, %v869
      %v871 = vpop.f32.mrf.mxu0
      %872 = vmatprep.mubr.f32.mxu0 0.0
      %873 = vmatmul.mubr.f32.gmra.mxu0 %v687
      %v874 = vpop.f32.mrf.mxu0
      %v875 = vadd.f32 0.0, %v874
      %v876 = vpop.f32.mrf.mxu0
      %877 = vmatprep.mubr.f32.mxu0 0.0
      %878 = vmatmul.mubr.f32.gmra.mxu0 %v690
      %v879 = vpop.f32.mrf.mxu0
      %v880 = vadd.f32 0.0, %v879
      %v881 = vpop.f32.mrf.mxu0
      %882 = vmatprep.mubr.f32.mxu0 0.0
      %883 = vmatmul.mubr.f32.gmra.mxu0 %v693
      %v884 = vpop.f32.mrf.mxu0
      %v885 = vadd.f32 0.0, %v884
      %v886 = vpop.f32.mrf.mxu0
      %887 = vmatprep.mubr.f32.mxu0 0.0
      %888 = vmatmul.mubr.f32.gmra.mxu0 %v696
      %v889 = vpop.f32.mrf.mxu0
      %v890 = vadd.f32 0.0, %v889
      %v891 = vpop.f32.mrf.mxu0
      %892 = vmatprep.mubr.f32.mxu0 0.0
      %893 = vmatmul.mubr.f32.gmra.mxu0 %v699
      %v894 = vpop.f32.mrf.mxu0
      %v895 = vadd.f32 0.0, %v894
      %v896 = vpop.f32.mrf.mxu0
      %897 = vmatprep.mubr.f32.mxu0 0.0
      %898 = vmatmul.mubr.f32.gmra.mxu0 %v702
      %v899 = vpop.f32.mrf.mxu0
      %v900 = vadd.f32 0.0, %v899
      %v901 = vpop.f32.mrf.mxu0
      %902 = vmatprep.mubr.f32.mxu0 0.0
      %903 = vmatmul.mubr.f32.gmra.mxu0 %v705
      %v904 = vpop.f32.mrf.mxu0
      %v905 = vadd.f32 0.0, %v904
      %v906 = vpop.f32.mrf.mxu0
      %907 = vmatprep.mubr.f32.mxu0 0.0
      %908 = vmatmul.mubr.f32.gmra.mxu0 %v708
      %v909 = vpop.f32.mrf.mxu0
      %v910 = vadd.f32 0.0, %v909
      %v911 = vpop.f32.mrf.mxu0
      %912 = vmatprep.mubr.f32.mxu0 0.0
      %913 = vmatmul.mubr.f32.gmra.mxu0 %v711
      %v914 = vpop.f32.mrf.mxu0
      %v915 = vadd.f32 0.0, %v914
      %v916 = vpop.f32.mrf.mxu0
      %917 = vmatprep.mubr.f32.mxu0 0.0
      %918 = vmatmul.mubr.f32.gmra.mxu0 %v714
      %v919 = vpop.f32.mrf.mxu0
      %v920 = vadd.f32 0.0, %v919
      %v921 = vpop.f32.mrf.mxu0
      %922 = vmatprep.mubr.f32.mxu0 0.0
      %923 = vmatmul.mubr.f32.gmra.mxu0 %v717
      %v924 = vpop.f32.mrf.mxu0
      %v925 = vadd.f32 0.0, %v924
      %v926 = vpop.f32.mrf.mxu0
      %927 = vmatprep.mubr.f32.mxu0 0.0
      %928 = vmatmul.mubr.f32.gmra.mxu0 %v720
      %v929 = vpop.f32.mrf.mxu0
      %v930 = vadd.f32 0.0, %v929
      %v931 = vpop.f32.mrf.mxu0
      %932 = vmatprep.mubr.f32.mxu0 0.0
      %933 = vmatmul.mubr.f32.gmra.mxu0 %v723
      %v934 = vpop.f32.mrf.mxu0
      %v935 = vadd.f32 0.0, %v934
      %v936 = vpop.f32.mrf.mxu0
      %937 = vmatprep.mubr.f32.mxu0 0.0
      %938 = vmatmul.mubr.f32.gmra.mxu0 %v726
      %v939 = vpop.f32.mrf.mxu0
      %v940 = vadd.f32 0.0, %v939
      %v941 = vpop.f32.mrf.mxu0
      %942 = vmatprep.mubr.f32.mxu0 0.0
      %943 = vmatmul.mubr.f32.gmra.mxu0 %v729
      %v944 = vpop.f32.mrf.mxu0
      %v945 = vadd.f32 0.0, %v944
      %v946 = vpop.f32.mrf.mxu0
      %947 = vmatprep.mubr.f32.mxu0 0.0
      %948 = vmatmul.mubr.f32.gmra.mxu0 %v732
      %v949 = vpop.f32.mrf.mxu0
      %v950 = vadd.f32 0.0, %v949
      %v951 = vpop.f32.mrf.mxu0
      %952 = vmatprep.mubr.f32.mxu0 0.0
      %953 = vmatmul.mubr.f32.gmra.mxu0 %v735
      %v954 = vpop.f32.mrf.mxu0
      %v955 = vadd.f32 0.0, %v954
      %v956 = vpop.f32.mrf.mxu0
      %957 = vmatprep.mubr.f32.mxu0 0.0
      %958 = vmatmul.mubr.f32.gmra.mxu0 %v738
      %v959 = vpop.f32.mrf.mxu0
      %v960 = vadd.f32 0.0, %v959
      %v961 = vpop.f32.mrf.mxu0
      %962 = vmatprep.mubr.f32.mxu0 0.0
      %963 = vmatmul.mubr.f32.gmra.mxu0 %v741
      %v964 = vpop.f32.mrf.mxu0
      %v965 = vadd.f32 0.0, %v964
      %v966 = vpop.f32.mrf.mxu0
      %967 = vmatprep.mubr.f32.mxu0 0.0
      %968 = vmatmul.mubr.f32.gmra.mxu0 %v744
      %v969 = vpop.f32.mrf.mxu0
      %v970 = vadd.f32 0.0, %v969
      %v971 = vpop.f32.mrf.mxu0
      %972 = vmatprep.mubr.f32.mxu0 0.0
      %973 = vmatmul.mubr.f32.gmra.mxu0 %v747
      %v974 = vpop.f32.mrf.mxu0
      %v975 = vadd.f32 0.0, %v974
      %v976 = vpop.f32.mrf.mxu0
      %977 = vdwg.mxu0
      %v979 = vsel %vm214, %v584, 0
      %v982 = vsel %vm214, %v585, 0
      %v985 = vsel %vm214, %v586, 0
      %v988 = vsel %vm214, %v587, 0
      %v991 = vsel %vm214, %v588, 0
      %v994 = vsel %vm214, %v589, 0
      %v997 = vsel %vm214, %v590, 0
      %v1000 = vsel %vm214, %v591, 0
      %v1003 = vsel %vm214, %v592, 0
      %v1006 = vsel %vm214, %v593, 0
      %v1009 = vsel %vm214, %v594, 0
      %v1012 = vsel %vm214, %v595, 0
      %v1015 = vsel %vm214, %v596, 0
      %v1018 = vsel %vm214, %v597, 0
      %v1021 = vsel %vm214, %v598, 0
      %v1024 = vsel %vm214, %v599, 0
      %v1027 = vsel %vm214, %v600, 0
      %v1030 = vsel %vm214, %v601, 0
      %v1033 = vsel %vm214, %v602, 0
      %v1036 = vsel %vm214, %v603, 0
      %v1039 = vsel %vm214, %v604, 0
      %v1042 = vsel %vm214, %v605, 0
      %v1045 = vsel %vm214, %v606, 0
      %v1048 = vsel %vm214, %v607, 0
      %v1051 = vsel %vm214, %v608, 0
      %v1054 = vsel %vm214, %v609, 0
      %v1057 = vsel %vm214, %v610, 0
      %v1060 = vsel %vm214, %v611, 0
      %v1063 = vsel %vm214, %v612, 0
      %v1066 = vsel %vm214, %v613, 0
      %v1069 = vsel %vm214, %v614, 0
      %v1072 = vsel %vm214, %v615, 0
      %v1075 = vsel %vm749, %v617, 0
      %1077 = vmatprep.subr.mxu0 0.0
      %1078 = vmatpush1.msra.mxu0 0.0
      %1079 = vmatprep.subr.mxu0 0.0
      %1080 = vmatpush1.msra.mxu0 0.0
      %1081 = vmatprep.subr.mxu0 0.0
      %1082 = vmatpush1.msra.mxu0 0.0
      %1083 = vmatprep.subr.mxu0 0.0
      %1084 = vmatpush1.msra.mxu0 0.0
      %1085 = vmatprep.subr.mxu0 0.0
      %1086 = vmatpush1.msra.mxu0 0.0
      %1087 = vmatprep.subr.mxu0 0.0
      %1088 = vmatpush1.msra.mxu0 0.0
      %1089 = vmatprep.subr.mxu0 0.0
      %1090 = vmatpush1.msra.mxu0 0.0
      %1091 = vmatprep.subr.mxu0 0.0
      %1092 = vmatpush1.msra.mxu0 0.0
      %1093 = vmatprep.subr.mxu0 0.0
      %1094 = vmatpush1.msra.mxu0 0.0
      %1095 = vmatprep.subr.mxu0 0.0
      %1096 = vmatpush1.msra.mxu0 0.0
      %1097 = vmatprep.subr.mxu0 0.0
      %1098 = vmatpush1.msra.mxu0 0.0
      %1099 = vmatprep.subr.mxu0 0.0
      %1100 = vmatpush1.msra.mxu0 0.0
      %1101 = vmatprep.subr.mxu0 0.0
      %1102 = vmatpush1.msra.mxu0 0.0
      %1103 = vmatprep.subr.mxu0 0.0
      %1104 = vmatpush1.msra.mxu0 0.0
      %1105 = vmatprep.subr.mxu0 0.0
      %1106 = vmatpush1.msra.mxu0 %v1075
      %1107 = vmatprep.subr.mxu0 0.0
      %1108 = vmatpush1.msra.mxu0 %v616
      %1109 = vmatprep.subr.mxu0 0.0
      %1110 = vmatpush2.msra.mxu0 0.0
      %1111 = vmatprep.subr.mxu0 0.0
      %1112 = vmatpush2.msra.mxu0 0.0
      %1113 = vmatprep.subr.mxu0 0.0
      %1114 = vmatpush2.msra.mxu0 0.0
      %1115 = vmatprep.subr.mxu0 0.0
      %1116 = vmatpush2.msra.mxu0 0.0
      %1117 = vmatprep.subr.mxu0 0.0
      %1118 = vmatpush2.msra.mxu0 0.0
      %1119 = vmatprep.subr.mxu0 0.0
      %1120 = vmatpush2.msra.mxu0 0.0
      %1121 = vmatprep.subr.mxu0 0.0
      %1122 = vmatpush2.msra.mxu0 0.0
      %1123 = vmatprep.subr.mxu0 0.0
      %1124 = vmatpush2.msra.mxu0 0.0
      %1125 = vmatprep.subr.mxu0 0.0
      %1126 = vmatpush2.msra.mxu0 0.0
      %1127 = vmatprep.subr.mxu0 0.0
      %1128 = vmatpush2.msra.mxu0 0.0
      %1129 = vmatprep.subr.mxu0 0.0
      %1130 = vmatpush2.msra.mxu0 0.0
      %1131 = vmatprep.subr.mxu0 0.0
      %1132 = vmatpush2.msra.mxu0 0.0
      %1133 = vmatprep.subr.mxu0 0.0
      %1134 = vmatpush2.msra.mxu0 0.0
      %1135 = vmatprep.subr.mxu0 0.0
      %1136 = vmatpush2.msra.mxu0 0.0
      %1137 = vmatprep.subr.mxu0 0.0
      %1138 = vmatpush2.msra.mxu0 0.0
      %1139 = vmatprep.subr.mxu0 0.0
      %1140 = vmatpush2.msra.mxu0 0.0
      %1141 = vmatprep.mubr.f32.mxu0 0.0
      %1142 = vmatmul.mubr.f32.gmra.mxu0 %v979
      %v1143 = vpop.f32.mrf.mxu0
      %v1144 = vadd.f32 %v820, %v1143
      %v1145 = vpop.f32.mrf.mxu0
      %1146 = vmatprep.mubr.f32.mxu0 0.0
      %1147 = vmatmul.mubr.f32.gmra.mxu0 %v982
      %v1148 = vpop.f32.mrf.mxu0
      %v1149 = vadd.f32 %v825, %v1148
      %v1150 = vpop.f32.mrf.mxu0
      %1151 = vmatprep.mubr.f32.mxu0 0.0
      %1152 = vmatmul.mubr.f32.gmra.mxu0 %v985
      %v1153 = vpop.f32.mrf.mxu0
      %v1154 = vadd.f32 %v830, %v1153
      %v1155 = vpop.f32.mrf.mxu0
      %1156 = vmatprep.mubr.f32.mxu0 0.0
      %1157 = vmatmul.mubr.f32.gmra.mxu0 %v988
      %v1158 = vpop.f32.mrf.mxu0
      %v1159 = vadd.f32 %v835, %v1158
      %v1160 = vpop.f32.mrf.mxu0
      %1161 = vmatprep.mubr.f32.mxu0 0.0
      %1162 = vmatmul.mubr.f32.gmra.mxu0 %v991
      %v1163 = vpop.f32.mrf.mxu0
      %v1164 = vadd.f32 %v840, %v1163
      %v1165 = vpop.f32.mrf.mxu0
      %1166 = vmatprep.mubr.f32.mxu0 0.0
      %1167 = vmatmul.mubr.f32.gmra.mxu0 %v994
      %v1168 = vpop.f32.mrf.mxu0
      %v1169 = vadd.f32 %v845, %v1168
      %v1170 = vpop.f32.mrf.mxu0
      %1171 = vmatprep.mubr.f32.mxu0 0.0
      %1172 = vmatmul.mubr.f32.gmra.mxu0 %v997
      %v1173 = vpop.f32.mrf.mxu0
      %v1174 = vadd.f32 %v850, %v1173
      %v1175 = vpop.f32.mrf.mxu0
      %1176 = vmatprep.mubr.f32.mxu0 0.0
      %1177 = vmatmul.mubr.f32.gmra.mxu0 %v1000
      %v1178 = vpop.f32.mrf.mxu0
      %v1179 = vadd.f32 %v855, %v1178
      %v1180 = vpop.f32.mrf.mxu0
      %1181 = vmatprep.mubr.f32.mxu0 0.0
      %1182 = vmatmul.mubr.f32.gmra.mxu0 %v1003
      %v1183 = vpop.f32.mrf.mxu0
      %v1184 = vadd.f32 %v860, %v1183
      %v1185 = vpop.f32.mrf.mxu0
      %1186 = vmatprep.mubr.f32.mxu0 0.0
      %1187 = vmatmul.mubr.f32.gmra.mxu0 %v1006
      %v1188 = vpop.f32.mrf.mxu0
      %v1189 = vadd.f32 %v865, %v1188
      %v1190 = vpop.f32.mrf.mxu0
      %1191 = vmatprep.mubr.f32.mxu0 0.0
      %1192 = vmatmul.mubr.f32.gmra.mxu0 %v1009
      %v1193 = vpop.f32.mrf.mxu0
      %v1194 = vadd.f32 %v870, %v1193
      %v1195 = vpop.f32.mrf.mxu0
      %1196 = vmatprep.mubr.f32.mxu0 0.0
      %1197 = vmatmul.mubr.f32.gmra.mxu0 %v1012
      %v1198 = vpop.f32.mrf.mxu0
      %v1199 = vadd.f32 %v875, %v1198
      %v1200 = vpop.f32.mrf.mxu0
      %1201 = vmatprep.mubr.f32.mxu0 0.0
      %1202 = vmatmul.mubr.f32.gmra.mxu0 %v1015
      %v1203 = vpop.f32.mrf.mxu0
      %v1204 = vadd.f32 %v880, %v1203
      %v1205 = vpop.f32.mrf.mxu0
      %1206 = vmatprep.mubr.f32.mxu0 0.0
      %1207 = vmatmul.mubr.f32.gmra.mxu0 %v1018
      %v1208 = vpop.f32.mrf.mxu0
      %v1209 = vadd.f32 %v885, %v1208
      %v1210 = vpop.f32.mrf.mxu0
      %1211 = vmatprep.mubr.f32.mxu0 0.0
      %1212 = vmatmul.mubr.f32.gmra.mxu0 %v1021
      %v1213 = vpop.f32.mrf.mxu0
      %v1214 = vadd.f32 %v890, %v1213
      %v1215 = vpop.f32.mrf.mxu0
      %1216 = vmatprep.mubr.f32.mxu0 0.0
      %1217 = vmatmul.mubr.f32.gmra.mxu0 %v1024
      %v1218 = vpop.f32.mrf.mxu0
      %v1219 = vadd.f32 %v895, %v1218
      %v1220 = vpop.f32.mrf.mxu0
      %1221 = vmatprep.mubr.f32.mxu0 0.0
      %1222 = vmatmul.mubr.f32.gmra.mxu0 %v1027
      %v1223 = vpop.f32.mrf.mxu0
      %v1224 = vadd.f32 %v900, %v1223
      %v1225 = vpop.f32.mrf.mxu0
      %1226 = vmatprep.mubr.f32.mxu0 0.0
      %1227 = vmatmul.mubr.f32.gmra.mxu0 %v1030
      %v1228 = vpop.f32.mrf.mxu0
      %v1229 = vadd.f32 %v905, %v1228
      %v1230 = vpop.f32.mrf.mxu0
      %1231 = vmatprep.mubr.f32.mxu0 0.0
      %1232 = vmatmul.mubr.f32.gmra.mxu0 %v1033
      %v1233 = vpop.f32.mrf.mxu0
      %v1234 = vadd.f32 %v910, %v1233
      %v1235 = vpop.f32.mrf.mxu0
      %1236 = vmatprep.mubr.f32.mxu0 0.0
      %1237 = vmatmul.mubr.f32.gmra.mxu0 %v1036
      %v1238 = vpop.f32.mrf.mxu0
      %v1239 = vadd.f32 %v915, %v1238
      %v1240 = vpop.f32.mrf.mxu0
      %1241 = vmatprep.mubr.f32.mxu0 0.0
      %1242 = vmatmul.mubr.f32.gmra.mxu0 %v1039
      %v1243 = vpop.f32.mrf.mxu0
      %v1244 = vadd.f32 %v920, %v1243
      %v1245 = vpop.f32.mrf.mxu0
      %1246 = vmatprep.mubr.f32.mxu0 0.0
      %1247 = vmatmul.mubr.f32.gmra.mxu0 %v1042
      %v1248 = vpop.f32.mrf.mxu0
      %v1249 = vadd.f32 %v925, %v1248
      %v1250 = vpop.f32.mrf.mxu0
      %1251 = vmatprep.mubr.f32.mxu0 0.0
      %1252 = vmatmul.mubr.f32.gmra.mxu0 %v1045
      %v1253 = vpop.f32.mrf.mxu0
      %v1254 = vadd.f32 %v930, %v1253
      %v1255 = vpop.f32.mrf.mxu0
      %1256 = vmatprep.mubr.f32.mxu0 0.0
      %1257 = vmatmul.mubr.f32.gmra.mxu0 %v1048
      %v1258 = vpop.f32.mrf.mxu0
      %v1259 = vadd.f32 %v935, %v1258
      %v1260 = vpop.f32.mrf.mxu0
      %1261 = vmatprep.mubr.f32.mxu0 0.0
      %1262 = vmatmul.mubr.f32.gmra.mxu0 %v1051
      %v1263 = vpop.f32.mrf.mxu0
      %v1264 = vadd.f32 %v940, %v1263
      %v1265 = vpop.f32.mrf.mxu0
      %1266 = vmatprep.mubr.f32.mxu0 0.0
      %1267 = vmatmul.mubr.f32.gmra.mxu0 %v1054
      %v1268 = vpop.f32.mrf.mxu0
      %v1269 = vadd.f32 %v945, %v1268
      %v1270 = vpop.f32.mrf.mxu0
      %1271 = vmatprep.mubr.f32.mxu0 0.0
      %1272 = vmatmul.mubr.f32.gmra.mxu0 %v1057
      %v1273 = vpop.f32.mrf.mxu0
      %v1274 = vadd.f32 %v950, %v1273
      %v1275 = vpop.f32.mrf.mxu0
      %1276 = vmatprep.mubr.f32.mxu0 0.0
      %1277 = vmatmul.mubr.f32.gmra.mxu0 %v1060
      %v1278 = vpop.f32.mrf.mxu0
      %v1279 = vadd.f32 %v955, %v1278
      %v1280 = vpop.f32.mrf.mxu0
      %1281 = vmatprep.mubr.f32.mxu0 0.0
      %1282 = vmatmul.mubr.f32.gmra.mxu0 %v1063
      %v1283 = vpop.f32.mrf.mxu0
      %v1284 = vadd.f32 %v960, %v1283
      %v1285 = vpop.f32.mrf.mxu0
      %1286 = vmatprep.mubr.f32.mxu0 0.0
      %1287 = vmatmul.mubr.f32.gmra.mxu0 %v1066
      %v1288 = vpop.f32.mrf.mxu0
      %v1289 = vadd.f32 %v965, %v1288
      %v1290 = vpop.f32.mrf.mxu0
      %1291 = vmatprep.mubr.f32.mxu0 0.0
      %1292 = vmatmul.mubr.f32.gmra.mxu0 %v1069
      %v1293 = vpop.f32.mrf.mxu0
      %v1294 = vadd.f32 %v970, %v1293
      %v1295 = vpop.f32.mrf.mxu0
      %1296 = vmatprep.mubr.f32.mxu0 0.0
      %1297 = vmatmul.mubr.f32.gmra.mxu0 %v1072
      %v1298 = vpop.f32.mrf.mxu0
      %v1299 = vadd.f32 %v975, %v1298
      %v1300 = vpop.f32.mrf.mxu0
      %1301 = vdwg.mxu0
      %s1302 = scalar_lea.vmem [#allocation2], 32
      %v1303 = vld [vmem:[%s1302] sm:$0xff]
      %v1304 = vld [vmem:[%s1302 + $0x8] sm:$0xff]
      %v1305 = vld [vmem:[%s1302 + $0x10] sm:$0xff]
      %v1306 = vld [vmem:[%s1302 + $0x18] sm:$0xff]
      %v1307 = vld [vmem:[%s1302 + $0x20] sm:$0xff]
      %v1308 = vld [vmem:[%s1302 + $0x28] sm:$0xff]
      %v1309 = vld [vmem:[%s1302 + $0x30] sm:$0xff]
      %v1310 = vld [vmem:[%s1302 + $0x38] sm:$0xff]
      %v1311 = vld [vmem:[%s1302 + $0x40] sm:$0xff]
      %v1312 = vld [vmem:[%s1302 + $0x48] sm:$0xff]
      %v1313 = vld [vmem:[%s1302 + $0x50] sm:$0xff]
      %v1314 = vld [vmem:[%s1302 + $0x58] sm:$0xff]
      %v1315 = vld [vmem:[%s1302 + $0x60] sm:$0xff]
      %v1316 = vld [vmem:[%s1302 + $0x68] sm:$0xff]
      %v1317 = vld [vmem:[%s1302 + $0x70] sm:$0xff]
      %v1318 = vld [vmem:[%s1302 + $0x78] sm:$0xff]
      %v1319 = vld [vmem:[%s1302 + $0x80] sm:$0xff]
      %v1320 = vld [vmem:[%s1302 + $0x88] sm:$0xff]
      %v1321 = vld [vmem:[%s1302 + $0x90] sm:$0xff]
      %v1322 = vld [vmem:[%s1302 + $0x98] sm:$0xff]
      %v1323 = vld [vmem:[%s1302 + $0xa0] sm:$0xff]
      %v1324 = vld [vmem:[%s1302 + $0xa8] sm:$0xff]
      %v1325 = vld [vmem:[%s1302 + $0xb0] sm:$0xff]
      %v1326 = vld [vmem:[%s1302 + $0xb8] sm:$0xff]
      %v1327 = vld [vmem:[%s1302 + $0xc0] sm:$0xff]
      %v1328 = vld [vmem:[%s1302 + $0xc8] sm:$0xff]
      %v1329 = vld [vmem:[%s1302 + $0xd0] sm:$0xff]
      %v1330 = vld [vmem:[%s1302 + $0xd8] sm:$0xff]
      %v1331 = vld [vmem:[%s1302 + $0xe0] sm:$0xff]
      %v1332 = vld [vmem:[%s1302 + $0xe8] sm:$0xff]
      %v1333 = vld [vmem:[%s1302 + $0xf0] sm:$0xff]
      %v1334 = vld [vmem:[%s1302 + $0xf8] sm:$0xff]
      %s1335 = scalar_lea.vmem %s1, 32
      %v1336 = vld [vmem:[%s1335] sm:$0xff]
      %v1337 = vld [vmem:[%s1335 + $0x8] sm:$0xf]
      %v1339 = vsel %vm214, %v1303, 0
      %v1342 = vsel %vm214, %v1304, 0
      %v1345 = vsel %vm214, %v1305, 0
      %v1348 = vsel %vm214, %v1306, 0
      %v1351 = vsel %vm214, %v1307, 0
      %v1354 = vsel %vm214, %v1308, 0
      %v1357 = vsel %vm214, %v1309, 0
      %v1360 = vsel %vm214, %v1310, 0
      %v1363 = vsel %vm214, %v1311, 0
      %v1366 = vsel %vm214, %v1312, 0
      %v1369 = vsel %vm214, %v1313, 0
      %v1372 = vsel %vm214, %v1314, 0
      %v1375 = vsel %vm214, %v1315, 0
      %v1378 = vsel %vm214, %v1316, 0
      %v1381 = vsel %vm214, %v1317, 0
      %v1384 = vsel %vm214, %v1318, 0
      %v1387 = vsel %vm214, %v1319, 0
      %v1390 = vsel %vm214, %v1320, 0
      %v1393 = vsel %vm214, %v1321, 0
      %v1396 = vsel %vm214, %v1322, 0
      %v1399 = vsel %vm214, %v1323, 0
      %v1402 = vsel %vm214, %v1324, 0
      %v1405 = vsel %vm214, %v1325, 0
      %v1408 = vsel %vm214, %v1326, 0
      %v1411 = vsel %vm214, %v1327, 0
      %v1414 = vsel %vm214, %v1328, 0
      %v1417 = vsel %vm214, %v1329, 0
      %v1420 = vsel %vm214, %v1330, 0
      %v1423 = vsel %vm214, %v1331, 0
      %v1426 = vsel %vm214, %v1332, 0
      %v1429 = vsel %vm214, %v1333, 0
      %v1432 = vsel %vm214, %v1334, 0
      %v1435 = vsel %vm749, %v1337, 0
      %1437 = vmatprep.subr.mxu0 0.0
      %1438 = vmatpush1.msra.mxu0 0.0
      %1439 = vmatprep.subr.mxu0 0.0
      %1440 = vmatpush1.msra.mxu0 0.0
      %1441 = vmatprep.subr.mxu0 0.0
      %1442 = vmatpush1.msra.mxu0 0.0
      %1443 = vmatprep.subr.mxu0 0.0
      %1444 = vmatpush1.msra.mxu0 0.0
      %1445 = vmatprep.subr.mxu0 0.0
      %1446 = vmatpush1.msra.mxu0 0.0
      %1447 = vmatprep.subr.mxu0 0.0
      %1448 = vmatpush1.msra.mxu0 0.0
      %1449 = vmatprep.subr.mxu0 0.0
      %1450 = vmatpush1.msra.mxu0 0.0
      %1451 = vmatprep.subr.mxu0 0.0
      %1452 = vmatpush1.msra.mxu0 0.0
      %1453 = vmatprep.subr.mxu0 0.0
      %1454 = vmatpush1.msra.mxu0 0.0
      %1455 = vmatprep.subr.mxu0 0.0
      %1456 = vmatpush1.msra.mxu0 0.0
      %1457 = vmatprep.subr.mxu0 0.0
      %1458 = vmatpush1.msra.mxu0 0.0
      %1459 = vmatprep.subr.mxu0 0.0
      %1460 = vmatpush1.msra.mxu0 0.0
      %1461 = vmatprep.subr.mxu0 0.0
      %1462 = vmatpush1.msra.mxu0 0.0
      %1463 = vmatprep.subr.mxu0 0.0
      %1464 = vmatpush1.msra.mxu0 0.0
      %1465 = vmatprep.subr.mxu0 0.0
      %1466 = vmatpush1.msra.mxu0 %v1435
      %1467 = vmatprep.subr.mxu0 0.0
      %1468 = vmatpush1.msra.mxu0 %v1336
      %1469 = vmatprep.subr.mxu0 0.0
      %1470 = vmatpush2.msra.mxu0 0.0
      %1471 = vmatprep.subr.mxu0 0.0
      %1472 = vmatpush2.msra.mxu0 0.0
      %1473 = vmatprep.subr.mxu0 0.0
      %1474 = vmatpush2.msra.mxu0 0.0
      %1475 = vmatprep.subr.mxu0 0.0
      %1476 = vmatpush2.msra.mxu0 0.0
      %1477 = vmatprep.subr.mxu0 0.0
      %1478 = vmatpush2.msra.mxu0 0.0
      %1479 = vmatprep.subr.mxu0 0.0
      %1480 = vmatpush2.msra.mxu0 0.0
      %1481 = vmatprep.subr.mxu0 0.0
      %1482 = vmatpush2.msra.mxu0 0.0
      %1483 = vmatprep.subr.mxu0 0.0
      %1484 = vmatpush2.msra.mxu0 0.0
      %1485 = vmatprep.subr.mxu0 0.0
      %1486 = vmatpush2.msra.mxu0 0.0
      %1487 = vmatprep.subr.mxu0 0.0
      %1488 = vmatpush2.msra.mxu0 0.0
      %1489 = vmatprep.subr.mxu0 0.0
      %1490 = vmatpush2.msra.mxu0 0.0
      %1491 = vmatprep.subr.mxu0 0.0
      %1492 = vmatpush2.msra.mxu0 0.0
      %1493 = vmatprep.subr.mxu0 0.0
      %1494 = vmatpush2.msra.mxu0 0.0
      %1495 = vmatprep.subr.mxu0 0.0
      %1496 = vmatpush2.msra.mxu0 0.0
      %1497 = vmatprep.subr.mxu0 0.0
      %1498 = vmatpush2.msra.mxu0 0.0
      %1499 = vmatprep.subr.mxu0 0.0
      %1500 = vmatpush2.msra.mxu0 0.0
      %1501 = vmatprep.mubr.f32.mxu0 0.0
      %1502 = vmatmul.mubr.f32.gmra.mxu0 %v1339
      %v1503 = vpop.f32.mrf.mxu0
      %v1504 = vadd.f32 0.0, %v1503
      %v1505 = vpop.f32.mrf.mxu0
      %1506 = vmatprep.mubr.f32.mxu0 0.0
      %1507 = vmatmul.mubr.f32.gmra.mxu0 %v1342
      %v1508 = vpop.f32.mrf.mxu0
      %v1509 = vadd.f32 0.0, %v1508
      %v1510 = vpop.f32.mrf.mxu0
      %1511 = vmatprep.mubr.f32.mxu0 0.0
      %1512 = vmatmul.mubr.f32.gmra.mxu0 %v1345
      %v1513 = vpop.f32.mrf.mxu0
      %v1514 = vadd.f32 0.0, %v1513
      %v1515 = vpop.f32.mrf.mxu0
      %1516 = vmatprep.mubr.f32.mxu0 0.0
      %1517 = vmatmul.mubr.f32.gmra.mxu0 %v1348
      %v1518 = vpop.f32.mrf.mxu0
      %v1519 = vadd.f32 0.0, %v1518
      %v1520 = vpop.f32.mrf.mxu0
      %1521 = vmatprep.mubr.f32.mxu0 0.0
      %1522 = vmatmul.mubr.f32.gmra.mxu0 %v1351
      %v1523 = vpop.f32.mrf.mxu0
      %v1524 = vadd.f32 0.0, %v1523
      %v1525 = vpop.f32.mrf.mxu0
      %1526 = vmatprep.mubr.f32.mxu0 0.0
      %1527 = vmatmul.mubr.f32.gmra.mxu0 %v1354
      %v1528 = vpop.f32.mrf.mxu0
      %v1529 = vadd.f32 0.0, %v1528
      %v1530 = vpop.f32.mrf.mxu0
      %1531 = vmatprep.mubr.f32.mxu0 0.0
      %1532 = vmatmul.mubr.f32.gmra.mxu0 %v1357
      %v1533 = vpop.f32.mrf.mxu0
      %v1534 = vadd.f32 0.0, %v1533
      %v1535 = vpop.f32.mrf.mxu0
      %1536 = vmatprep.mubr.f32.mxu0 0.0
      %1537 = vmatmul.mubr.f32.gmra.mxu0 %v1360
      %v1538 = vpop.f32.mrf.mxu0
      %v1539 = vadd.f32 0.0, %v1538
      %v1540 = vpop.f32.mrf.mxu0
      %1541 = vmatprep.mubr.f32.mxu0 0.0
      %1542 = vmatmul.mubr.f32.gmra.mxu0 %v1363
      %v1543 = vpop.f32.mrf.mxu0
      %v1544 = vadd.f32 0.0, %v1543
      %v1545 = vpop.f32.mrf.mxu0
      %1546 = vmatprep.mubr.f32.mxu0 0.0
      %1547 = vmatmul.mubr.f32.gmra.mxu0 %v1366
      %v1548 = vpop.f32.mrf.mxu0
      %v1549 = vadd.f32 0.0, %v1548
      %v1550 = vpop.f32.mrf.mxu0
      %1551 = vmatprep.mubr.f32.mxu0 0.0
      %1552 = vmatmul.mubr.f32.gmra.mxu0 %v1369
      %v1553 = vpop.f32.mrf.mxu0
      %v1554 = vadd.f32 0.0, %v1553
      %v1555 = vpop.f32.mrf.mxu0
      %1556 = vmatprep.mubr.f32.mxu0 0.0
      %1557 = vmatmul.mubr.f32.gmra.mxu0 %v1372
      %v1558 = vpop.f32.mrf.mxu0
      %v1559 = vadd.f32 0.0, %v1558
      %v1560 = vpop.f32.mrf.mxu0
      %1561 = vmatprep.mubr.f32.mxu0 0.0
      %1562 = vmatmul.mubr.f32.gmra.mxu0 %v1375
      %v1563 = vpop.f32.mrf.mxu0
      %v1564 = vadd.f32 0.0, %v1563
      %v1565 = vpop.f32.mrf.mxu0
      %1566 = vmatprep.mubr.f32.mxu0 0.0
      %1567 = vmatmul.mubr.f32.gmra.mxu0 %v1378
      %v1568 = vpop.f32.mrf.mxu0
      %v1569 = vadd.f32 0.0, %v1568
      %v1570 = vpop.f32.mrf.mxu0
      %1571 = vmatprep.mubr.f32.mxu0 0.0
      %1572 = vmatmul.mubr.f32.gmra.mxu0 %v1381
      %v1573 = vpop.f32.mrf.mxu0
      %v1574 = vadd.f32 0.0, %v1573
      %v1575 = vpop.f32.mrf.mxu0
      %1576 = vmatprep.mubr.f32.mxu0 0.0
      %1577 = vmatmul.mubr.f32.gmra.mxu0 %v1384
      %v1578 = vpop.f32.mrf.mxu0
      %v1579 = vadd.f32 0.0, %v1578
      %v1580 = vpop.f32.mrf.mxu0
      %1581 = vmatprep.mubr.f32.mxu0 0.0
      %1582 = vmatmul.mubr.f32.gmra.mxu0 %v1387
      %v1583 = vpop.f32.mrf.mxu0
      %v1584 = vadd.f32 0.0, %v1583
      %v1585 = vpop.f32.mrf.mxu0
      %1586 = vmatprep.mubr.f32.mxu0 0.0
      %1587 = vmatmul.mubr.f32.gmra.mxu0 %v1390
      %v1588 = vpop.f32.mrf.mxu0
      %v1589 = vadd.f32 0.0, %v1588
      %v1590 = vpop.f32.mrf.mxu0
      %1591 = vmatprep.mubr.f32.mxu0 0.0
      %1592 = vmatmul.mubr.f32.gmra.mxu0 %v1393
      %v1593 = vpop.f32.mrf.mxu0
      %v1594 = vadd.f32 0.0, %v1593
      %v1595 = vpop.f32.mrf.mxu0
      %1596 = vmatprep.mubr.f32.mxu0 0.0
      %1597 = vmatmul.mubr.f32.gmra.mxu0 %v1396
      %v1598 = vpop.f32.mrf.mxu0
      %v1599 = vadd.f32 0.0, %v1598
      %v1600 = vpop.f32.mrf.mxu0
      %1601 = vmatprep.mubr.f32.mxu0 0.0
      %1602 = vmatmul.mubr.f32.gmra.mxu0 %v1399
      %v1603 = vpop.f32.mrf.mxu0
      %v1604 = vadd.f32 0.0, %v1603
      %v1605 = vpop.f32.mrf.mxu0
      %1606 = vmatprep.mubr.f32.mxu0 0.0
      %1607 = vmatmul.mubr.f32.gmra.mxu0 %v1402
      %v1608 = vpop.f32.mrf.mxu0
      %v1609 = vadd.f32 0.0, %v1608
      %v1610 = vpop.f32.mrf.mxu0
      %1611 = vmatprep.mubr.f32.mxu0 0.0
      %1612 = vmatmul.mubr.f32.gmra.mxu0 %v1405
      %v1613 = vpop.f32.mrf.mxu0
      %v1614 = vadd.f32 0.0, %v1613
      %v1615 = vpop.f32.mrf.mxu0
      %1616 = vmatprep.mubr.f32.mxu0 0.0
      %1617 = vmatmul.mubr.f32.gmra.mxu0 %v1408
      %v1618 = vpop.f32.mrf.mxu0
      %v1619 = vadd.f32 0.0, %v1618
      %v1620 = vpop.f32.mrf.mxu0
      %1621 = vmatprep.mubr.f32.mxu0 0.0
      %1622 = vmatmul.mubr.f32.gmra.mxu0 %v1411
      %v1623 = vpop.f32.mrf.mxu0
      %v1624 = vadd.f32 0.0, %v1623
      %v1625 = vpop.f32.mrf.mxu0
      %1626 = vmatprep.mubr.f32.mxu0 0.0
      %1627 = vmatmul.mubr.f32.gmra.mxu0 %v1414
      %v1628 = vpop.f32.mrf.mxu0
      %v1629 = vadd.f32 0.0, %v1628
      %v1630 = vpop.f32.mrf.mxu0
      %1631 = vmatprep.mubr.f32.mxu0 0.0
      %1632 = vmatmul.mubr.f32.gmra.mxu0 %v1417
      %v1633 = vpop.f32.mrf.mxu0
      %v1634 = vadd.f32 0.0, %v1633
      %v1635 = vpop.f32.mrf.mxu0
      %1636 = vmatprep.mubr.f32.mxu0 0.0
      %1637 = vmatmul.mubr.f32.gmra.mxu0 %v1420
      %v1638 = vpop.f32.mrf.mxu0
      %v1639 = vadd.f32 0.0, %v1638
      %v1640 = vpop.f32.mrf.mxu0
      %1641 = vmatprep.mubr.f32.mxu0 0.0
      %1642 = vmatmul.mubr.f32.gmra.mxu0 %v1423
      %v1643 = vpop.f32.mrf.mxu0
      %v1644 = vadd.f32 0.0, %v1643
      %v1645 = vpop.f32.mrf.mxu0
      %1646 = vmatprep.mubr.f32.mxu0 0.0
      %1647 = vmatmul.mubr.f32.gmra.mxu0 %v1426
      %v1648 = vpop.f32.mrf.mxu0
      %v1649 = vadd.f32 0.0, %v1648
      %v1650 = vpop.f32.mrf.mxu0
      %1651 = vmatprep.mubr.f32.mxu0 0.0
      %1652 = vmatmul.mubr.f32.gmra.mxu0 %v1429
      %v1653 = vpop.f32.mrf.mxu0
      %v1654 = vadd.f32 0.0, %v1653
      %v1655 = vpop.f32.mrf.mxu0
      %1656 = vmatprep.mubr.f32.mxu0 0.0
      %1657 = vmatmul.mubr.f32.gmra.mxu0 %v1432
      %v1658 = vpop.f32.mrf.mxu0
      %v1659 = vadd.f32 0.0, %v1658
      %v1660 = vpop.f32.mrf.mxu0
      %1661 = vdwg.mxu0
      %v1662 = vadd.f32 %v1144, %v1504
      %v1663 = vadd.f32 %v1149, %v1509
      %v1664 = vadd.f32 %v1154, %v1514
      %v1665 = vadd.f32 %v1159, %v1519
      %v1666 = vadd.f32 %v1164, %v1524
      %v1667 = vadd.f32 %v1169, %v1529
      %v1668 = vadd.f32 %v1174, %v1534
      %v1669 = vadd.f32 %v1179, %v1539
      %v1670 = vadd.f32 %v1184, %v1544
      %v1671 = vadd.f32 %v1189, %v1549
      %v1672 = vadd.f32 %v1194, %v1554
      %v1673 = vadd.f32 %v1199, %v1559
      %v1674 = vadd.f32 %v1204, %v1564
      %v1675 = vadd.f32 %v1209, %v1569
      %v1676 = vadd.f32 %v1214, %v1574
      %v1677 = vadd.f32 %v1219, %v1579
      %v1678 = vadd.f32 %v1224, %v1584
      %v1679 = vadd.f32 %v1229, %v1589
      %v1680 = vadd.f32 %v1234, %v1594
      %v1681 = vadd.f32 %v1239, %v1599
      %v1682 = vadd.f32 %v1244, %v1604
      %v1683 = vadd.f32 %v1249, %v1609
      %v1684 = vadd.f32 %v1254, %v1614
      %v1685 = vadd.f32 %v1259, %v1619
      %v1686 = vadd.f32 %v1264, %v1624
      %v1687 = vadd.f32 %v1269, %v1629
      %v1688 = vadd.f32 %v1274, %v1634
      %v1689 = vadd.f32 %v1279, %v1639
      %v1690 = vadd.f32 %v1284, %v1644
      %v1691 = vadd.f32 %v1289, %v1649
      %v1692 = vadd.f32 %v1294, %v1654
      %v1693 = vadd.f32 %v1299, %v1659
      %1694 = vst.msk [vmem:[%s177] sm:$0xff] %vm259, %v1662
      %1695 = vst.msk [vmem:[%s177 + $0x8] sm:$0xff] %vm259, %v1663
      %1696 = vst.msk [vmem:[%s177 + $0x10] sm:$0xff] %vm259, %v1664
      %1697 = vst.msk [vmem:[%s177 + $0x18] sm:$0xff] %vm259, %v1665
      %1698 = vst.msk [vmem:[%s177 + $0x20] sm:$0xff] %vm259, %v1666
      %1699 = vst.msk [vmem:[%s177 + $0x28] sm:$0xff] %vm259, %v1667
      %1700 = vst.msk [vmem:[%s177 + $0x30] sm:$0xff] %vm259, %v1668
      %1701 = vst.msk [vmem:[%s177 + $0x38] sm:$0xff] %vm259, %v1669
      %1702 = vst.msk [vmem:[%s177 + $0x40] sm:$0xff] %vm259, %v1670
      %1703 = vst.msk [vmem:[%s177 + $0x48] sm:$0xff] %vm259, %v1671
      %1704 = vst.msk [vmem:[%s177 + $0x50] sm:$0xff] %vm259, %v1672
      %1705 = vst.msk [vmem:[%s177 + $0x58] sm:$0xff] %vm259, %v1673
      %1706 = vst.msk [vmem:[%s177 + $0x60] sm:$0xff] %vm259, %v1674
      %1707 = vst.msk [vmem:[%s177 + $0x68] sm:$0xff] %vm259, %v1675
      %1708 = vst.msk [vmem:[%s177 + $0x70] sm:$0xff] %vm259, %v1676
      %1709 = vst.msk [vmem:[%s177 + $0x78] sm:$0xff] %vm259, %v1677
      %1710 = vst.msk [vmem:[%s177 + $0x80] sm:$0xff] %vm259, %v1678
      %1711 = vst.msk [vmem:[%s177 + $0x88] sm:$0xff] %vm259, %v1679
      %1712 = vst.msk [vmem:[%s177 + $0x90] sm:$0xff] %vm259, %v1680
      %1713 = vst.msk [vmem:[%s177 + $0x98] sm:$0xff] %vm259, %v1681
      %1714 = vst.msk [vmem:[%s177 + $0xa0] sm:$0xff] %vm259, %v1682
      %1715 = vst.msk [vmem:[%s177 + $0xa8] sm:$0xff] %vm259, %v1683
      %1716 = vst.msk [vmem:[%s177 + $0xb0] sm:$0xff] %vm259, %v1684
      %1717 = vst.msk [vmem:[%s177 + $0xb8] sm:$0xff] %vm259, %v1685
      %1718 = vst.msk [vmem:[%s177 + $0xc0] sm:$0xff] %vm259, %v1686
      %1719 = vst.msk [vmem:[%s177 + $0xc8] sm:$0xff] %vm259, %v1687
      %1720 = vst.msk [vmem:[%s177 + $0xd0] sm:$0xff] %vm259, %v1688
      %1721 = vst.msk [vmem:[%s177 + $0xd8] sm:$0xff] %vm259, %v1689
      %1722 = vst.msk [vmem:[%s177 + $0xe0] sm:$0xff] %vm259, %v1690
      %1723 = vst.msk [vmem:[%s177 + $0xe8] sm:$0xff] %vm259, %v1691
      %1724 = vst.msk [vmem:[%s177 + $0xf0] sm:$0xff] %vm259, %v1692
      %1725 = vst.msk [vmem:[%s177 + $0xf8] sm:$0xff] %vm259, %v1693
      %v1726 = vsel %vm259, %v1662, 0.0
      %v1727 = vsel %vm259, %v1663, 0.0
      %v1728 = vadd.f32 %v1726, %v1727
      %v1729 = vsel %vm259, %v1664, 0.0
      %v1730 = vadd.f32 %v1728, %v1729
      %v1731 = vsel %vm259, %v1665, 0.0
      %v1732 = vadd.f32 %v1730, %v1731
      %v1733 = vsel %vm259, %v1666, 0.0
      %v1734 = vadd.f32 %v1732, %v1733
      %v1735 = vsel %vm259, %v1667, 0.0
      %v1736 = vadd.f32 %v1734, %v1735
      %v1737 = vsel %vm259, %v1668, 0.0
      %v1738 = vadd.f32 %v1736, %v1737
      %v1739 = vsel %vm259, %v1669, 0.0
      %v1740 = vadd.f32 %v1738, %v1739
      %v1741 = vsel %vm259, %v1670, 0.0
      %v1742 = vadd.f32 %v1740, %v1741
      %v1743 = vsel %vm259, %v1671, 0.0
      %v1744 = vadd.f32 %v1742, %v1743
      %v1745 = vsel %vm259, %v1672, 0.0
      %v1746 = vadd.f32 %v1744, %v1745
      %v1747 = vsel %vm259, %v1673, 0.0
      %v1748 = vadd.f32 %v1746, %v1747
      %v1749 = vsel %vm259, %v1674, 0.0
      %v1750 = vadd.f32 %v1748, %v1749
      %v1751 = vsel %vm259, %v1675, 0.0
      %v1752 = vadd.f32 %v1750, %v1751
      %v1753 = vsel %vm259, %v1676, 0.0
      %v1754 = vadd.f32 %v1752, %v1753
      %v1755 = vsel %vm259, %v1677, 0.0
      %v1756 = vadd.f32 %v1754, %v1755
      %v1757 = vsel %vm259, %v1678, 0.0
      %v1758 = vadd.f32 %v1756, %v1757
      %v1759 = vsel %vm259, %v1679, 0.0
      %v1760 = vadd.f32 %v1758, %v1759
      %v1761 = vsel %vm259, %v1680, 0.0
      %v1762 = vadd.f32 %v1760, %v1761
      %v1763 = vsel %vm259, %v1681, 0.0
      %v1764 = vadd.f32 %v1762, %v1763
      %v1765 = vsel %vm259, %v1682, 0.0
      %v1766 = vadd.f32 %v1764, %v1765
      %v1767 = vsel %vm259, %v1683, 0.0
      %v1768 = vadd.f32 %v1766, %v1767
      %v1769 = vsel %vm259, %v1684, 0.0
      %v1770 = vadd.f32 %v1768, %v1769
      %v1771 = vsel %vm259, %v1685, 0.0
      %v1772 = vadd.f32 %v1770, %v1771
      %v1773 = vsel %vm259, %v1686, 0.0
      %v1774 = vadd.f32 %v1772, %v1773
      %v1775 = vsel %vm259, %v1687, 0.0
      %v1776 = vadd.f32 %v1774, %v1775
      %v1777 = vsel %vm259, %v1688, 0.0
      %v1778 = vadd.f32 %v1776, %v1777
      %v1779 = vsel %vm259, %v1689, 0.0
      %v1780 = vadd.f32 %v1778, %v1779
      %v1781 = vsel %vm259, %v1690, 0.0
      %v1782 = vadd.f32 %v1780, %v1781
      %v1783 = vsel %vm259, %v1691, 0.0
      %v1784 = vadd.f32 %v1782, %v1783
      %v1785 = vsel %vm259, %v1692, 0.0
      %v1786 = vadd.f32 %v1784, %v1785
      %v1787 = vsel %vm259, %v1693, 0.0
      %v1788 = vadd.f32 %v1786, %v1787
      %v1789 = vrot.slane %v1788, 4
      %v1790 = vadd.f32 %v1788, %v1789
      %v1791 = vrot.slane %v1790, 2
      %v1792 = vadd.f32 %v1790, %v1791
      %v1793 = vrot.slane %v1792, 1
      %v1794 = vadd.f32 %v1792, %v1793
      %1795 = vst.msk [vmem:[%s181] sm:$0x1] %vm220, %v1794
      %v1796 = vmul.f32 %v1662, %v1662
      %v1797 = vmul.f32 %v1663, %v1663
      %v1798 = vmul.f32 %v1664, %v1664
      %v1799 = vmul.f32 %v1665, %v1665
      %v1800 = vmul.f32 %v1666, %v1666
      %v1801 = vmul.f32 %v1667, %v1667
      %v1802 = vmul.f32 %v1668, %v1668
      %v1803 = vmul.f32 %v1669, %v1669
      %v1804 = vmul.f32 %v1670, %v1670
      %v1805 = vmul.f32 %v1671, %v1671
      %v1806 = vmul.f32 %v1672, %v1672
      %v1807 = vmul.f32 %v1673, %v1673
      %v1808 = vmul.f32 %v1674, %v1674
      %v1809 = vmul.f32 %v1675, %v1675
      %v1810 = vmul.f32 %v1676, %v1676
      %v1811 = vmul.f32 %v1677, %v1677
      %v1812 = vmul.f32 %v1678, %v1678
      %v1813 = vmul.f32 %v1679, %v1679
      %v1814 = vmul.f32 %v1680, %v1680
      %v1815 = vmul.f32 %v1681, %v1681
      %v1816 = vmul.f32 %v1682, %v1682
      %v1817 = vmul.f32 %v1683, %v1683
      %v1818 = vmul.f32 %v1684, %v1684
      %v1819 = vmul.f32 %v1685, %v1685
      %v1820 = vmul.f32 %v1686, %v1686
      %v1821 = vmul.f32 %v1687, %v1687
      %v1822 = vmul.f32 %v1688, %v1688
      %v1823 = vmul.f32 %v1689, %v1689
      %v1824 = vmul.f32 %v1690, %v1690
      %v1825 = vmul.f32 %v1691, %v1691
      %v1826 = vmul.f32 %v1692, %v1692
      %v1827 = vmul.f32 %v1693, %v1693
      %v1828 = vsel %vm259, %v1796, 0.0
      %v1829 = vsel %vm259, %v1797, 0.0
      %v1830 = vadd.f32 %v1828, %v1829
      %v1831 = vsel %vm259, %v1798, 0.0
      %v1832 = vadd.f32 %v1830, %v1831
      %v1833 = vsel %vm259, %v1799, 0.0
      %v1834 = vadd.f32 %v1832, %v1833
      %v1835 = vsel %vm259, %v1800, 0.0
      %v1836 = vadd.f32 %v1834, %v1835
      %v1837 = vsel %vm259, %v1801, 0.0
      %v1838 = vadd.f32 %v1836, %v1837
      %v1839 = vsel %vm259, %v1802, 0.0
      %v1840 = vadd.f32 %v1838, %v1839
      %v1841 = vsel %vm259, %v1803, 0.0
      %v1842 = vadd.f32 %v1840, %v1841
      %v1843 = vsel %vm259, %v1804, 0.0
      %v1844 = vadd.f32 %v1842, %v1843
      %v1845 = vsel %vm259, %v1805, 0.0
      %v1846 = vadd.f32 %v1844, %v1845
      %v1847 = vsel %vm259, %v1806, 0.0
      %v1848 = vadd.f32 %v1846, %v1847
      %v1849 = vsel %vm259, %v1807, 0.0
      %v1850 = vadd.f32 %v1848, %v1849
      %v1851 = vsel %vm259, %v1808, 0.0
      %v1852 = vadd.f32 %v1850, %v1851
      %v1853 = vsel %vm259, %v1809, 0.0
      %v1854 = vadd.f32 %v1852, %v1853
      %v1855 = vsel %vm259, %v1810, 0.0
      %v1856 = vadd.f32 %v1854, %v1855
      %v1857 = vsel %vm259, %v1811, 0.0
      %v1858 = vadd.f32 %v1856, %v1857
      %v1859 = vsel %vm259, %v1812, 0.0
      %v1860 = vadd.f32 %v1858, %v1859
      %v1861 = vsel %vm259, %v1813, 0.0
      %v1862 = vadd.f32 %v1860, %v1861
      %v1863 = vsel %vm259, %v1814, 0.0
      %v1864 = vadd.f32 %v1862, %v1863
      %v1865 = vsel %vm259, %v1815, 0.0
      %v1866 = vadd.f32 %v1864, %v1865
      %v1867 = vsel %vm259, %v1816, 0.0
      %v1868 = vadd.f32 %v1866, %v1867
      %v1869 = vsel %vm259, %v1817, 0.0
      %v1870 = vadd.f32 %v1868, %v1869
      %v1871 = vsel %vm259, %v1818, 0.0
      %v1872 = vadd.f32 %v1870, %v1871
      %v1873 = vsel %vm259, %v1819, 0.0
      %v1874 = vadd.f32 %v1872, %v1873
      %v1875 = vsel %vm259, %v1820, 0.0
      %v1876 = vadd.f32 %v1874, %v1875
      %v1877 = vsel %vm259, %v1821, 0.0
      %v1878 = vadd.f32 %v1876, %v1877
      %v1879 = vsel %vm259, %v1822, 0.0
      %v1880 = vadd.f32 %v1878, %v1879
      %v1881 = vsel %vm259, %v1823, 0.0
      %v1882 = vadd.f32 %v1880, %v1881
      %v1883 = vsel %vm259, %v1824, 0.0
      %v1884 = vadd.f32 %v1882, %v1883
      %v1885 = vsel %vm259, %v1825, 0.0
      %v1886 = vadd.f32 %v1884, %v1885
      %v1887 = vsel %vm259, %v1826, 0.0
      %v1888 = vadd.f32 %v1886, %v1887
      %v1889 = vsel %vm259, %v1827, 0.0
      %v1890 = vadd.f32 %v1888, %v1889
      %v1891 = vrot.slane %v1890, 4
      %v1892 = vadd.f32 %v1890, %v1891
      %v1893 = vrot.slane %v1892, 2
      %v1894 = vadd.f32 %v1892, %v1893
      %v1895 = vrot.slane %v1894, 1
      %v1896 = vadd.f32 %v1894, %v1895
      %1897 = vst.msk [vmem:[%s181 + $0x1] sm:$0x1] %vm220, %v1896
      %p1898 = scmp.lt.s32.totalorder %s15, 1
      %s1899 = scalar_select %p1898, %s15, 1
      %s1900 = smul.addr %s1899, 32
      %s1901 = smul.addr %s1900, 8
      %s1902 = scalar_lea.vmem %s2, %s1901
      %p1903 = scmp.lt.s32.totalorder %s15, 1
      %s1904 = scalar_select %p1903, %s15, 1
      %s1905 = smul.addr %s1904, 2
      %s1906 = scalar_lea.vmem %s3, %s1905
      // Predicated region
      $region29: #{basic_block_forward.3} parent=27 // pred_check
        %p1907 = pneg %p80
      $region30: #{basic_block_forward.3} parent=27 // pred_check_branch
        %1909 = sbr.rel (%p1907) target = $region32
      $region31: #{basic_block_forward.3} parent=27 // pred_region
        _
      $region32: #{basic_block_forward.3} parent=27 // pred_fallthru
        _
      // Predicated region
      $region33: #{basic_block_forward.3} parent=27 // pred_check
        %p1910 = pneg %p106
      $region34: #{basic_block_forward.3} parent=27 // pred_check_branch
        %1912 = sbr.rel (%p1910) target = $region36
      $region35: #{basic_block_forward.3} parent=27 // pred_region
        _
      $region36: #{basic_block_forward.3} parent=27 // pred_fallthru
        _
    $region28: #{basic_block_forward.3} parent=5 // pred_fallthru
      _
    %p1913 = scmp.le.s32.totalorder 2, %s10
    // Predicated region
    $region37: #{basic_block_forward.3} parent=5 // pred_check
      %p1914 = pneg %p1913
    $region38: #{basic_block_forward.3} parent=5 // pred_check_branch
      %1916 = sbr.rel (%p1914) target = $region40
    $region39: #{basic_block_forward.3} parent=5 // pred_region
      %s1917 = ssub.s32 %s10, 2
      // Predicated region
      $region41: #{basic_block_forward.3} parent=39 // pred_check
        %p1918 = pneg %p86
      $region42: #{basic_block_forward.3} parent=39 // pred_check_branch
        %1920 = sbr.rel (%p1918) target = $region44
      $region43: #{basic_block_forward.3} parent=39 // pred_region
        %p1921 = scmp.lt.s32.totalorder %s16, 1
        %s1922 = scalar_select %p1921, %s16, 1
        %s1923 = smul.addr %s1922, 32
        %s1924 = smul.addr %s1923, 8
        %s1925 = scalar_lea.vmem %s2, %s1924
      $region44: #{basic_block_forward.3} parent=39 // pred_fallthru
        _
      // Predicated region
      $region45: #{basic_block_forward.3} parent=39 // pred_check
        %p1926 = pneg %p112
      $region46: #{basic_block_forward.3} parent=39 // pred_check_branch
        %1928 = sbr.rel (%p1926) target = $region48
      $region47: #{basic_block_forward.3} parent=39 // pred_region
        %p1929 = scmp.lt.s32.totalorder %s16, 1
        %s1930 = scalar_select %p1929, %s16, 1
        %s1931 = smul.addr %s1930, 2
        %s1932 = scalar_lea.vmem %s3, %s1931
      $region48: #{basic_block_forward.3} parent=39 // pred_fallthru
        _
    $region40: #{basic_block_forward.3} parent=5 // pred_fallthru
      _
  $region6: #{basic_block_forward.3} parent=0 // loop_footer
    %s14 = sadd.s32 1, %s10
  $region7: #{basic_block_forward.3} parent=0 // loop_footer_branch
    %9 = sbr.rel target = $region3
  $region8: #{basic_block_forward.3} parent=0 // loop_exit
    _

// kernel: basic_block_forward.4
$region0: #{basic_block_forward.4}
  #allocation0 [shape = 'u32[]', space=smem, size = 0x4, offset = 0x4, fixed_abs, tag = 'smem constant byte address 0x4 - core index']
  #allocation1 [shape = 'u32[144,128]{1,0:T(1,128)}', space=vmem, size = 0x12000, scoped, tag = 'internal scratch']
  #allocation2 [shape = 'f32[18,16,12]{2,1,0:T(8,128)}', space=vmem, size = 0x24000, scoped, tag = 'scratch operand']
  %s0 = inlined_call_operand.vmem [shape: f32[2,16,16,4], index: 0, kind: input, shape index: {}]
  %s1 = inlined_call_operand.vmem [shape: f32[1,4], index: 1, kind: input, shape index: {}]
  %s2 = inlined_call_operand.vmem [shape: f32[1,4], index: 2, kind: input, shape index: {}]
  %s3 = inlined_call_operand.vmem [shape: f32[3,12,4], index: 3, kind: input, shape index: {}]
  %s4 = inlined_call_operand.vmem [shape: f32[2,16,16,4], index: 4, kind: output, shape index: {0}]
  %s5 = inlined_call_operand.vmem [shape: f32[2,2,4], index: 5, kind: output, shape index: {1}]
  %6 = xla_tuple %s4, %s5
  %s7 = sld [smem:[#allocation0]]
  $region57: #{basic_block_forward.4} parent=0
    _
  %s9 = ssub.s32 1, %s7
  %s10 = scalar_select 0, %s9, %s7
  loop: start=0, step=1, limit=4
  $region2: #{basic_block_forward.4} parent=0 // loop_pre_header
    _
  $region3: #{basic_block_forward.4} parent=0 // loop_header
    %s12 = sphi 0, %s16
    %p13 = scmp.ge.s32.totalorder %s12, 4
    %s22 = sphi 0, %s24
    %s25 = sphi 0, %s22
    %s26 = sphi 0, %s25
    %s42 = sphi 0, %s26
    %s46 = sphi 0, %s46
    %s48 = sphi 0, %s46
    %s49 = sphi 0, %s48
    %s63 = sphi 0, %s49
    %s67 = sphi 0, %s67
    %s69 = sphi 0, %s67
    %s70 = sphi 0, %s69
    %s84 = sphi 0, %s70
    %s88 = sphi 0, %s88
    %s90 = sphi 0, %s88
    %s91 = sphi 0, %s90
    %s105 = sphi 0, %s91
    %s111 = sphi 0, %s113
    %s114 = sphi 0, %s111
    %s115 = sphi 0, %s114
    %s131 = sphi 0, %s115
    %s137 = sphi 0, %s139
    %s140 = sphi 0, %s137
    %s141 = sphi 0, %s140
    %s157 = sphi 0, %s141
  $region4: #{basic_block_forward.4} parent=0 // loop_header_branch
    %15 = sbr.rel (%p13) target = $region8
  $region5: #{basic_block_forward.4} parent=0 // loop_body
    %s17 = ssub.s32 %s12, 1
    %s18 = ssub.s32 %s12, 2
    %s19 = sadd.s32 %s12, 1
    %s20 = ssub.s32 %s12, %s19
    %p21 = scmp.eq.s32.totalorder %s20, 0
    %s23 = sadd.s32 %s22, 1
    %s24 = scalar_select %p21, %s22, %s23
    %p27 = pneg %p21
    %p28 = scmp.eq.s32.totalorder %s12, 1
    %p29 = por %p27, %p28
    %p30 = scmp.ne.s32.totalorder %s22, %s25
    %p31 = scmp.eq.s32.totalorder %s12, 0
    %p32 = por %p30, %p31
    %p33 = scmp.ne.s32.totalorder %s22, %s25
    %p34 = scmp.eq.s32.totalorder %s17, 1
    %p35 = por %p33, %p34
    %p36 = scmp.ne.s32.totalorder %s25, %s26
    %p37 = scmp.eq.s32.totalorder %s17, 0
    %p38 = por %p36, %p37
    %p39 = scmp.ne.s32.totalorder %s25, %s26
    %p40 = scmp.eq.s32.totalorder %s18, 1
    %p41 = por %p39, %p40
    %p43 = scmp.ne.s32.totalorder %s26, %s42
    %p44 = scmp.eq.s32.totalorder %s18, 0
    %p45 = por %p43, %p44
    %s47 = sadd.s32 %s46, 1
    %p50 = scmp.eq.s32.totalorder %s12, 1
    %p51 = scmp.ne.s32.totalorder %s46, %s48
    %p52 = scmp.eq.s32.totalorder %s12, 0
    %p53 = por %p51, %p52
    %p54 = scmp.ne.s32.totalorder %s46, %s48
    %p55 = scmp.eq.s32.totalorder %s17, 1
    %p56 = por %p54, %p55
    %p57 = scmp.ne.s32.totalorder %s48, %s49
    %p58 = scmp.eq.s32.totalorder %s17, 0
    %p59 = por %p57, %p58
    %p60 = scmp.ne.s32.totalorder %s48, %s49
    %p61 = scmp.eq.s32.totalorder %s18, 1
    %p62 = por %p60, %p61
    %p64 = scmp.ne.s32.totalorder %s49, %s63
    %p65 = scmp.eq.s32.totalorder %s18, 0
    %p66 = por %p64, %p65
    %s68 = sadd.s32 %s67, 1
    %p71 = scmp.eq.s32.totalorder %s12, 1
    %p72 = scmp.ne.s32.totalorder %s67, %s69
    %p73 = scmp.eq.s32.totalorder %s12, 0
    %p74 = por %p72, %p73
    %p75 = scmp.ne.s32.totalorder %s67, %s69
    %p76 = scmp.eq.s32.totalorder %s17, 1
    %p77 = por %p75, %p76
    %p78 = scmp.ne.s32.totalorder %s69, %s70
    %p79 = scmp.eq.s32.totalorder %s17, 0
    %p80 = por %p78, %p79
    %p81 = scmp.ne.s32.totalorder %s69, %s70
    %p82 = scmp.eq.s32.totalorder %s18, 1
    %p83 = por %p81, %p82
    %p85 = scmp.ne.s32.totalorder %s70, %s84
    %p86 = scmp.eq.s32.totalorder %s18, 0
    %p87 = por %p85, %p86
    %s89 = sadd.s32 %s88, 1
    %p92 = scmp.eq.s32.totalorder %s12, 1
    %p93 = scmp.ne.s32.totalorder %s88, %s90
    %p94 = scmp.eq.s32.totalorder %s12, 0
    %p95 = por %p93, %p94
    %p96 = scmp.ne.s32.totalorder %s88, %s90
    %p97 = scmp.eq.s32.totalorder %s17, 1
    %p98 = por %p96, %p97
    %p99 = scmp.ne.s32.totalorder %s90, %s91
    %p100 = scmp.eq.s32.totalorder %s17, 0
    %p101 = por %p99, %p100
    %p102 = scmp.ne.s32.totalorder %s90, %s91
    %p103 = scmp.eq.s32.totalorder %s18, 1
    %p104 = por %p102, %p103
    %p106 = scmp.ne.s32.totalorder %s91, %s105
    %p107 = scmp.eq.s32.totalorder %s18, 0
    %p108 = por %p106, %p107
    %s109 = ssub.s32 %s12, %s19
    %p110 = scmp.eq.s32.totalorder %s109, 0
    %s112 = sadd.s32 %s111, 1
    %s113 = scalar_select %p110, %s111, %s112
    %p116 = pneg %p110
    %p117 = scmp.eq.s32.totalorder %s12, 1
    %p118 = por %p116, %p117
    %p119 = scmp.ne.s32.totalorder %s111, %s114
    %p120 = scmp.eq.s32.totalorder %s12, 0
    %p121 = por %p119, %p120
    %p122 = scmp.ne.s32.totalorder %s111, %s114
    %p123 = scmp.eq.s32.totalorder %s17, 1
    %p124 = por %p122, %p123
    %p125 = scmp.ne.s32.totalorder %s114, %s115
    %p126 = scmp.eq.s32.totalorder %s17, 0
    %p127 = por %p125, %p126
    %p128 = scmp.ne.s32.totalorder %s114, %s115
    %p129 = scmp.eq.s32.totalorder %s18, 1
    %p130 = por %p128, %p129
    %p132 = scmp.ne.s32.totalorder %s115, %s131
    %p133 = scmp.eq.s32.totalorder %s18, 0
    %p134 = por %p132, %p133
    %s135 = ssub.s32 %s12, %s19
    %p136 = scmp.eq.s32.totalorder %s135, 0
    %s138 = sadd.s32 %s137, 1
    %s139 = scalar_select %p136, %s137, %s138
    %p142 = pneg %p136
    %p143 = scmp.eq.s32.totalorder %s12, 1
    %p144 = por %p142, %p143
    %p145 = scmp.ne.s32.totalorder %s137, %s140
    %p146 = scmp.eq.s32.totalorder %s12, 0
    %p147 = por %p145, %p146
    %p148 = scmp.ne.s32.totalorder %s137, %s140
    %p149 = scmp.eq.s32.totalorder %s17, 1
    %p150 = por %p148, %p149
    %p151 = scmp.ne.s32.totalorder %s140, %s141
    %p152 = scmp.eq.s32.totalorder %s17, 0
    %p153 = por %p151, %p152
    %p154 = scmp.ne.s32.totalorder %s140, %s141
    %p155 = scmp.eq.s32.totalorder %s18, 1
    %p156 = por %p154, %p155
    %p158 = scmp.ne.s32.totalorder %s141, %s157
    %p159 = scmp.eq.s32.totalorder %s18, 0
    %p160 = por %p158, %p159
    %p161 = scmp.le.s32.totalorder 1, %s12
    %p162 = scmp.lt.s32.totalorder %s12, 3
    %p163 = pnand %p161, %p162
    %p164 = pneg %p163
    // Predicated region
    $region9: #{basic_block_forward.4} parent=5 // pred_check
      _
    $region10: #{basic_block_forward.4} parent=5 // pred_check_branch
      %166 = sbr.rel (%p163) target = $region12
    $region11: #{basic_block_forward.4} parent=5 // pred_region
      %s167 = ssub.s32 %s12, 1
      // Predicated region
      $region13: #{basic_block_forward.4} parent=11 // pred_check
        %p168 = pneg %p59
      $region14: #{basic_block_forward.4} parent=11 // pred_check_branch
        %170 = sbr.rel (%p168) target = $region16
      $region15: #{basic_block_forward.4} parent=11 // pred_region
        _
      $region16: #{basic_block_forward.4} parent=11 // pred_fallthru
        _
      // Predicated region
      $region17: #{basic_block_forward.4} parent=11 // pred_check
        %p171 = pneg %p80
      $region18: #{basic_block_forward.4} parent=11 // pred_check_branch
        %173 = sbr.rel (%p171) target = $region20
      $region19: #{basic_block_forward.4} parent=11 // pred_region
        _
      $region20: #{basic_block_forward.4} parent=11 // pred_fallthru
        _
      // Predicated region
      $region21: #{basic_block_forward.4} parent=11 // pred_check
        %p174 = pneg %p101
      $region22: #{basic_block_forward.4} parent=11 // pred_check_branch
        %176 = sbr.rel (%p174) target = $region24
      $region23: #{basic_block_forward.4} parent=11 // pred_region
        _
      $region24: #{basic_block_forward.4} parent=11 // pred_fallthru
        _
    $region12: #{basic_block_forward.4} parent=5 // pred_fallthru
      _
    %p177 = scmp.lt.s32.totalorder %s12, 2
    // Predicated region
    $region25: #{basic_block_forward.4} parent=5 // pred_check
      %p178 = pneg %p177
    $region26: #{basic_block_forward.4} parent=5 // pred_check_branch
      %180 = sbr.rel (%p178) target = $region28
    $region27: #{basic_block_forward.4} parent=5 // pred_region
      // Predicated region
      $region29: #{basic_block_forward.4} parent=27 // pred_check
        %p181 = pneg %p32
      $region30: #{basic_block_forward.4} parent=27 // pred_check_branch
        %183 = sbr.rel (%p181) target = $region32
      $region31: #{basic_block_forward.4} parent=27 // pred_region
        %p184 = scmp.lt.s32.totalorder %s12, 1
        %s185 = scalar_select %p184, %s12, 1
        %s186 = smul.addr %s185, 32
        %s187 = smul.addr %s186, 8
        %s188 = scalar_lea.vmem %s0, %s187
      $region32: #{basic_block_forward.4} parent=27 // pred_fallthru
        _
    $region28: #{basic_block_forward.4} parent=5 // pred_fallthru
      _
    %p189 = scmp.le.s32.totalorder 1, %s12
    %p190 = scmp.lt.s32.totalorder %s12, 3
    %p191 = pnand %p189, %p190
    %p192 = pneg %p191
    // Predicated region
    $region33: #{basic_block_forward.4} parent=5 // pred_check
      _
    $region34: #{basic_block_forward.4} parent=5 // pred_check_branch
      %194 = sbr.rel (%p191) target = $region36
    $region35: #{basic_block_forward.4} parent=5 // pred_region
      %s195 = ssub.s32 %s12, 1
      %p196 = scmp.lt.s32.totalorder %s17, 1
      %s197 = scalar_select %p196, %s17, 1
      %s198 = smul.addr %s197, 32
      %s199 = smul.addr %s198, 8
      %s200 = scalar_lea.vmem %s0, %s199
      %p201 = pneg %p38
      %p202 = pneg %p35
      %p203 = pneg %p59
      %p204 = pneg %p56
      %p205 = pneg %p80
      %p206 = pneg %p77
      %p207 = pneg %p101
      %p208 = pneg %p98
      %p209 = pneg %p127
      %p210 = pneg %p124
      %p211 = scmp.lt.s32.totalorder %s17, 1
      %s212 = scalar_select %p211, %s17, 1
      %s213 = smul.addr %s212, 32
      %s214 = smul.addr %s213, 8
      %s215 = scalar_lea.vmem %s4, %s214
      %p216 = pneg %p153
      %p217 = pneg %p150
      %p218 = scmp.lt.s32.totalorder %s17, 1
      %s219 = scalar_select %p218, %s17, 1
      %s220 = smul.addr %s219, 2
      %s221 = scalar_lea.vmem %s5, %s220
      %p222 = scmp.lt.s32.totalorder %s17, 1
      %s223 = scalar_select %p222, %s17, 1
      %s224 = smul.addr %s223, 32
      %s225 = smul.addr %s224, 8
      %s226 = scalar_lea.vmem %s0, %s225
      %p227 = scmp.lt.s32.totalorder %s17, 1
      %s228 = scalar_select %p227, %s17, 1
      %s229 = smul.addr %s228, 32
      %s230 = smul.addr %s229, 8
      %s231 = scalar_lea.vmem %s4, %s230
      %p232 = scmp.lt.s32.totalorder %s17, 1
      %s233 = scalar_select %p232, %s17, 1
      %s234 = smul.addr %s233, 2
      %s235 = scalar_lea.vmem %s5, %s234
      %v236 = vld [vmem:[%s226] sm:$0xff]
      %v237 = vld [vmem:[%s226 + $0x8] sm:$0xff]
      %v238 = vld [vmem:[%s226 + $0x10] sm:$0xff]
      %v239 = vld [vmem:[%s226 + $0x18] sm:$0xff]
      %v240 = vld [vmem:[%s226 + $0x20] sm:$0xff]
      %v241 = vld [vmem:[%s226 + $0x28] sm:$0xff]
      %v242 = vld [vmem:[%s226 + $0x30] sm:$0xff]
      %v243 = vld [vmem:[%s226 + $0x38] sm:$0xff]
      %v244 = vld [vmem:[%s226 + $0x40] sm:$0xff]
      %v245 = vld [vmem:[%s226 + $0x48] sm:$0xff]
      %v246 = vld [vmem:[%s226 + $0x50] sm:$0xff]
      %v247 = vld [vmem:[%s226 + $0x58] sm:$0xff]
      %v248 = vld [vmem:[%s226 + $0x60] sm:$0xff]
      %v249 = vld [vmem:[%s226 + $0x68] sm:$0xff]
      %v250 = vld [vmem:[%s226 + $0x70] sm:$0xff]
      %v251 = vld [vmem:[%s226 + $0x78] sm:$0xff]
      %v252 = vld [vmem:[%s226 + $0x80] sm:$0xff]
      %v253 = vld [vmem:[%s226 + $0x88] sm:$0xff]
      %v254 = vld [vmem:[%s226 + $0x90] sm:$0xff]
      %v255 = vld [vmem:[%s226 + $0x98] sm:$0xff]
      %v256 = vld [vmem:[%s226 + $0xa0] sm:$0xff]
      %v257 = vld [vmem:[%s226 + $0xa8] sm:$0xff]
      %v258 = vld [vmem:[%s226 + $0xb0] sm:$0xff]
      %v259 = vld [vmem:[%s226 + $0xb8] sm:$0xff]
      %v260 = vld [vmem:[%s226 + $0xc0] sm:$0xff]
      %v261 = vld [vmem:[%s226 + $0xc8] sm:$0xff]
      %v262 = vld [vmem:[%s226 + $0xd0] sm:$0xff]
      %v263 = vld [vmem:[%s226 + $0xd8] sm:$0xff]
      %v264 = vld [vmem:[%s226 + $0xe0] sm:$0xff]
      %v265 = vld [vmem:[%s226 + $0xe8] sm:$0xff]
      %v266 = vld [vmem:[%s226 + $0xf0] sm:$0xff]
      %v267 = vld [vmem:[%s226 + $0xf8] sm:$0xff]
      %v268 = vld [vmem:[%s1] sm:$0x1]
      %v269 = vld [vmem:[%s2] sm:$0x1]
      %v271 = vlaneseq
      %v272 = vshrl.u32 %v271, 7
      %v273 = vsub.s32 0, %v272
      %v274 = vrot.slane %v268, %v273
      %v276 = vmul.f32 %v236, %v274
      %v277 = vmul.f32 %v237, %v274
      %v278 = vmul.f32 %v238, %v274
      %v279 = vmul.f32 %v239, %v274
      %v280 = vmul.f32 %v240, %v274
      %v281 = vmul.f32 %v241, %v274
      %v282 = vmul.f32 %v242, %v274
      %v283 = vmul.f32 %v243, %v274
      %v284 = vmul.f32 %v244, %v274
      %v285 = vmul.f32 %v245, %v274
      %v286 = vmul.f32 %v246, %v274
      %v287 = vmul.f32 %v247, %v274
      %v288 = vmul.f32 %v248, %v274
      %v289 = vmul.f32 %v249, %v274
      %v290 = vmul.f32 %v250, %v274
      %v291 = vmul.f32 %v251, %v274
      %v292 = vmul.f32 %v252, %v274
      %v293 = vmul.f32 %v253, %v274
      %v294 = vmul.f32 %v254, %v274
      %v295 = vmul.f32 %v255, %v274
      %v296 = vmul.f32 %v256, %v274
      %v297 = vmul.f32 %v257, %v274
      %v298 = vmul.f32 %v258, %v274
      %v299 = vmul.f32 %v259, %v274
      %v300 = vmul.f32 %v260, %v274
      %v301 = vmul.f32 %v261, %v274
      %v302 = vmul.f32 %v262, %v274
      %v303 = vmul.f32 %v263, %v274
      %v304 = vmul.f32 %v264, %v274
      %v305 = vmul.f32 %v265, %v274
      %v306 = vmul.f32 %v266, %v274
      %v307 = vmul.f32 %v267, %v274
      %v309 = vlaneseq
      %v310 = vshrl.u32 %v309, 7
      %v311 = vsub.s32 0, %v310
      %v312 = vrot.slane %v269, %v311
      %v314 = vadd.f32 %v276, %v312
      %v315 = vadd.f32 %v277, %v312
      %v316 = vadd.f32 %v278, %v312
      %v317 = vadd.f32 %v279, %v312
      %v318 = vadd.f32 %v280, %v312
      %v319 = vadd.f32 %v281, %v312
      %v320 = vadd.f32 %v282, %v312
      %v321 = vadd.f32 %v283, %v312
      %v322 = vadd.f32 %v284, %v312
      %v323 = vadd.f32 %v285, %v312
      %v324 = vadd.f32 %v286, %v312
      %v325 = vadd.f32 %v287, %v312
      %v326 = vadd.f32 %v288, %v312
      %v327 = vadd.f32 %v289, %v312
      %v328 = vadd.f32 %v290, %v312
      %v329 = vadd.f32 %v291, %v312
      %v330 = vadd.f32 %v292, %v312
      %v331 = vadd.f32 %v293, %v312
      %v332 = vadd.f32 %v294, %v312
      %v333 = vadd.f32 %v295, %v312
      %v334 = vadd.f32 %v296, %v312
      %v335 = vadd.f32 %v297, %v312
      %v336 = vadd.f32 %v298, %v312
      %v337 = vadd.f32 %v299, %v312
      %v338 = vadd.f32 %v300, %v312
      %v339 = vadd.f32 %v301, %v312
      %v340 = vadd.f32 %v302, %v312
      %v341 = vadd.f32 %v303, %v312
      %v342 = vadd.f32 %v304, %v312
      %v343 = vadd.f32 %v305, %v312
      %v344 = vadd.f32 %v306, %v312
      %v345 = vadd.f32 %v307, %v312
      %v346 = vmax.f32 %v314, 0.0
      %v347 = vmax.f32 %v315, 0.0
      %v348 = vmax.f32 %v316, 0.0
      %v349 = vmax.f32 %v317, 0.0
      %v350 = vmax.f32 %v318, 0.0
      %v351 = vmax.f32 %v319, 0.0
      %v352 = vmax.f32 %v320, 0.0
      %v353 = vmax.f32 %v321, 0.0
      %v354 = vmax.f32 %v322, 0.0
      %v355 = vmax.f32 %v323, 0.0
      %v356 = vmax.f32 %v324, 0.0
      %v357 = vmax.f32 %v325, 0.0
      %v358 = vmax.f32 %v326, 0.0
      %v359 = vmax.f32 %v327, 0.0
      %v360 = vmax.f32 %v328, 0.0
      %v361 = vmax.f32 %v329, 0.0
      %v362 = vmax.f32 %v330, 0.0
      %v363 = vmax.f32 %v331, 0.0
      %v364 = vmax.f32 %v332, 0.0
      %v365 = vmax.f32 %v333, 0.0
      %v366 = vmax.f32 %v334, 0.0
      %v367 = vmax.f32 %v335, 0.0
      %v368 = vmax.f32 %v336, 0.0
      %v369 = vmax.f32 %v337, 0.0
      %v370 = vmax.f32 %v338, 0.0
      %v371 = vmax.f32 %v339, 0.0
      %v372 = vmax.f32 %v340, 0.0
      %v373 = vmax.f32 %v341, 0.0
      %v374 = vmax.f32 %v342, 0.0
      %v375 = vmax.f32 %v343, 0.0
      %v376 = vmax.f32 %v344, 0.0
      %v377 = vmax.f32 %v345, 0.0
      %vm378 = vcmask 97280
      %379 = vst.msk [vmem:[#allocation2] sm:$0xff] %vm378, 0.0
      %380 = vst.msk [vmem:[#allocation2 + $0x8] sm:$0xff] %vm378, 0.0
      %s381 = scalar_lea.vmem [#allocation2], 272
      %382 = vst.msk [vmem:[%s381] sm:$0xff] %vm378, 0.0
      %383 = vst.msk [vmem:[%s381 + $0x8] sm:$0xff] %vm378, 0.0
      %vm384 = vcmask 24576
      %385 = vst.msk [vmem:[#allocation2] sm:$0x1] %vm384, 0.0
      %386 = vst.msk [vmem:[#allocation2 + $0x10] sm:$0x1] %vm384, 0.0
      %387 = vst.msk [vmem:[#allocation2 + $0x20] sm:$0x1] %vm384, 0.0
      %388 = vst.msk [vmem:[#allocation2 + $0x30] sm:$0x1] %vm384, 0.0
      %389 = vst.msk [vmem:[#allocation2 + $0x40] sm:$0x1] %vm384, 0.0
      %390 = vst.msk [vmem:[#allocation2 + $0x50] sm:$0x1] %vm384, 0.0
      %391 = vst.msk [vmem:[#allocation2 + $0x60] sm:$0x1] %vm384, 0.0
      %392 = vst.msk [vmem:[#allocation2 + $0x70] sm:$0x1] %vm384, 0.0
      %393 = vst.msk [vmem:[#allocation2 + $0x80] sm:$0x1] %vm384, 0.0
      %394 = vst.msk [vmem:[#allocation2 + $0x90] sm:$0x1] %vm384, 0.0
      %395 = vst.msk [vmem:[#allocation2 + $0xa0] sm:$0x1] %vm384, 0.0
      %396 = vst.msk [vmem:[#allocation2 + $0xb0] sm:$0x1] %vm384, 0.0
      %397 = vst.msk [vmem:[#allocation2 + $0xc0] sm:$0x1] %vm384, 0.0
      %398 = vst.msk [vmem:[#allocation2 + $0xd0] sm:$0x1] %vm384, 0.0
      %399 = vst.msk [vmem:[#allocation2 + $0xe0] sm:$0x1] %vm384, 0.0
      %400 = vst.msk [vmem:[#allocation2 + $0xf0] sm:$0x1] %vm384, 0.0
      %401 = vst.msk [vmem:[#allocation2 + $0x100] sm:$0x1] %vm384, 0.0
      %402 = vst.msk [vmem:[#allocation2 + $0x110] sm:$0x1] %vm384, 0.0
      %vm403 = vcmask 90176
      %404 = vst.msk [vmem:[#allocation2 + $0xf] sm:$0x1] %vm403, 0.0
      %405 = vst.msk [vmem:[#allocation2 + $0x1f] sm:$0x1] %vm403, 0.0
      %406 = vst.msk [vmem:[#allocation2 + $0x2f] sm:$0x1] %vm403, 0.0
      %407 = vst.msk [vmem:[#allocation2 + $0x3f] sm:$0x1] %vm403, 0.0
      %408 = vst.msk [vmem:[#allocation2 + $0x4f] sm:$0x1] %vm403, 0.0
      %409 = vst.msk [vmem:[#allocation2 + $0x5f] sm:$0x1] %vm403, 0.0
      %410 = vst.msk [vmem:[#allocation2 + $0x6f] sm:$0x1] %vm403, 0.0
      %411 = vst.msk [vmem:[#allocation2 + $0x7f] sm:$0x1] %vm403, 0.0
      %412 = vst.msk [vmem:[#allocation2 + $0x8f] sm:$0x1] %vm403, 0.0
      %413 = vst.msk [vmem:[#allocation2 + $0x9f] sm:$0x1] %vm403, 0.0
      %414 = vst.msk [vmem:[#allocation2 + $0xaf] sm:$0x1] %vm403, 0.0
      %415 = vst.msk [vmem:[#allocation2 + $0xbf] sm:$0x1] %vm403, 0.0
      %416 = vst.msk [vmem:[#allocation2 + $0xcf] sm:$0x1] %vm403, 0.0
      %417 = vst.msk [vmem:[#allocation2 + $0xdf] sm:$0x1] %vm403, 0.0
      %418 = vst.msk [vmem:[#allocation2 + $0xef] sm:$0x1] %vm403, 0.0
      %419 = vst.msk [vmem:[#allocation2 + $0xff] sm:$0x1] %vm403, 0.0
      %420 = vst.msk [vmem:[#allocation2 + $0x10f] sm:$0x1] %vm403, 0.0
      %421 = vst.msk [vmem:[#allocation2 + $0x11f] sm:$0x1] %vm403, 0.0
      %s422 = scalar_lea.vmem [#allocation2], 16
      %vm423 = vcmask 31744
      %424 = vst.msk [vmem:[%s422 + $0x1] sm:$0xff] %vm423, %v346
      %vm425 = vcmask 30720
      %426 = vst.msk [vmem:[%s422 + $0x9] sm:$0x7f] %vm425, %v347
      %427 = vst.msk [vmem:[%s422 + $0x11] sm:$0xff] %vm423, %v348
      %428 = vst.msk [vmem:[%s422 + $0x19] sm:$0x7f] %vm425, %v349
      %429 = vst.msk [vmem:[%s422 + $0x21] sm:$0xff] %vm423, %v350
      %430 = vst.msk [vmem:[%s422 + $0x29] sm:$0x7f] %vm425, %v351
      %431 = vst.msk [vmem:[%s422 + $0x31] sm:$0xff] %vm423, %v352
      %432 = vst.msk [vmem:[%s422 + $0x39] sm:$0x7f] %vm425, %v353
      %433 = vst.msk [vmem:[%s422 + $0x41] sm:$0xff] %vm423, %v354
      %434 = vst.msk [vmem:[%s422 + $0x49] sm:$0x7f] %vm425, %v355
      %435 = vst.msk [vmem:[%s422 + $0x51] sm:$0xff] %vm423, %v356
      %436 = vst.msk [vmem:[%s422 + $0x59] sm:$0x7f] %vm425, %v357
      %437 = vst.msk [vmem:[%s422 + $0x61] sm:$0xff] %vm423, %v358
      %438 = vst.msk [vmem:[%s422 + $0x69] sm:$0x7f] %vm425, %v359
      %439 = vst.msk [vmem:[%s422 + $0x71] sm:$0xff] %vm423, %v360
      %440 = vst.msk [vmem:[%s422 + $0x79] sm:$0x7f] %vm425, %v361
      %441 = vst.msk [vmem:[%s422 + $0x81] sm:$0xff] %vm423, %v362
      %442 = vst.msk [vmem:[%s422 + $0x89] sm:$0x7f] %vm425, %v363
      %443 = vst.msk [vmem:[%s422 + $0x91] sm:$0xff] %vm423, %v364
      %444 = vst.msk [vmem:[%s422 + $0x99] sm:$0x7f] %vm425, %v365
      %445 = vst.msk [vmem:[%s422 + $0xa1] sm:$0xff] %vm423, %v366
      %446 = vst.msk [vmem:[%s422 + $0xa9] sm:$0x7f] %vm425, %v367
      %447 = vst.msk [vmem:[%s422 + $0xb1] sm:$0xff] %vm423, %v368
      %448 = vst.msk [vmem:[%s422 + $0xb9] sm:$0x7f] %vm425, %v369
      %449 = vst.msk [vmem:[%s422 + $0xc1] sm:$0xff] %vm423, %v370
      %450 = vst.msk [vmem:[%s422 + $0xc9] sm:$0x7f] %vm425, %v371
      %451 = vst.msk [vmem:[%s422 + $0xd1] sm:$0xff] %vm423, %v372
      %452 = vst.msk [vmem:[%s422 + $0xd9] sm:$0x7f] %vm425, %v373
      %453 = vst.msk [vmem:[%s422 + $0xe1] sm:$0xff] %vm423, %v374
      %454 = vst.msk [vmem:[%s422 + $0xe9] sm:$0x7f] %vm425, %v375
      %455 = vst.msk [vmem:[%s422 + $0xf1] sm:$0xff] %vm423, %v376
      %456 = vst.msk [vmem:[%s422 + $0xf9] sm:$0x7f] %vm425, %v377
      %489 = vrot.lane.b32.xlu0 %v346, 4
      %v490 = vpop.permute.xlu0 %489
      %491 = vrot.lane.b32.xlu0 %v347, 4
      %v492 = vpop.permute.xlu0 %491
      %493 = vrot.lane.b32.xlu0 %v348, 4
      %v494 = vpop.permute.xlu0 %493
      %495 = vrot.lane.b32.xlu0 %v349, 4
      %v496 = vpop.permute.xlu0 %495
      %497 = vrot.lane.b32.xlu0 %v350, 4
      %v498 = vpop.permute.xlu0 %497
      %499 = vrot.lane.b32.xlu0 %v351, 4
      %v500 = vpop.permute.xlu0 %499
      %501 = vrot.lane.b32.xlu0 %v352, 4
      %v502 = vpop.permute.xlu0 %501
      %503 = vrot.lane.b32.xlu0 %v353, 4
      %v504 = vpop.permute.xlu0 %503
      %505 = vrot.lane.b32.xlu0 %v354, 4
      %v506 = vpop.permute.xlu0 %505
      %507 = vrot.lane.b32.xlu0 %v355, 4
      %v508 = vpop.permute.xlu0 %507
      %509 = vrot.lane.b32.xlu0 %v356, 4
      %v510 = vpop.permute.xlu0 %509
      %511 = vrot.lane.b32.xlu0 %v357, 4
      %v512 = vpop.permute.xlu0 %511
      %513 = vrot.lane.b32.xlu0 %v358, 4
      %v514 = vpop.permute.xlu0 %513
      %515 = vrot.lane.b32.xlu0 %v359, 4
      %v516 = vpop.permute.xlu0 %515
      %517 = vrot.lane.b32.xlu0 %v360, 4
      %v518 = vpop.permute.xlu0 %517
      %519 = vrot.lane.b32.xlu0 %v361, 4
      %v520 = vpop.permute.xlu0 %519
      %521 = vrot.lane.b32.xlu0 %v362, 4
      %v522 = vpop.permute.xlu0 %521
      %523 = vrot.lane.b32.xlu0 %v363, 4
      %v524 = vpop.permute.xlu0 %523
      %525 = vrot.lane.b32.xlu0 %v364, 4
      %v526 = vpop.permute.xlu0 %525
      %527 = vrot.lane.b32.xlu0 %v365, 4
      %v528 = vpop.permute.xlu0 %527
      %529 = vrot.lane.b32.xlu0 %v366, 4
      %v530 = vpop.permute.xlu0 %529
      %531 = vrot.lane.b32.xlu0 %v367, 4
      %v532 = vpop.permute.xlu0 %531
      %533 = vrot.lane.b32.xlu0 %v368, 4
      %v534 = vpop.permute.xlu0 %533
      %535 = vrot.lane.b32.xlu0 %v369, 4
      %v536 = vpop.permute.xlu0 %535
      %537 = vrot.lane.b32.xlu0 %v370, 4
      %v538 = vpop.permute.xlu0 %537
      %539 = vrot.lane.b32.xlu0 %v371, 4
      %v540 = vpop.permute.xlu0 %539
      %541 = vrot.lane.b32.xlu0 %v372, 4
      %v542 = vpop.permute.xlu0 %541
      %543 = vrot.lane.b32.xlu0 %v373, 4
      %v544 = vpop.permute.xlu0 %543
      %545 = vrot.lane.b32.xlu0 %v374, 4
      %v546 = vpop.permute.xlu0 %545
      %547 = vrot.lane.b32.xlu0 %v375, 4
      %v548 = vpop.permute.xlu0 %547
      %549 = vrot.lane.b32.xlu0 %v376, 4
      %v550 = vpop.permute.xlu0 %549
      %551 = vrot.lane.b32.xlu0 %v377, 4
      %v552 = vpop.permute.xlu0 %551
      %vm585 = vcmask 64544
      %586 = vst.msk [vmem:[%s422] sm:$0xff] %vm585, %v490
      %587 = vst.msk [vmem:[%s422 + $0x8] sm:$0xff] %vm585, %v492
      %588 = vst.msk [vmem:[%s422 + $0x10] sm:$0xff] %vm585, %v494
      %589 = vst.msk [vmem:[%s422 + $0x18] sm:$0xff] %vm585, %v496
      %590 = vst.msk [vmem:[%s422 + $0x20] sm:$0xff] %vm585, %v498
      %591 = vst.msk [vmem:[%s422 + $0x28] sm:$0xff] %vm585, %v500
      %592 = vst.msk [vmem:[%s422 + $0x30] sm:$0xff] %vm585, %v502
      %593 = vst.msk [vmem:[%s422 + $0x38] sm:$0xff] %vm585, %v504
      %594 = vst.msk [vmem:[%s422 + $0x40] sm:$0xff] %vm585, %v506
      %595 = vst.msk [vmem:[%s422 + $0x48] sm:$0xff] %vm585, %v508
      %596 = vst.msk [vmem:[%s422 + $0x50] sm:$0xff] %vm585, %v510
      %597 = vst.msk [vmem:[%s422 + $0x58] sm:$0xff] %vm585, %v512
      %598 = vst.msk [vmem:[%s422 + $0x60] sm:$0xff] %vm585, %v514
      %599 = vst.msk [vmem:[%s422 + $0x68] sm:$0xff] %vm585, %v516
      %600 = vst.msk [vmem:[%s422 + $0x70] sm:$0xff] %vm585, %v518
      %601 = vst.msk [vmem:[%s422 + $0x78] sm:$0xff] %vm585, %v520
      %602 = vst.msk [vmem:[%s422 + $0x80] sm:$0xff] %vm585, %v522
      %603 = vst.msk [vmem:[%s422 + $0x88] sm:$0xff] %vm585, %v524
      %604 = vst.msk [vmem:[%s422 + $0x90] sm:$0xff] %vm585, %v526
      %605 = vst.msk [vmem:[%s422 + $0x98] sm:$0xff] %vm585, %v528
      %606 = vst.msk [vmem:[%s422 + $0xa0] sm:$0xff] %vm585, %v530
      %607 = vst.msk [vmem:[%s422 + $0xa8] sm:$0xff] %vm585, %v532
      %608 = vst.msk [vmem:[%s422 + $0xb0] sm:$0xff] %vm585, %v534
      %609 = vst.msk [vmem:[%s422 + $0xb8] sm:$0xff] %vm585, %v536
      %610 = vst.msk [vmem:[%s422 + $0xc0] sm:$0xff] %vm585, %v538
      %611 = vst.msk [vmem:[%s422 + $0xc8] sm:$0xff] %vm585, %v540
      %612 = vst.msk [vmem:[%s422 + $0xd0] sm:$0xff] %vm585, %v542
      %613 = vst.msk [vmem:[%s422 + $0xd8] sm:$0xff] %vm585, %v544
      %614 = vst.msk [vmem:[%s422 + $0xe0] sm:$0xff] %vm585, %v546
      %615 = vst.msk [vmem:[%s422 + $0xe8] sm:$0xff] %vm585, %v548
      %616 = vst.msk [vmem:[%s422 + $0xf0] sm:$0xff] %vm585, %v550
      %617 = vst.msk [vmem:[%s422 + $0xf8] sm:$0xff] %vm585, %v552
      %618 = vrot.lane.b32.xlu0 %v346, 8
      %v619 = vpop.permute.xlu0 %618
      %620 = vrot.lane.b32.xlu0 %v347, 8
      %v621 = vpop.permute.xlu0 %620
      %622 = vrot.lane.b32.xlu0 %v348, 8
      %v623 = vpop.permute.xlu0 %622
      %624 = vrot.lane.b32.xlu0 %v349, 8
      %v625 = vpop.permute.xlu0 %624
      %626 = vrot.lane.b32.xlu0 %v350, 8
      %v627 = vpop.permute.xlu0 %626
      %628 = vrot.lane.b32.xlu0 %v351, 8
      %v629 = vpop.permute.xlu0 %628
      %630 = vrot.lane.b32.xlu0 %v352, 8
      %v631 = vpop.permute.xlu0 %630
      %632 = vrot.lane.b32.xlu0 %v353, 8
      %v633 = vpop.permute.xlu0 %632
      %634 = vrot.lane.b32.xlu0 %v354, 8
      %v635 = vpop.permute.xlu0 %634
      %636 = vrot.lane.b32.xlu0 %v355, 8
      %v637 = vpop.permute.xlu0 %636
      %638 = vrot.lane.b32.xlu0 %v356, 8
      %v639 = vpop.permute.xlu0 %638
      %640 = vrot.lane.b32.xlu0 %v357, 8
      %v641 = vpop.permute.xlu0 %640
      %642 = vrot.lane.b32.xlu0 %v358, 8
      %v643 = vpop.permute.xlu0 %642
      %644 = vrot.lane.b32.xlu0 %v359, 8
      %v645 = vpop.permute.xlu0 %644
      %646 = vrot.lane.b32.xlu0 %v360, 8
      %v647 = vpop.permute.xlu0 %646
      %648 = vrot.lane.b32.xlu0 %v361, 8
      %v649 = vpop.permute.xlu0 %648
      %650 = vrot.lane.b32.xlu0 %v362, 8
      %v651 = vpop.permute.xlu0 %650
      %652 = vrot.lane.b32.xlu0 %v363, 8
      %v653 = vpop.permute.xlu0 %652
      %654 = vrot.lane.b32.xlu0 %v364, 8
      %v655 = vpop.permute.xlu0 %654
      %656 = vrot.lane.b32.xlu0 %v365, 8
      %v657 = vpop.permute.xlu0 %656
      %658 = vrot.lane.b32.xlu0 %v366, 8
      %v659 = vpop.permute.xlu0 %658
      %660 = vrot.lane.b32.xlu0 %v367, 8
      %v661 = vpop.permute.xlu0 %660
      %662 = vrot.lane.b32.xlu0 %v368, 8
      %v663 = vpop.permute.xlu0 %662
      %664 = vrot.lane.b32.xlu0 %v369, 8
      %v665 = vpop.permute.xlu0 %664
      %666 = vrot.lane.b32.xlu0 %v370, 8
      %v667 = vpop.permute.xlu0 %666
      %668 = vrot.lane.b32.xlu0 %v371, 8
      %v669 = vpop.permute.xlu0 %668
      %670 = vrot.lane.b32.xlu0 %v372, 8
      %v671 = vpop.permute.xlu0 %670
      %672 = vrot.lane.b32.xlu0 %v373, 8
      %v673 = vpop.permute.xlu0 %672
      %674 = vrot.lane.b32.xlu0 %v374, 8
      %v675 = vpop.permute.xlu0 %674
      %676 = vrot.lane.b32.xlu0 %v375, 8
      %v677 = vpop.permute.xlu0 %676
      %678 = vrot.lane.b32.xlu0 %v376, 8
      %v679 = vpop.permute.xlu0 %678
      %680 = vrot.lane.b32.xlu0 %v377, 8
      %v681 = vpop.permute.xlu0 %680
      %vm714 = vcmask 97345
      %715 = vst.msk [vmem:[%s422 - $0x1] sm:$0xfe] %vm714, %v619
      %vm716 = vcmask 97344
      %717 = vst.msk [vmem:[%s422 + $0x7] sm:$0xff] %vm716, %v621
      %718 = vst.msk [vmem:[%s422 + $0xf] sm:$0xfe] %vm714, %v623
      %719 = vst.msk [vmem:[%s422 + $0x17] sm:$0xff] %vm716, %v625
      %720 = vst.msk [vmem:[%s422 + $0x1f] sm:$0xfe] %vm714, %v627
      %721 = vst.msk [vmem:[%s422 + $0x27] sm:$0xff] %vm716, %v629
      %722 = vst.msk [vmem:[%s422 + $0x2f] sm:$0xfe] %vm714, %v631
      %723 = vst.msk [vmem:[%s422 + $0x37] sm:$0xff] %vm716, %v633
      %724 = vst.msk [vmem:[%s422 + $0x3f] sm:$0xfe] %vm714, %v635
      %725 = vst.msk [vmem:[%s422 + $0x47] sm:$0xff] %vm716, %v637
      %726 = vst.msk [vmem:[%s422 + $0x4f] sm:$0xfe] %vm714, %v639
      %727 = vst.msk [vmem:[%s422 + $0x57] sm:$0xff] %vm716, %v641
      %728 = vst.msk [vmem:[%s422 + $0x5f] sm:$0xfe] %vm714, %v643
      %729 = vst.msk [vmem:[%s422 + $0x67] sm:$0xff] %vm716, %v645
      %730 = vst.msk [vmem:[%s422 + $0x6f] sm:$0xfe] %vm714, %v647
      %731 = vst.msk [vmem:[%s422 + $0x77] sm:$0xff] %vm716, %v649
      %732 = vst.msk [vmem:[%s422 + $0x7f] sm:$0xfe] %vm714, %v651
      %733 = vst.msk [vmem:[%s422 + $0x87] sm:$0xff] %vm716, %v653
      %734 = vst.msk [vmem:[%s422 + $0x8f] sm:$0xfe] %vm714, %v655
      %735 = vst.msk [vmem:[%s422 + $0x97] sm:$0xff] %vm716, %v657
      %736 = vst.msk [vmem:[%s422 + $0x9f] sm:$0xfe] %vm714, %v659
      %737 = vst.msk [vmem:[%s422 + $0xa7] sm:$0xff] %vm716, %v661
      %738 = vst.msk [vmem:[%s422 + $0xaf] sm:$0xfe] %vm714, %v663
      %739 = vst.msk [vmem:[%s422 + $0xb7] sm:$0xff] %vm716, %v665
      %740 = vst.msk [vmem:[%s422 + $0xbf] sm:$0xfe] %vm714, %v667
      %741 = vst.msk [vmem:[%s422 + $0xc7] sm:$0xff] %vm716, %v669
      %742 = vst.msk [vmem:[%s422 + $0xcf] sm:$0xfe] %vm714, %v671
      %743 = vst.msk [vmem:[%s422 + $0xd7] sm:$0xff] %vm716, %v673
      %744 = vst.msk [vmem:[%s422 + $0xdf] sm:$0xfe] %vm714, %v675
      %745 = vst.msk [vmem:[%s422 + $0xe7] sm:$0xff] %vm716, %v677
      %746 = vst.msk [vmem:[%s422 + $0xef] sm:$0xfe] %vm714, %v679
      %747 = vst.msk [vmem:[%s422 + $0xf7] sm:$0xff] %vm716, %v681
      %v748 = vld [vmem:[#allocation2] sm:$0xff]
      %v749 = vld [vmem:[#allocation2 + $0x8] sm:$0xff]
      %v750 = vld [vmem:[#allocation2 + $0x10] sm:$0xff]
      %v751 = vld [vmem:[#allocation2 + $0x18] sm:$0xff]
      %v752 = vld [vmem:[#allocation2 + $0x20] sm:$0xff]
      %v753 = vld [vmem:[#allocation2 + $0x28] sm:$0xff]
      %v754 = vld [vmem:[#allocation2 + $0x30] sm:$0xff]
      %v755 = vld [vmem:[#allocation2 + $0x38] sm:$0xff]
      %v756 = vld [vmem:[#allocation2 + $0x40] sm:$0xff]
      %v757 = vld [vmem:[#allocation2 + $0x48] sm:$0xff]
      %v758 = vld [vmem:[#allocation2 + $0x50] sm:$0xff]
      %v759 = vld [vmem:[#allocation2 + $0x58] sm:$0xff]
      %v760 = vld [vmem:[#allocation2 + $0x60] sm:$0xff]
      %v761 = vld [vmem:[#allocation2 + $0x68] sm:$0xff]
      %v762 = vld [vmem:[#allocation2 + $0x70] sm:$0xff]
      %v763 = vld [vmem:[#allocation2 + $0x78] sm:$0xff]
      %v764 = vld [vmem:[#allocation2 + $0x80] sm:$0xff]
      %v765 = vld [vmem:[#allocation2 + $0x88] sm:$0xff]
      %v766 = vld [vmem:[#allocation2 + $0x90] sm:$0xff]
      %v767 = vld [vmem:[#allocation2 + $0x98] sm:$0xff]
      %v768 = vld [vmem:[#allocation2 + $0xa0] sm:$0xff]
      %v769 = vld [vmem:[#allocation2 + $0xa8] sm:$0xff]
      %v770 = vld [vmem:[#allocation2 + $0xb0] sm:$0xff]
      %v771 = vld [vmem:[#allocation2 + $0xb8] sm:$0xff]
      %v772 = vld [vmem:[#allocation2 + $0xc0] sm:$0xff]
      %v773 = vld [vmem:[#allocation2 + $0xc8] sm:$0xff]
      %v774 = vld [vmem:[#allocation2 + $0xd0] sm:$0xff]
      %v775 = vld [vmem:[#allocation2 + $0xd8] sm:$0xff]
      %v776 = vld [vmem:[#allocation2 + $0xe0] sm:$0xff]
      %v777 = vld [vmem:[#allocation2 + $0xe8] sm:$0xff]
      %v778 = vld [vmem:[#allocation2 + $0xf0] sm:$0xff]
      %v779 = vld [vmem:[#allocation2 + $0xf8] sm:$0xff]
      %v780 = vld [vmem:[%s3] sm:$0xff]
      %v781 = vld [vmem:[%s3 + $0x8] sm:$0xf]
      %v782 = vld [vmem:[%s422] sm:$0xff]
      %v783 = vld [vmem:[%s422 + $0x8] sm:$0xff]
      %v784 = vld [vmem:[%s422 + $0x10] sm:$0xff]
      %v785 = vld [vmem:[%s422 + $0x18] sm:$0xff]
      %v786 = vld [vmem:[%s422 + $0x20] sm:$0xff]
      %v787 = vld [vmem:[%s422 + $0x28] sm:$0xff]
      %v788 = vld [vmem:[%s422 + $0x30] sm:$0xff]
      %v789 = vld [vmem:[%s422 + $0x38] sm:$0xff]
      %v790 = vld [vmem:[%s422 + $0x40] sm:$0xff]
      %v791 = vld [vmem:[%s422 + $0x48] sm:$0xff]
      %v792 = vld [vmem:[%s422 + $0x50] sm:$0xff]
      %v793 = vld [vmem:[%s422 + $0x58] sm:$0xff]
      %v794 = vld [vmem:[%s422 + $0x60] sm:$0xff]
      %v795 = vld [vmem:[%s422 + $0x68] sm:$0xff]
      %v796 = vld [vmem:[%s422 + $0x70] sm:$0xff]
      %v797 = vld [vmem:[%s422 + $0x78] sm:$0xff]
      %v798 = vld [vmem:[%s422 + $0x80] sm:$0xff]
      %v799 = vld [vmem:[%s422 + $0x88] sm:$0xff]
      %v800 = vld [vmem:[%s422 + $0x90] sm:$0xff]
      %v801 = vld [vmem:[%s422 + $0x98] sm:$0xff]
      %v802 = vld [vmem:[%s422 + $0xa0] sm:$0xff]
      %v803 = vld [vmem:[%s422 + $0xa8] sm:$0xff]
      %v804 = vld [vmem:[%s422 + $0xb0] sm:$0xff]
      %v805 = vld [vmem:[%s422 + $0xb8] sm:$0xff]
      %v806 = vld [vmem:[%s422 + $0xc0] sm:$0xff]
      %v807 = vld [vmem:[%s422 + $0xc8] sm:$0xff]
      %v808 = vld [vmem:[%s422 + $0xd0] sm:$0xff]
      %v809 = vld [vmem:[%s422 + $0xd8] sm:$0xff]
      %v810 = vld [vmem:[%s422 + $0xe0] sm:$0xff]
      %v811 = vld [vmem:[%s422 + $0xe8] sm:$0xff]
      %v812 = vld [vmem:[%s422 + $0xf0] sm:$0xff]
      %v813 = vld [vmem:[%s422 + $0xf8] sm:$0xff]
      %s814 = scalar_lea.vmem %s3, 16
      %v815 = vld [vmem:[%s814] sm:$0xff]
      %v816 = vld [vmem:[%s814 + $0x8] sm:$0xf]
      %v818 = vsel %vm378, %v782, 0
      %v821 = vsel %vm378, %v783, 0
      %v824 = vsel %vm378, %v784, 0
      %v827 = vsel %vm378, %v785, 0
      %v830 = vsel %vm378, %v786, 0
      %v833 = vsel %vm378, %v787, 0
      %v836 = vsel %vm378, %v788, 0
      %v839 = vsel %vm378, %v789, 0
      %v842 = vsel %vm378, %v790, 0
      %v845 = vsel %vm378, %v791, 0
      %v848 = vsel %vm378, %v792, 0
      %v851 = vsel %vm378, %v793, 0
      %v854 = vsel %vm378, %v794, 0
      %v857 = vsel %vm378, %v795, 0
      %v860 = vsel %vm378, %v796, 0
      %v863 = vsel %vm378, %v797, 0
      %v866 = vsel %vm378, %v798, 0
      %v869 = vsel %vm378, %v799, 0
      %v872 = vsel %vm378, %v800, 0
      %v875 = vsel %vm378, %v801, 0
      %v878 = vsel %vm378, %v802, 0
      %v881 = vsel %vm378, %v803, 0
      %v884 = vsel %vm378, %v804, 0
      %v887 = vsel %vm378, %v805, 0
      %v890 = vsel %vm378, %v806, 0
      %v893 = vsel %vm378, %v807, 0
      %v896 = vsel %vm378, %v808, 0
      %v899 = vsel %vm378, %v809, 0
      %v902 = vsel %vm378, %v810, 0
      %v905 = vsel %vm378, %v811, 0
      %v908 = vsel %vm378, %v812, 0
      %v911 = vsel %vm378, %v813, 0
      %vm913 = vcmask 1043456
      %v915 = vsel %vm913, %v816, 0
      %917 = vmatprep.subr.mxu0 0.0
      %918 = vmatpush1.msra.mxu0 0.0
      %919 = vmatprep.subr.mxu0 0.0
      %920 = vmatpush1.msra.mxu0 0.0
      %921 = vmatprep.subr.mxu0 0.0
      %922 = vmatpush1.msra.mxu0 0.0
      %923 = vmatprep.subr.mxu0 0.0
      %924 = vmatpush1.msra.mxu0 0.0
      %925 = vmatprep.subr.mxu0 0.0
      %926 = vmatpush1.msra.mxu0 0.0
      %927 = vmatprep.subr.mxu0 0.0
      %928 = vmatpush1.msra.mxu0 0.0
      %929 = vmatprep.subr.mxu0 0.0
      %930 = vmatpush1.msra.mxu0 0.0
      %931 = vmatprep.subr.mxu0 0.0
      %932 = vmatpush1.msra.mxu0 0.0
      %933 = vmatprep.subr.mxu0 0.0
      %934 = vmatpush1.msra.mxu0 0.0
      %935 = vmatprep.subr.mxu0 0.0
      %936 = vmatpush1.msra.mxu0 0.0
      %937 = vmatprep.subr.mxu0 0.0
      %938 = vmatpush1.msra.mxu0 0.0
      %939 = vmatprep.subr.mxu0 0.0
      %940 = vmatpush1.msra.mxu0 0.0
      %941 = vmatprep.subr.mxu0 0.0
      %942 = vmatpush1.msra.mxu0 0.0
      %943 = vmatprep.subr.mxu0 0.0
      %944 = vmatpush1.msra.mxu0 0.0
      %945 = vmatprep.subr.mxu0 0.0
      %946 = vmatpush1.msra.mxu0 %v915
      %947 = vmatprep.subr.mxu0 0.0
      %948 = vmatpush1.msra.mxu0 %v815
      %949 = vmatprep.subr.mxu0 0.0
      %950 = vmatpush2.msra.mxu0 0.0
      %951 = vmatprep.subr.mxu0 0.0
      %952 = vmatpush2.msra.mxu0 0.0
      %953 = vmatprep.subr.mxu0 0.0
      %954 = vmatpush2.msra.mxu0 0.0
      %955 = vmatprep.subr.mxu0 0.0
      %956 = vmatpush2.msra.mxu0 0.0
      %957 = vmatprep.subr.mxu0 0.0
      %958 = vmatpush2.msra.mxu0 0.0
      %959 = vmatprep.subr.mxu0 0.0
      %960 = vmatpush2.msra.mxu0 0.0
      %961 = vmatprep.subr.mxu0 0.0
      %962 = vmatpush2.msra.mxu0 0.0
      %963 = vmatprep.subr.mxu0 0.0
      %964 = vmatpush2.msra.mxu0 0.0
      %965 = vmatprep.subr.mxu0 0.0
      %966 = vmatpush2.msra.mxu0 0.0
      %967 = vmatprep.subr.mxu0 0.0
      %968 = vmatpush2.msra.mxu0 0.0
      %969 = vmatprep.subr.mxu0 0.0
      %970 = vmatpush2.msra.mxu0 0.0
      %971 = vmatprep.subr.mxu0 0.0
      %972 = vmatpush2.msra.mxu0 0.0
      %973 = vmatprep.subr.mxu0 0.0
      %974 = vmatpush2.msra.mxu0 0.0
      %975 = vmatprep.subr.mxu0 0.0
      %976 = vmatpush2.msra.mxu0 0.0
      %977 = vmatprep.subr.mxu0 0.0
      %978 = vmatpush2.msra.mxu0 0.0
      %979 = vmatprep.subr.mxu0 0.0
      %980 = vmatpush2.msra.mxu0 0.0
      %981 = vmatprep.mubr.f32.mxu0 0.0
      %982 = vmatmul.mubr.f32.gmra.mxu0 %v818
      %v983 = vpop.f32.mrf.mxu0
      %v984 = vadd.f32 0.0, %v983
      %v985 = vpop.f32.mrf.mxu0
      %986 = vmatprep.mubr.f32.mxu0 0.0
      %987 = vmatmul.mubr.f32.gmra.mxu0 %v821
      %v988 = vpop.f32.mrf.mxu0
      %v989 = vadd.f32 0.0, %v988
      %v990 = vpop.f32.mrf.mxu0
      %991 = vmatprep.mubr.f32.mxu0 0.0
      %992 = vmatmul.mubr.f32.gmra.mxu0 %v824
      %v993 = vpop.f32.mrf.mxu0
      %v994 = vadd.f32 0.0, %v993
      %v995 = vpop.f32.mrf.mxu0
      %996 = vmatprep.mubr.f32.mxu0 0.0
      %997 = vmatmul.mubr.f32.gmra.mxu0 %v827
      %v998 = vpop.f32.mrf.mxu0
      %v999 = vadd.f32 0.0, %v998
      %v1000 = vpop.f32.mrf.mxu0
      %1001 = vmatprep.mubr.f32.mxu0 0.0
      %1002 = vmatmul.mubr.f32.gmra.mxu0 %v830
      %v1003 = vpop.f32.mrf.mxu0
      %v1004 = vadd.f32 0.0, %v1003
      %v1005 = vpop.f32.mrf.mxu0
      %1006 = vmatprep.mubr.f32.mxu0 0.0
      %1007 = vmatmul.mubr.f32.gmra.mxu0 %v833
      %v1008 = vpop.f32.mrf.mxu0
      %v1009 = vadd.f32 0.0, %v1008
      %v1010 = vpop.f32.mrf.mxu0
      %1011 = vmatprep.mubr.f32.mxu0 0.0
      %1012 = vmatmul.mubr.f32.gmra.mxu0 %v836
      %v1013 = vpop.f32.mrf.mxu0
      %v1014 = vadd.f32 0.0, %v1013
      %v1015 = vpop.f32.mrf.mxu0
      %1016 = vmatprep.mubr.f32.mxu0 0.0
      %1017 = vmatmul.mubr.f32.gmra.mxu0 %v839
      %v1018 = vpop.f32.mrf.mxu0
      %v1019 = vadd.f32 0.0, %v1018
      %v1020 = vpop.f32.mrf.mxu0
      %1021 = vmatprep.mubr.f32.mxu0 0.0
      %1022 = vmatmul.mubr.f32.gmra.mxu0 %v842
      %v1023 = vpop.f32.mrf.mxu0
      %v1024 = vadd.f32 0.0, %v1023
      %v1025 = vpop.f32.mrf.mxu0
      %1026 = vmatprep.mubr.f32.mxu0 0.0
      %1027 = vmatmul.mubr.f32.gmra.mxu0 %v845
      %v1028 = vpop.f32.mrf.mxu0
      %v1029 = vadd.f32 0.0, %v1028
      %v1030 = vpop.f32.mrf.mxu0
      %1031 = vmatprep.mubr.f32.mxu0 0.0
      %1032 = vmatmul.mubr.f32.gmra.mxu0 %v848
      %v1033 = vpop.f32.mrf.mxu0
      %v1034 = vadd.f32 0.0, %v1033
      %v1035 = vpop.f32.mrf.mxu0
      %1036 = vmatprep.mubr.f32.mxu0 0.0
      %1037 = vmatmul.mubr.f32.gmra.mxu0 %v851
      %v1038 = vpop.f32.mrf.mxu0
      %v1039 = vadd.f32 0.0, %v1038
      %v1040 = vpop.f32.mrf.mxu0
      %1041 = vmatprep.mubr.f32.mxu0 0.0
      %1042 = vmatmul.mubr.f32.gmra.mxu0 %v854
      %v1043 = vpop.f32.mrf.mxu0
      %v1044 = vadd.f32 0.0, %v1043
      %v1045 = vpop.f32.mrf.mxu0
      %1046 = vmatprep.mubr.f32.mxu0 0.0
      %1047 = vmatmul.mubr.f32.gmra.mxu0 %v857
      %v1048 = vpop.f32.mrf.mxu0
      %v1049 = vadd.f32 0.0, %v1048
      %v1050 = vpop.f32.mrf.mxu0
      %1051 = vmatprep.mubr.f32.mxu0 0.0
      %1052 = vmatmul.mubr.f32.gmra.mxu0 %v860
      %v1053 = vpop.f32.mrf.mxu0
      %v1054 = vadd.f32 0.0, %v1053
      %v1055 = vpop.f32.mrf.mxu0
      %1056 = vmatprep.mubr.f32.mxu0 0.0
      %1057 = vmatmul.mubr.f32.gmra.mxu0 %v863
      %v1058 = vpop.f32.mrf.mxu0
      %v1059 = vadd.f32 0.0, %v1058
      %v1060 = vpop.f32.mrf.mxu0
      %1061 = vmatprep.mubr.f32.mxu0 0.0
      %1062 = vmatmul.mubr.f32.gmra.mxu0 %v866
      %v1063 = vpop.f32.mrf.mxu0
      %v1064 = vadd.f32 0.0, %v1063
      %v1065 = vpop.f32.mrf.mxu0
      %1066 = vmatprep.mubr.f32.mxu0 0.0
      %1067 = vmatmul.mubr.f32.gmra.mxu0 %v869
      %v1068 = vpop.f32.mrf.mxu0
      %v1069 = vadd.f32 0.0, %v1068
      %v1070 = vpop.f32.mrf.mxu0
      %1071 = vmatprep.mubr.f32.mxu0 0.0
      %1072 = vmatmul.mubr.f32.gmra.mxu0 %v872
      %v1073 = vpop.f32.mrf.mxu0
      %v1074 = vadd.f32 0.0, %v1073
      %v1075 = vpop.f32.mrf.mxu0
      %1076 = vmatprep.mubr.f32.mxu0 0.0
      %1077 = vmatmul.mubr.f32.gmra.mxu0 %v875
      %v1078 = vpop.f32.mrf.mxu0
      %v1079 = vadd.f32 0.0, %v1078
      %v1080 = vpop.f32.mrf.mxu0
      %1081 = vmatprep.mubr.f32.mxu0 0.0
      %1082 = vmatmul.mubr.f32.gmra.mxu0 %v878
      %v1083 = vpop.f32.mrf.mxu0
      %v1084 = vadd.f32 0.0, %v1083
      %v1085 = vpop.f32.mrf.mxu0
      %1086 = vmatprep.mubr.f32.mxu0 0.0
      %1087 = vmatmul.mubr.f32.gmra.mxu0 %v881
      %v1088 = vpop.f32.mrf.mxu0
      %v1089 = vadd.f32 0.0, %v1088
      %v1090 = vpop.f32.mrf.mxu0
      %1091 = vmatprep.mubr.f32.mxu0 0.0
      %1092 = vmatmul.mubr.f32.gmra.mxu0 %v884
      %v1093 = vpop.f32.mrf.mxu0
      %v1094 = vadd.f32 0.0, %v1093
      %v1095 = vpop.f32.mrf.mxu0
      %1096 = vmatprep.mubr.f32.mxu0 0.0
      %1097 = vmatmul.mubr.f32.gmra.mxu0 %v887
      %v1098 = vpop.f32.mrf.mxu0
      %v1099 = vadd.f32 0.0, %v1098
      %v1100 = vpop.f32.mrf.mxu0
      %1101 = vmatprep.mubr.f32.mxu0 0.0
      %1102 = vmatmul.mubr.f32.gmra.mxu0 %v890
      %v1103 = vpop.f32.mrf.mxu0
      %v1104 = vadd.f32 0.0, %v1103
      %v1105 = vpop.f32.mrf.mxu0
      %1106 = vmatprep.mubr.f32.mxu0 0.0
      %1107 = vmatmul.mubr.f32.gmra.mxu0 %v893
      %v1108 = vpop.f32.mrf.mxu0
      %v1109 = vadd.f32 0.0, %v1108
      %v1110 = vpop.f32.mrf.mxu0
      %1111 = vmatprep.mubr.f32.mxu0 0.0
      %1112 = vmatmul.mubr.f32.gmra.mxu0 %v896
      %v1113 = vpop.f32.mrf.mxu0
      %v1114 = vadd.f32 0.0, %v1113
      %v1115 = vpop.f32.mrf.mxu0
      %1116 = vmatprep.mubr.f32.mxu0 0.0
      %1117 = vmatmul.mubr.f32.gmra.mxu0 %v899
      %v1118 = vpop.f32.mrf.mxu0
      %v1119 = vadd.f32 0.0, %v1118
      %v1120 = vpop.f32.mrf.mxu0
      %1121 = vmatprep.mubr.f32.mxu0 0.0
      %1122 = vmatmul.mubr.f32.gmra.mxu0 %v902
      %v1123 = vpop.f32.mrf.mxu0
      %v1124 = vadd.f32 0.0, %v1123
      %v1125 = vpop.f32.mrf.mxu0
      %1126 = vmatprep.mubr.f32.mxu0 0.0
      %1127 = vmatmul.mubr.f32.gmra.mxu0 %v905
      %v1128 = vpop.f32.mrf.mxu0
      %v1129 = vadd.f32 0.0, %v1128
      %v1130 = vpop.f32.mrf.mxu0
      %1131 = vmatprep.mubr.f32.mxu0 0.0
      %1132 = vmatmul.mubr.f32.gmra.mxu0 %v908
      %v1133 = vpop.f32.mrf.mxu0
      %v1134 = vadd.f32 0.0, %v1133
      %v1135 = vpop.f32.mrf.mxu0
      %1136 = vmatprep.mubr.f32.mxu0 0.0
      %1137 = vmatmul.mubr.f32.gmra.mxu0 %v911
      %v1138 = vpop.f32.mrf.mxu0
      %v1139 = vadd.f32 0.0, %v1138
      %v1140 = vpop.f32.mrf.mxu0
      %1141 = vdwg.mxu0
      %v1143 = vsel %vm378, %v748, 0
      %v1146 = vsel %vm378, %v749, 0
      %v1149 = vsel %vm378, %v750, 0
      %v1152 = vsel %vm378, %v751, 0
      %v1155 = vsel %vm378, %v752, 0
      %v1158 = vsel %vm378, %v753, 0
      %v1161 = vsel %vm378, %v754, 0
      %v1164 = vsel %vm378, %v755, 0
      %v1167 = vsel %vm378, %v756, 0
      %v1170 = vsel %vm378, %v757, 0
      %v1173 = vsel %vm378, %v758, 0
      %v1176 = vsel %vm378, %v759, 0
      %v1179 = vsel %vm378, %v760, 0
      %v1182 = vsel %vm378, %v761, 0
      %v1185 = vsel %vm378, %v762, 0
      %v1188 = vsel %vm378, %v763, 0
      %v1191 = vsel %vm378, %v764, 0
      %v1194 = vsel %vm378, %v765, 0
      %v1197 = vsel %vm378, %v766, 0
      %v1200 = vsel %vm378, %v767, 0
      %v1203 = vsel %vm378, %v768, 0
      %v1206 = vsel %vm378, %v769, 0
      %v1209 = vsel %vm378, %v770, 0
      %v1212 = vsel %vm378, %v771, 0
      %v1215 = vsel %vm378, %v772, 0
      %v1218 = vsel %vm378, %v773, 0
      %v1221 = vsel %vm378, %v774, 0
      %v1224 = vsel %vm378, %v775, 0
      %v1227 = vsel %vm378, %v776, 0
      %v1230 = vsel %vm378, %v777, 0
      %v1233 = vsel %vm378, %v778, 0
      %v1236 = vsel %vm378, %v779, 0
      %v1239 = vsel %vm913, %v781, 0
      %1241 = vmatprep.subr.mxu0 0.0
      %1242 = vmatpush1.msra.mxu0 0.0
      %1243 = vmatprep.subr.mxu0 0.0
      %1244 = vmatpush1.msra.mxu0 0.0
      %1245 = vmatprep.subr.mxu0 0.0
      %1246 = vmatpush1.msra.mxu0 0.0
      %1247 = vmatprep.subr.mxu0 0.0
      %1248 = vmatpush1.msra.mxu0 0.0
      %1249 = vmatprep.subr.mxu0 0.0
      %1250 = vmatpush1.msra.mxu0 0.0
      %1251 = vmatprep.subr.mxu0 0.0
      %1252 = vmatpush1.msra.mxu0 0.0
      %1253 = vmatprep.subr.mxu0 0.0
      %1254 = vmatpush1.msra.mxu0 0.0
      %1255 = vmatprep.subr.mxu0 0.0
      %1256 = vmatpush1.msra.mxu0 0.0
      %1257 = vmatprep.subr.mxu0 0.0
      %1258 = vmatpush1.msra.mxu0 0.0
      %1259 = vmatprep.subr.mxu0 0.0
      %1260 = vmatpush1.msra.mxu0 0.0
      %1261 = vmatprep.subr.mxu0 0.0
      %1262 = vmatpush1.msra.mxu0 0.0
      %1263 = vmatprep.subr.mxu0 0.0
      %1264 = vmatpush1.msra.mxu0 0.0
      %1265 = vmatprep.subr.mxu0 0.0
      %1266 = vmatpush1.msra.mxu0 0.0
      %1267 = vmatprep.subr.mxu0 0.0
      %1268 = vmatpush1.msra.mxu0 0.0
      %1269 = vmatprep.subr.mxu0 0.0
      %1270 = vmatpush1.msra.mxu0 %v1239
      %1271 = vmatprep.subr.mxu0 0.0
      %1272 = vmatpush1.msra.mxu0 %v780
      %1273 = vmatprep.subr.mxu0 0.0
      %1274 = vmatpush2.msra.mxu0 0.0
      %1275 = vmatprep.subr.mxu0 0.0
      %1276 = vmatpush2.msra.mxu0 0.0
      %1277 = vmatprep.subr.mxu0 0.0
      %1278 = vmatpush2.msra.mxu0 0.0
      %1279 = vmatprep.subr.mxu0 0.0
      %1280 = vmatpush2.msra.mxu0 0.0
      %1281 = vmatprep.subr.mxu0 0.0
      %1282 = vmatpush2.msra.mxu0 0.0
      %1283 = vmatprep.subr.mxu0 0.0
      %1284 = vmatpush2.msra.mxu0 0.0
      %1285 = vmatprep.subr.mxu0 0.0
      %1286 = vmatpush2.msra.mxu0 0.0
      %1287 = vmatprep.subr.mxu0 0.0
      %1288 = vmatpush2.msra.mxu0 0.0
      %1289 = vmatprep.subr.mxu0 0.0
      %1290 = vmatpush2.msra.mxu0 0.0
      %1291 = vmatprep.subr.mxu0 0.0
      %1292 = vmatpush2.msra.mxu0 0.0
      %1293 = vmatprep.subr.mxu0 0.0
      %1294 = vmatpush2.msra.mxu0 0.0
      %1295 = vmatprep.subr.mxu0 0.0
      %1296 = vmatpush2.msra.mxu0 0.0
      %1297 = vmatprep.subr.mxu0 0.0
      %1298 = vmatpush2.msra.mxu0 0.0
      %1299 = vmatprep.subr.mxu0 0.0
      %1300 = vmatpush2.msra.mxu0 0.0
      %1301 = vmatprep.subr.mxu0 0.0
      %1302 = vmatpush2.msra.mxu0 0.0
      %1303 = vmatprep.subr.mxu0 0.0
      %1304 = vmatpush2.msra.mxu0 0.0
      %1305 = vmatprep.mubr.f32.mxu0 0.0
      %1306 = vmatmul.mubr.f32.gmra.mxu0 %v1143
      %v1307 = vpop.f32.mrf.mxu0
      %v1308 = vadd.f32 %v984, %v1307
      %v1309 = vpop.f32.mrf.mxu0
      %1310 = vmatprep.mubr.f32.mxu0 0.0
      %1311 = vmatmul.mubr.f32.gmra.mxu0 %v1146
      %v1312 = vpop.f32.mrf.mxu0
      %v1313 = vadd.f32 %v989, %v1312
      %v1314 = vpop.f32.mrf.mxu0
      %1315 = vmatprep.mubr.f32.mxu0 0.0
      %1316 = vmatmul.mubr.f32.gmra.mxu0 %v1149
      %v1317 = vpop.f32.mrf.mxu0
      %v1318 = vadd.f32 %v994, %v1317
      %v1319 = vpop.f32.mrf.mxu0
      %1320 = vmatprep.mubr.f32.mxu0 0.0
      %1321 = vmatmul.mubr.f32.gmra.mxu0 %v1152
      %v1322 = vpop.f32.mrf.mxu0
      %v1323 = vadd.f32 %v999, %v1322
      %v1324 = vpop.f32.mrf.mxu0
      %1325 = vmatprep.mubr.f32.mxu0 0.0
      %1326 = vmatmul.mubr.f32.gmra.mxu0 %v1155
      %v1327 = vpop.f32.mrf.mxu0
      %v1328 = vadd.f32 %v1004, %v1327
      %v1329 = vpop.f32.mrf.mxu0
      %1330 = vmatprep.mubr.f32.mxu0 0.0
      %1331 = vmatmul.mubr.f32.gmra.mxu0 %v1158
      %v1332 = vpop.f32.mrf.mxu0
      %v1333 = vadd.f32 %v1009, %v1332
      %v1334 = vpop.f32.mrf.mxu0
      %1335 = vmatprep.mubr.f32.mxu0 0.0
      %1336 = vmatmul.mubr.f32.gmra.mxu0 %v1161
      %v1337 = vpop.f32.mrf.mxu0
      %v1338 = vadd.f32 %v1014, %v1337
      %v1339 = vpop.f32.mrf.mxu0
      %1340 = vmatprep.mubr.f32.mxu0 0.0
      %1341 = vmatmul.mubr.f32.gmra.mxu0 %v1164
      %v1342 = vpop.f32.mrf.mxu0
      %v1343 = vadd.f32 %v1019, %v1342
      %v1344 = vpop.f32.mrf.mxu0
      %1345 = vmatprep.mubr.f32.mxu0 0.0
      %1346 = vmatmul.mubr.f32.gmra.mxu0 %v1167
      %v1347 = vpop.f32.mrf.mxu0
      %v1348 = vadd.f32 %v1024, %v1347
      %v1349 = vpop.f32.mrf.mxu0
      %1350 = vmatprep.mubr.f32.mxu0 0.0
      %1351 = vmatmul.mubr.f32.gmra.mxu0 %v1170
      %v1352 = vpop.f32.mrf.mxu0
      %v1353 = vadd.f32 %v1029, %v1352
      %v1354 = vpop.f32.mrf.mxu0
      %1355 = vmatprep.mubr.f32.mxu0 0.0
      %1356 = vmatmul.mubr.f32.gmra.mxu0 %v1173
      %v1357 = vpop.f32.mrf.mxu0
      %v1358 = vadd.f32 %v1034, %v1357
      %v1359 = vpop.f32.mrf.mxu0
      %1360 = vmatprep.mubr.f32.mxu0 0.0
      %1361 = vmatmul.mubr.f32.gmra.mxu0 %v1176
      %v1362 = vpop.f32.mrf.mxu0
      %v1363 = vadd.f32 %v1039, %v1362
      %v1364 = vpop.f32.mrf.mxu0
      %1365 = vmatprep.mubr.f32.mxu0 0.0
      %1366 = vmatmul.mubr.f32.gmra.mxu0 %v1179
      %v1367 = vpop.f32.mrf.mxu0
      %v1368 = vadd.f32 %v1044, %v1367
      %v1369 = vpop.f32.mrf.mxu0
      %1370 = vmatprep.mubr.f32.mxu0 0.0
      %1371 = vmatmul.mubr.f32.gmra.mxu0 %v1182
      %v1372 = vpop.f32.mrf.mxu0
      %v1373 = vadd.f32 %v1049, %v1372
      %v1374 = vpop.f32.mrf.mxu0
      %1375 = vmatprep.mubr.f32.mxu0 0.0
      %1376 = vmatmul.mubr.f32.gmra.mxu0 %v1185
      %v1377 = vpop.f32.mrf.mxu0
      %v1378 = vadd.f32 %v1054, %v1377
      %v1379 = vpop.f32.mrf.mxu0
      %1380 = vmatprep.mubr.f32.mxu0 0.0
      %1381 = vmatmul.mubr.f32.gmra.mxu0 %v1188
      %v1382 = vpop.f32.mrf.mxu0
      %v1383 = vadd.f32 %v1059, %v1382
      %v1384 = vpop.f32.mrf.mxu0
      %1385 = vmatprep.mubr.f32.mxu0 0.0
      %1386 = vmatmul.mubr.f32.gmra.mxu0 %v1191
      %v1387 = vpop.f32.mrf.mxu0
      %v1388 = vadd.f32 %v1064, %v1387
      %v1389 = vpop.f32.mrf.mxu0
      %1390 = vmatprep.mubr.f32.mxu0 0.0
      %1391 = vmatmul.mubr.f32.gmra.mxu0 %v1194
      %v1392 = vpop.f32.mrf.mxu0
      %v1393 = vadd.f32 %v1069, %v1392
      %v1394 = vpop.f32.mrf.mxu0
      %1395 = vmatprep.mubr.f32.mxu0 0.0
      %1396 = vmatmul.mubr.f32.gmra.mxu0 %v1197
      %v1397 = vpop.f32.mrf.mxu0
      %v1398 = vadd.f32 %v1074, %v1397
      %v1399 = vpop.f32.mrf.mxu0
      %1400 = vmatprep.mubr.f32.mxu0 0.0
      %1401 = vmatmul.mubr.f32.gmra.mxu0 %v1200
      %v1402 = vpop.f32.mrf.mxu0
      %v1403 = vadd.f32 %v1079, %v1402
      %v1404 = vpop.f32.mrf.mxu0
      %1405 = vmatprep.mubr.f32.mxu0 0.0
      %1406 = vmatmul.mubr.f32.gmra.mxu0 %v1203
      %v1407 = vpop.f32.mrf.mxu0
      %v1408 = vadd.f32 %v1084, %v1407
      %v1409 = vpop.f32.mrf.mxu0
      %1410 = vmatprep.mubr.f32.mxu0 0.0
      %1411 = vmatmul.mubr.f32.gmra.mxu0 %v1206
      %v1412 = vpop.f32.mrf.mxu0
      %v1413 = vadd.f32 %v1089, %v1412
      %v1414 = vpop.f32.mrf.mxu0
      %1415 = vmatprep.mubr.f32.mxu0 0.0
      %1416 = vmatmul.mubr.f32.gmra.mxu0 %v1209
      %v1417 = vpop.f32.mrf.mxu0
      %v1418 = vadd.f32 %v1094, %v1417
      %v1419 = vpop.f32.mrf.mxu0
      %1420 = vmatprep.mubr.f32.mxu0 0.0
      %1421 = vmatmul.mubr.f32.gmra.mxu0 %v1212
      %v1422 = vpop.f32.mrf.mxu0
      %v1423 = vadd.f32 %v1099, %v1422
      %v1424 = vpop.f32.mrf.mxu0
      %1425 = vmatprep.mubr.f32.mxu0 0.0
      %1426 = vmatmul.mubr.f32.gmra.mxu0 %v1215
      %v1427 = vpop.f32.mrf.mxu0
      %v1428 = vadd.f32 %v1104, %v1427
      %v1429 = vpop.f32.mrf.mxu0
      %1430 = vmatprep.mubr.f32.mxu0 0.0
      %1431 = vmatmul.mubr.f32.gmra.mxu0 %v1218
      %v1432 = vpop.f32.mrf.mxu0
      %v1433 = vadd.f32 %v1109, %v1432
      %v1434 = vpop.f32.mrf.mxu0
      %1435 = vmatprep.mubr.f32.mxu0 0.0
      %1436 = vmatmul.mubr.f32.gmra.mxu0 %v1221
      %v1437 = vpop.f32.mrf.mxu0
      %v1438 = vadd.f32 %v1114, %v1437
      %v1439 = vpop.f32.mrf.mxu0
      %1440 = vmatprep.mubr.f32.mxu0 0.0
      %1441 = vmatmul.mubr.f32.gmra.mxu0 %v1224
      %v1442 = vpop.f32.mrf.mxu0
      %v1443 = vadd.f32 %v1119, %v1442
      %v1444 = vpop.f32.mrf.mxu0
      %1445 = vmatprep.mubr.f32.mxu0 0.0
      %1446 = vmatmul.mubr.f32.gmra.mxu0 %v1227
      %v1447 = vpop.f32.mrf.mxu0
      %v1448 = vadd.f32 %v1124, %v1447
      %v1449 = vpop.f32.mrf.mxu0
      %1450 = vmatprep.mubr.f32.mxu0 0.0
      %1451 = vmatmul.mubr.f32.gmra.mxu0 %v1230
      %v1452 = vpop.f32.mrf.mxu0
      %v1453 = vadd.f32 %v1129, %v1452
      %v1454 = vpop.f32.mrf.mxu0
      %1455 = vmatprep.mubr.f32.mxu0 0.0
      %1456 = vmatmul.mubr.f32.gmra.mxu0 %v1233
      %v1457 = vpop.f32.mrf.mxu0
      %v1458 = vadd.f32 %v1134, %v1457
      %v1459 = vpop.f32.mrf.mxu0
      %1460 = vmatprep.mubr.f32.mxu0 0.0
      %1461 = vmatmul.mubr.f32.gmra.mxu0 %v1236
      %v1462 = vpop.f32.mrf.mxu0
      %v1463 = vadd.f32 %v1139, %v1462
      %v1464 = vpop.f32.mrf.mxu0
      %1465 = vdwg.mxu0
      %s1466 = scalar_lea.vmem [#allocation2], 32
      %v1467 = vld [vmem:[%s1466] sm:$0xff]
      %v1468 = vld [vmem:[%s1466 + $0x8] sm:$0xff]
      %v1469 = vld [vmem:[%s1466 + $0x10] sm:$0xff]
      %v1470 = vld [vmem:[%s1466 + $0x18] sm:$0xff]
      %v1471 = vld [vmem:[%s1466 + $0x20] sm:$0xff]
      %v1472 = vld [vmem:[%s1466 + $0x28] sm:$0xff]
      %v1473 = vld [vmem:[%s1466 + $0x30] sm:$0xff]
      %v1474 = vld [vmem:[%s1466 + $0x38] sm:$0xff]
      %v1475 = vld [vmem:[%s1466 + $0x40] sm:$0xff]
      %v1476 = vld [vmem:[%s1466 + $0x48] sm:$0xff]
      %v1477 = vld [vmem:[%s1466 + $0x50] sm:$0xff]
      %v1478 = vld [vmem:[%s1466 + $0x58] sm:$0xff]
      %v1479 = vld [vmem:[%s1466 + $0x60] sm:$0xff]
      %v1480 = vld [vmem:[%s1466 + $0x68] sm:$0xff]
      %v1481 = vld [vmem:[%s1466 + $0x70] sm:$0xff]
      %v1482 = vld [vmem:[%s1466 + $0x78] sm:$0xff]
      %v1483 = vld [vmem:[%s1466 + $0x80] sm:$0xff]
      %v1484 = vld [vmem:[%s1466 + $0x88] sm:$0xff]
      %v1485 = vld [vmem:[%s1466 + $0x90] sm:$0xff]
      %v1486 = vld [vmem:[%s1466 + $0x98] sm:$0xff]
      %v1487 = vld [vmem:[%s1466 + $0xa0] sm:$0xff]
      %v1488 = vld [vmem:[%s1466 + $0xa8] sm:$0xff]
      %v1489 = vld [vmem:[%s1466 + $0xb0] sm:$0xff]
      %v1490 = vld [vmem:[%s1466 + $0xb8] sm:$0xff]
      %v1491 = vld [vmem:[%s1466 + $0xc0] sm:$0xff]
      %v1492 = vld [vmem:[%s1466 + $0xc8] sm:$0xff]
      %v1493 = vld [vmem:[%s1466 + $0xd0] sm:$0xff]
      %v1494 = vld [vmem:[%s1466 + $0xd8] sm:$0xff]
      %v1495 = vld [vmem:[%s1466 + $0xe0] sm:$0xff]
      %v1496 = vld [vmem:[%s1466 + $0xe8] sm:$0xff]
      %v1497 = vld [vmem:[%s1466 + $0xf0] sm:$0xff]
      %v1498 = vld [vmem:[%s1466 + $0xf8] sm:$0xff]
      %s1499 = scalar_lea.vmem %s3, 32
      %v1500 = vld [vmem:[%s1499] sm:$0xff]
      %v1501 = vld [vmem:[%s1499 + $0x8] sm:$0xf]
      %v1503 = vsel %vm378, %v1467, 0
      %v1506 = vsel %vm378, %v1468, 0
      %v1509 = vsel %vm378, %v1469, 0
      %v1512 = vsel %vm378, %v1470, 0
      %v1515 = vsel %vm378, %v1471, 0
      %v1518 = vsel %vm378, %v1472, 0
      %v1521 = vsel %vm378, %v1473, 0
      %v1524 = vsel %vm378, %v1474, 0
      %v1527 = vsel %vm378, %v1475, 0
      %v1530 = vsel %vm378, %v1476, 0
      %v1533 = vsel %vm378, %v1477, 0
      %v1536 = vsel %vm378, %v1478, 0
      %v1539 = vsel %vm378, %v1479, 0
      %v1542 = vsel %vm378, %v1480, 0
      %v1545 = vsel %vm378, %v1481, 0
      %v1548 = vsel %vm378, %v1482, 0
      %v1551 = vsel %vm378, %v1483, 0
      %v1554 = vsel %vm378, %v1484, 0
      %v1557 = vsel %vm378, %v1485, 0
      %v1560 = vsel %vm378, %v1486, 0
      %v1563 = vsel %vm378, %v1487, 0
      %v1566 = vsel %vm378, %v1488, 0
      %v1569 = vsel %vm378, %v1489, 0
      %v1572 = vsel %vm378, %v1490, 0
      %v1575 = vsel %vm378, %v1491, 0
      %v1578 = vsel %vm378, %v1492, 0
      %v1581 = vsel %vm378, %v1493, 0
      %v1584 = vsel %vm378, %v1494, 0
      %v1587 = vsel %vm378, %v1495, 0
      %v1590 = vsel %vm378, %v1496, 0
      %v1593 = vsel %vm378, %v1497, 0
      %v1596 = vsel %vm378, %v1498, 0
      %v1599 = vsel %vm913, %v1501, 0
      %1601 = vmatprep.subr.mxu0 0.0
      %1602 = vmatpush1.msra.mxu0 0.0
      %1603 = vmatprep.subr.mxu0 0.0
      %1604 = vmatpush1.msra.mxu0 0.0
      %1605 = vmatprep.subr.mxu0 0.0
      %1606 = vmatpush1.msra.mxu0 0.0
      %1607 = vmatprep.subr.mxu0 0.0
      %1608 = vmatpush1.msra.mxu0 0.0
      %1609 = vmatprep.subr.mxu0 0.0
      %1610 = vmatpush1.msra.mxu0 0.0
      %1611 = vmatprep.subr.mxu0 0.0
      %1612 = vmatpush1.msra.mxu0 0.0
      %1613 = vmatprep.subr.mxu0 0.0
      %1614 = vmatpush1.msra.mxu0 0.0
      %1615 = vmatprep.subr.mxu0 0.0
      %1616 = vmatpush1.msra.mxu0 0.0
      %1617 = vmatprep.subr.mxu0 0.0
      %1618 = vmatpush1.msra.mxu0 0.0
      %1619 = vmatprep.subr.mxu0 0.0
      %1620 = vmatpush1.msra.mxu0 0.0
      %1621 = vmatprep.subr.mxu0 0.0
      %1622 = vmatpush1.msra.mxu0 0.0
      %1623 = vmatprep.subr.mxu0 0.0
      %1624 = vmatpush1.msra.mxu0 0.0
      %1625 = vmatprep.subr.mxu0 0.0
      %1626 = vmatpush1.msra.mxu0 0.0
      %1627 = vmatprep.subr.mxu0 0.0
      %1628 = vmatpush1.msra.mxu0 0.0
      %1629 = vmatprep.subr.mxu0 0.0
      %1630 = vmatpush1.msra.mxu0 %v1599
      %1631 = vmatprep.subr.mxu0 0.0
      %1632 = vmatpush1.msra.mxu0 %v1500
      %1633 = vmatprep.subr.mxu0 0.0
      %1634 = vmatpush2.msra.mxu0 0.0
      %1635 = vmatprep.subr.mxu0 0.0
      %1636 = vmatpush2.msra.mxu0 0.0
      %1637 = vmatprep.subr.mxu0 0.0
      %1638 = vmatpush2.msra.mxu0 0.0
      %1639 = vmatprep.subr.mxu0 0.0
      %1640 = vmatpush2.msra.mxu0 0.0
      %1641 = vmatprep.subr.mxu0 0.0
      %1642 = vmatpush2.msra.mxu0 0.0
      %1643 = vmatprep.subr.mxu0 0.0
      %1644 = vmatpush2.msra.mxu0 0.0
      %1645 = vmatprep.subr.mxu0 0.0
      %1646 = vmatpush2.msra.mxu0 0.0
      %1647 = vmatprep.subr.mxu0 0.0
      %1648 = vmatpush2.msra.mxu0 0.0
      %1649 = vmatprep.subr.mxu0 0.0
      %1650 = vmatpush2.msra.mxu0 0.0
      %1651 = vmatprep.subr.mxu0 0.0
      %1652 = vmatpush2.msra.mxu0 0.0
      %1653 = vmatprep.subr.mxu0 0.0
      %1654 = vmatpush2.msra.mxu0 0.0
      %1655 = vmatprep.subr.mxu0 0.0
      %1656 = vmatpush2.msra.mxu0 0.0
      %1657 = vmatprep.subr.mxu0 0.0
      %1658 = vmatpush2.msra.mxu0 0.0
      %1659 = vmatprep.subr.mxu0 0.0
      %1660 = vmatpush2.msra.mxu0 0.0
      %1661 = vmatprep.subr.mxu0 0.0
      %1662 = vmatpush2.msra.mxu0 0.0
      %1663 = vmatprep.subr.mxu0 0.0
      %1664 = vmatpush2.msra.mxu0 0.0
      %1665 = vmatprep.mubr.f32.mxu0 0.0
      %1666 = vmatmul.mubr.f32.gmra.mxu0 %v1503
      %v1667 = vpop.f32.mrf.mxu0
      %v1668 = vadd.f32 0.0, %v1667
      %v1669 = vpop.f32.mrf.mxu0
      %1670 = vmatprep.mubr.f32.mxu0 0.0
      %1671 = vmatmul.mubr.f32.gmra.mxu0 %v1506
      %v1672 = vpop.f32.mrf.mxu0
      %v1673 = vadd.f32 0.0, %v1672
      %v1674 = vpop.f32.mrf.mxu0
      %1675 = vmatprep.mubr.f32.mxu0 0.0
      %1676 = vmatmul.mubr.f32.gmra.mxu0 %v1509
      %v1677 = vpop.f32.mrf.mxu0
      %v1678 = vadd.f32 0.0, %v1677
      %v1679 = vpop.f32.mrf.mxu0
      %1680 = vmatprep.mubr.f32.mxu0 0.0
      %1681 = vmatmul.mubr.f32.gmra.mxu0 %v1512
      %v1682 = vpop.f32.mrf.mxu0
      %v1683 = vadd.f32 0.0, %v1682
      %v1684 = vpop.f32.mrf.mxu0
      %1685 = vmatprep.mubr.f32.mxu0 0.0
      %1686 = vmatmul.mubr.f32.gmra.mxu0 %v1515
      %v1687 = vpop.f32.mrf.mxu0
      %v1688 = vadd.f32 0.0, %v1687
      %v1689 = vpop.f32.mrf.mxu0
      %1690 = vmatprep.mubr.f32.mxu0 0.0
      %1691 = vmatmul.mubr.f32.gmra.mxu0 %v1518
      %v1692 = vpop.f32.mrf.mxu0
      %v1693 = vadd.f32 0.0, %v1692
      %v1694 = vpop.f32.mrf.mxu0
      %1695 = vmatprep.mubr.f32.mxu0 0.0
      %1696 = vmatmul.mubr.f32.gmra.mxu0 %v1521
      %v1697 = vpop.f32.mrf.mxu0
      %v1698 = vadd.f32 0.0, %v1697
      %v1699 = vpop.f32.mrf.mxu0
      %1700 = vmatprep.mubr.f32.mxu0 0.0
      %1701 = vmatmul.mubr.f32.gmra.mxu0 %v1524
      %v1702 = vpop.f32.mrf.mxu0
      %v1703 = vadd.f32 0.0, %v1702
      %v1704 = vpop.f32.mrf.mxu0
      %1705 = vmatprep.mubr.f32.mxu0 0.0
      %1706 = vmatmul.mubr.f32.gmra.mxu0 %v1527
      %v1707 = vpop.f32.mrf.mxu0
      %v1708 = vadd.f32 0.0, %v1707
      %v1709 = vpop.f32.mrf.mxu0
      %1710 = vmatprep.mubr.f32.mxu0 0.0
      %1711 = vmatmul.mubr.f32.gmra.mxu0 %v1530
      %v1712 = vpop.f32.mrf.mxu0
      %v1713 = vadd.f32 0.0, %v1712
      %v1714 = vpop.f32.mrf.mxu0
      %1715 = vmatprep.mubr.f32.mxu0 0.0
      %1716 = vmatmul.mubr.f32.gmra.mxu0 %v1533
      %v1717 = vpop.f32.mrf.mxu0
      %v1718 = vadd.f32 0.0, %v1717
      %v1719 = vpop.f32.mrf.mxu0
      %1720 = vmatprep.mubr.f32.mxu0 0.0
      %1721 = vmatmul.mubr.f32.gmra.mxu0 %v1536
      %v1722 = vpop.f32.mrf.mxu0
      %v1723 = vadd.f32 0.0, %v1722
      %v1724 = vpop.f32.mrf.mxu0
      %1725 = vmatprep.mubr.f32.mxu0 0.0
      %1726 = vmatmul.mubr.f32.gmra.mxu0 %v1539
      %v1727 = vpop.f32.mrf.mxu0
      %v1728 = vadd.f32 0.0, %v1727
      %v1729 = vpop.f32.mrf.mxu0
      %1730 = vmatprep.mubr.f32.mxu0 0.0
      %1731 = vmatmul.mubr.f32.gmra.mxu0 %v1542
      %v1732 = vpop.f32.mrf.mxu0
      %v1733 = vadd.f32 0.0, %v1732
      %v1734 = vpop.f32.mrf.mxu0
      %1735 = vmatprep.mubr.f32.mxu0 0.0
      %1736 = vmatmul.mubr.f32.gmra.mxu0 %v1545
      %v1737 = vpop.f32.mrf.mxu0
      %v1738 = vadd.f32 0.0, %v1737
      %v1739 = vpop.f32.mrf.mxu0
      %1740 = vmatprep.mubr.f32.mxu0 0.0
      %1741 = vmatmul.mubr.f32.gmra.mxu0 %v1548
      %v1742 = vpop.f32.mrf.mxu0
      %v1743 = vadd.f32 0.0, %v1742
      %v1744 = vpop.f32.mrf.mxu0
      %1745 = vmatprep.mubr.f32.mxu0 0.0
      %1746 = vmatmul.mubr.f32.gmra.mxu0 %v1551
      %v1747 = vpop.f32.mrf.mxu0
      %v1748 = vadd.f32 0.0, %v1747
      %v1749 = vpop.f32.mrf.mxu0
      %1750 = vmatprep.mubr.f32.mxu0 0.0
      %1751 = vmatmul.mubr.f32.gmra.mxu0 %v1554
      %v1752 = vpop.f32.mrf.mxu0
      %v1753 = vadd.f32 0.0, %v1752
      %v1754 = vpop.f32.mrf.mxu0
      %1755 = vmatprep.mubr.f32.mxu0 0.0
      %1756 = vmatmul.mubr.f32.gmra.mxu0 %v1557
      %v1757 = vpop.f32.mrf.mxu0
      %v1758 = vadd.f32 0.0, %v1757
      %v1759 = vpop.f32.mrf.mxu0
      %1760 = vmatprep.mubr.f32.mxu0 0.0
      %1761 = vmatmul.mubr.f32.gmra.mxu0 %v1560
      %v1762 = vpop.f32.mrf.mxu0
      %v1763 = vadd.f32 0.0, %v1762
      %v1764 = vpop.f32.mrf.mxu0
      %1765 = vmatprep.mubr.f32.mxu0 0.0
      %1766 = vmatmul.mubr.f32.gmra.mxu0 %v1563
      %v1767 = vpop.f32.mrf.mxu0
      %v1768 = vadd.f32 0.0, %v1767
      %v1769 = vpop.f32.mrf.mxu0
      %1770 = vmatprep.mubr.f32.mxu0 0.0
      %1771 = vmatmul.mubr.f32.gmra.mxu0 %v1566
      %v1772 = vpop.f32.mrf.mxu0
      %v1773 = vadd.f32 0.0, %v1772
      %v1774 = vpop.f32.mrf.mxu0
      %1775 = vmatprep.mubr.f32.mxu0 0.0
      %1776 = vmatmul.mubr.f32.gmra.mxu0 %v1569
      %v1777 = vpop.f32.mrf.mxu0
      %v1778 = vadd.f32 0.0, %v1777
      %v1779 = vpop.f32.mrf.mxu0
      %1780 = vmatprep.mubr.f32.mxu0 0.0
      %1781 = vmatmul.mubr.f32.gmra.mxu0 %v1572
      %v1782 = vpop.f32.mrf.mxu0
      %v1783 = vadd.f32 0.0, %v1782
      %v1784 = vpop.f32.mrf.mxu0
      %1785 = vmatprep.mubr.f32.mxu0 0.0
      %1786 = vmatmul.mubr.f32.gmra.mxu0 %v1575
      %v1787 = vpop.f32.mrf.mxu0
      %v1788 = vadd.f32 0.0, %v1787
      %v1789 = vpop.f32.mrf.mxu0
      %1790 = vmatprep.mubr.f32.mxu0 0.0
      %1791 = vmatmul.mubr.f32.gmra.mxu0 %v1578
      %v1792 = vpop.f32.mrf.mxu0
      %v1793 = vadd.f32 0.0, %v1792
      %v1794 = vpop.f32.mrf.mxu0
      %1795 = vmatprep.mubr.f32.mxu0 0.0
      %1796 = vmatmul.mubr.f32.gmra.mxu0 %v1581
      %v1797 = vpop.f32.mrf.mxu0
      %v1798 = vadd.f32 0.0, %v1797
      %v1799 = vpop.f32.mrf.mxu0
      %1800 = vmatprep.mubr.f32.mxu0 0.0
      %1801 = vmatmul.mubr.f32.gmra.mxu0 %v1584
      %v1802 = vpop.f32.mrf.mxu0
      %v1803 = vadd.f32 0.0, %v1802
      %v1804 = vpop.f32.mrf.mxu0
      %1805 = vmatprep.mubr.f32.mxu0 0.0
      %1806 = vmatmul.mubr.f32.gmra.mxu0 %v1587
      %v1807 = vpop.f32.mrf.mxu0
      %v1808 = vadd.f32 0.0, %v1807
      %v1809 = vpop.f32.mrf.mxu0
      %1810 = vmatprep.mubr.f32.mxu0 0.0
      %1811 = vmatmul.mubr.f32.gmra.mxu0 %v1590
      %v1812 = vpop.f32.mrf.mxu0
      %v1813 = vadd.f32 0.0, %v1812
      %v1814 = vpop.f32.mrf.mxu0
      %1815 = vmatprep.mubr.f32.mxu0 0.0
      %1816 = vmatmul.mubr.f32.gmra.mxu0 %v1593
      %v1817 = vpop.f32.mrf.mxu0
      %v1818 = vadd.f32 0.0, %v1817
      %v1819 = vpop.f32.mrf.mxu0
      %1820 = vmatprep.mubr.f32.mxu0 0.0
      %1821 = vmatmul.mubr.f32.gmra.mxu0 %v1596
      %v1822 = vpop.f32.mrf.mxu0
      %v1823 = vadd.f32 0.0, %v1822
      %v1824 = vpop.f32.mrf.mxu0
      %1825 = vdwg.mxu0
      %v1826 = vadd.f32 %v1308, %v1668
      %v1827 = vadd.f32 %v1313, %v1673
      %v1828 = vadd.f32 %v1318, %v1678
      %v1829 = vadd.f32 %v1323, %v1683
      %v1830 = vadd.f32 %v1328, %v1688
      %v1831 = vadd.f32 %v1333, %v1693
      %v1832 = vadd.f32 %v1338, %v1698
      %v1833 = vadd.f32 %v1343, %v1703
      %v1834 = vadd.f32 %v1348, %v1708
      %v1835 = vadd.f32 %v1353, %v1713
      %v1836 = vadd.f32 %v1358, %v1718
      %v1837 = vadd.f32 %v1363, %v1723
      %v1838 = vadd.f32 %v1368, %v1728
      %v1839 = vadd.f32 %v1373, %v1733
      %v1840 = vadd.f32 %v1378, %v1738
      %v1841 = vadd.f32 %v1383, %v1743
      %v1842 = vadd.f32 %v1388, %v1748
      %v1843 = vadd.f32 %v1393, %v1753
      %v1844 = vadd.f32 %v1398, %v1758
      %v1845 = vadd.f32 %v1403, %v1763
      %v1846 = vadd.f32 %v1408, %v1768
      %v1847 = vadd.f32 %v1413, %v1773
      %v1848 = vadd.f32 %v1418, %v1778
      %v1849 = vadd.f32 %v1423, %v1783
      %v1850 = vadd.f32 %v1428, %v1788
      %v1851 = vadd.f32 %v1433, %v1793
      %v1852 = vadd.f32 %v1438, %v1798
      %v1853 = vadd.f32 %v1443, %v1803
      %v1854 = vadd.f32 %v1448, %v1808
      %v1855 = vadd.f32 %v1453, %v1813
      %v1856 = vadd.f32 %v1458, %v1818
      %v1857 = vadd.f32 %v1463, %v1823
      %1858 = vst.msk [vmem:[%s231] sm:$0xff] %vm423, %v1826
      %1859 = vst.msk [vmem:[%s231 + $0x8] sm:$0xff] %vm423, %v1827
      %1860 = vst.msk [vmem:[%s231 + $0x10] sm:$0xff] %vm423, %v1828
      %1861 = vst.msk [vmem:[%s231 + $0x18] sm:$0xff] %vm423, %v1829
      %1862 = vst.msk [vmem:[%s231 + $0x20] sm:$0xff] %vm423, %v1830
      %1863 = vst.msk [vmem:[%s231 + $0x28] sm:$0xff] %vm423, %v1831
      %1864 = vst.msk [vmem:[%s231 + $0x30] sm:$0xff] %vm423, %v1832
      %1865 = vst.msk [vmem:[%s231 + $0x38] sm:$0xff] %vm423, %v1833
      %1866 = vst.msk [vmem:[%s231 + $0x40] sm:$0xff] %vm423, %v1834
      %1867 = vst.msk [vmem:[%s231 + $0x48] sm:$0xff] %vm423, %v1835
      %1868 = vst.msk [vmem:[%s231 + $0x50] sm:$0xff] %vm423, %v1836
      %1869 = vst.msk [vmem:[%s231 + $0x58] sm:$0xff] %vm423, %v1837
      %1870 = vst.msk [vmem:[%s231 + $0x60] sm:$0xff] %vm423, %v1838
      %1871 = vst.msk [vmem:[%s231 + $0x68] sm:$0xff] %vm423, %v1839
      %1872 = vst.msk [vmem:[%s231 + $0x70] sm:$0xff] %vm423, %v1840
      %1873 = vst.msk [vmem:[%s231 + $0x78] sm:$0xff] %vm423, %v1841
      %1874 = vst.msk [vmem:[%s231 + $0x80] sm:$0xff] %vm423, %v1842
      %1875 = vst.msk [vmem:[%s231 + $0x88] sm:$0xff] %vm423, %v1843
      %1876 = vst.msk [vmem:[%s231 + $0x90] sm:$0xff] %vm423, %v1844
      %1877 = vst.msk [vmem:[%s231 + $0x98] sm:$0xff] %vm423, %v1845
      %1878 = vst.msk [vmem:[%s231 + $0xa0] sm:$0xff] %vm423, %v1846
      %1879 = vst.msk [vmem:[%s231 + $0xa8] sm:$0xff] %vm423, %v1847
      %1880 = vst.msk [vmem:[%s231 + $0xb0] sm:$0xff] %vm423, %v1848
      %1881 = vst.msk [vmem:[%s231 + $0xb8] sm:$0xff] %vm423, %v1849
      %1882 = vst.msk [vmem:[%s231 + $0xc0] sm:$0xff] %vm423, %v1850
      %1883 = vst.msk [vmem:[%s231 + $0xc8] sm:$0xff] %vm423, %v1851
      %1884 = vst.msk [vmem:[%s231 + $0xd0] sm:$0xff] %vm423, %v1852
      %1885 = vst.msk [vmem:[%s231 + $0xd8] sm:$0xff] %vm423, %v1853
      %1886 = vst.msk [vmem:[%s231 + $0xe0] sm:$0xff] %vm423, %v1854
      %1887 = vst.msk [vmem:[%s231 + $0xe8] sm:$0xff] %vm423, %v1855
      %1888 = vst.msk [vmem:[%s231 + $0xf0] sm:$0xff] %vm423, %v1856
      %1889 = vst.msk [vmem:[%s231 + $0xf8] sm:$0xff] %vm423, %v1857
      %v1890 = vsel %vm423, %v1826, 0.0
      %v1891 = vsel %vm423, %v1827, 0.0
      %v1892 = vadd.f32 %v1890, %v1891
      %v1893 = vsel %vm423, %v1828, 0.0
      %v1894 = vadd.f32 %v1892, %v1893
      %v1895 = vsel %vm423, %v1829, 0.0
      %v1896 = vadd.f32 %v1894, %v1895
      %v1897 = vsel %vm423, %v1830, 0.0
      %v1898 = vadd.f32 %v1896, %v1897
      %v1899 = vsel %vm423, %v1831, 0.0
      %v1900 = vadd.f32 %v1898, %v1899
      %v1901 = vsel %vm423, %v1832, 0.0
      %v1902 = vadd.f32 %v1900, %v1901
      %v1903 = vsel %vm423, %v1833, 0.0
      %v1904 = vadd.f32 %v1902, %v1903
      %v1905 = vsel %vm423, %v1834, 0.0
      %v1906 = vadd.f32 %v1904, %v1905
      %v1907 = vsel %vm423, %v1835, 0.0
      %v1908 = vadd.f32 %v1906, %v1907
      %v1909 = vsel %vm423, %v1836, 0.0
      %v1910 = vadd.f32 %v1908, %v1909
      %v1911 = vsel %vm423, %v1837, 0.0
      %v1912 = vadd.f32 %v1910, %v1911
      %v1913 = vsel %vm423, %v1838, 0.0
      %v1914 = vadd.f32 %v1912, %v1913
      %v1915 = vsel %vm423, %v1839, 0.0
      %v1916 = vadd.f32 %v1914, %v1915
      %v1917 = vsel %vm423, %v1840, 0.0
      %v1918 = vadd.f32 %v1916, %v1917
      %v1919 = vsel %vm423, %v1841, 0.0
      %v1920 = vadd.f32 %v1918, %v1919
      %v1921 = vsel %vm423, %v1842, 0.0
      %v1922 = vadd.f32 %v1920, %v1921
      %v1923 = vsel %vm423, %v1843, 0.0
      %v1924 = vadd.f32 %v1922, %v1923
      %v1925 = vsel %vm423, %v1844, 0.0
      %v1926 = vadd.f32 %v1924, %v1925
      %v1927 = vsel %vm423, %v1845, 0.0
      %v1928 = vadd.f32 %v1926, %v1927
      %v1929 = vsel %vm423, %v1846, 0.0
      %v1930 = vadd.f32 %v1928, %v1929
      %v1931 = vsel %vm423, %v1847, 0.0
      %v1932 = vadd.f32 %v1930, %v1931
      %v1933 = vsel %vm423, %v1848, 0.0
      %v1934 = vadd.f32 %v1932, %v1933
      %v1935 = vsel %vm423, %v1849, 0.0
      %v1936 = vadd.f32 %v1934, %v1935
      %v1937 = vsel %vm423, %v1850, 0.0
      %v1938 = vadd.f32 %v1936, %v1937
      %v1939 = vsel %vm423, %v1851, 0.0
      %v1940 = vadd.f32 %v1938, %v1939
      %v1941 = vsel %vm423, %v1852, 0.0
      %v1942 = vadd.f32 %v1940, %v1941
      %v1943 = vsel %vm423, %v1853, 0.0
      %v1944 = vadd.f32 %v1942, %v1943
      %v1945 = vsel %vm423, %v1854, 0.0
      %v1946 = vadd.f32 %v1944, %v1945
      %v1947 = vsel %vm423, %v1855, 0.0
      %v1948 = vadd.f32 %v1946, %v1947
      %v1949 = vsel %vm423, %v1856, 0.0
      %v1950 = vadd.f32 %v1948, %v1949
      %v1951 = vsel %vm423, %v1857, 0.0
      %v1952 = vadd.f32 %v1950, %v1951
      %v1953 = vrot.slane %v1952, 4
      %v1954 = vadd.f32 %v1952, %v1953
      %v1955 = vrot.slane %v1954, 2
      %v1956 = vadd.f32 %v1954, %v1955
      %v1957 = vrot.slane %v1956, 1
      %v1958 = vadd.f32 %v1956, %v1957
      %1959 = vst.msk [vmem:[%s235] sm:$0x1] %vm384, %v1958
      %v1960 = vmul.f32 %v1826, %v1826
      %v1961 = vmul.f32 %v1827, %v1827
      %v1962 = vmul.f32 %v1828, %v1828
      %v1963 = vmul.f32 %v1829, %v1829
      %v1964 = vmul.f32 %v1830, %v1830
      %v1965 = vmul.f32 %v1831, %v1831
      %v1966 = vmul.f32 %v1832, %v1832
      %v1967 = vmul.f32 %v1833, %v1833
      %v1968 = vmul.f32 %v1834, %v1834
      %v1969 = vmul.f32 %v1835, %v1835
      %v1970 = vmul.f32 %v1836, %v1836
      %v1971 = vmul.f32 %v1837, %v1837
      %v1972 = vmul.f32 %v1838, %v1838
      %v1973 = vmul.f32 %v1839, %v1839
      %v1974 = vmul.f32 %v1840, %v1840
      %v1975 = vmul.f32 %v1841, %v1841
      %v1976 = vmul.f32 %v1842, %v1842
      %v1977 = vmul.f32 %v1843, %v1843
      %v1978 = vmul.f32 %v1844, %v1844
      %v1979 = vmul.f32 %v1845, %v1845
      %v1980 = vmul.f32 %v1846, %v1846
      %v1981 = vmul.f32 %v1847, %v1847
      %v1982 = vmul.f32 %v1848, %v1848
      %v1983 = vmul.f32 %v1849, %v1849
      %v1984 = vmul.f32 %v1850, %v1850
      %v1985 = vmul.f32 %v1851, %v1851
      %v1986 = vmul.f32 %v1852, %v1852
      %v1987 = vmul.f32 %v1853, %v1853
      %v1988 = vmul.f32 %v1854, %v1854
      %v1989 = vmul.f32 %v1855, %v1855
      %v1990 = vmul.f32 %v1856, %v1856
      %v1991 = vmul.f32 %v1857, %v1857
      %v1992 = vsel %vm423, %v1960, 0.0
      %v1993 = vsel %vm423, %v1961, 0.0
      %v1994 = vadd.f32 %v1992, %v1993
      %v1995 = vsel %vm423, %v1962, 0.0
      %v1996 = vadd.f32 %v1994, %v1995
      %v1997 = vsel %vm423, %v1963, 0.0
      %v1998 = vadd.f32 %v1996, %v1997
      %v1999 = vsel %vm423, %v1964, 0.0
      %v2000 = vadd.f32 %v1998, %v1999
      %v2001 = vsel %vm423, %v1965, 0.0
      %v2002 = vadd.f32 %v2000, %v2001
      %v2003 = vsel %vm423, %v1966, 0.0
      %v2004 = vadd.f32 %v2002, %v2003
      %v2005 = vsel %vm423, %v1967, 0.0
      %v2006 = vadd.f32 %v2004, %v2005
      %v2007 = vsel %vm423, %v1968, 0.0
      %v2008 = vadd.f32 %v2006, %v2007
      %v2009 = vsel %vm423, %v1969, 0.0
      %v2010 = vadd.f32 %v2008, %v2009
      %v2011 = vsel %vm423, %v1970, 0.0
      %v2012 = vadd.f32 %v2010, %v2011
      %v2013 = vsel %vm423, %v1971, 0.0
      %v2014 = vadd.f32 %v2012, %v2013
      %v2015 = vsel %vm423, %v1972, 0.0
      %v2016 = vadd.f32 %v2014, %v2015
      %v2017 = vsel %vm423, %v1973, 0.0
      %v2018 = vadd.f32 %v2016, %v2017
      %v2019 = vsel %vm423, %v1974, 0.0
      %v2020 = vadd.f32 %v2018, %v2019
      %v2021 = vsel %vm423, %v1975, 0.0
      %v2022 = vadd.f32 %v2020, %v2021
      %v2023 = vsel %vm423, %v1976, 0.0
      %v2024 = vadd.f32 %v2022, %v2023
      %v2025 = vsel %vm423, %v1977, 0.0
      %v2026 = vadd.f32 %v2024, %v2025
      %v2027 = vsel %vm423, %v1978, 0.0
      %v2028 = vadd.f32 %v2026, %v2027
      %v2029 = vsel %vm423, %v1979, 0.0
      %v2030 = vadd.f32 %v2028, %v2029
      %v2031 = vsel %vm423, %v1980, 0.0
      %v2032 = vadd.f32 %v2030, %v2031
      %v2033 = vsel %vm423, %v1981, 0.0
      %v2034 = vadd.f32 %v2032, %v2033
      %v2035 = vsel %vm423, %v1982, 0.0
      %v2036 = vadd.f32 %v2034, %v2035
      %v2037 = vsel %vm423, %v1983, 0.0
      %v2038 = vadd.f32 %v2036, %v2037
      %v2039 = vsel %vm423, %v1984, 0.0
      %v2040 = vadd.f32 %v2038, %v2039
      %v2041 = vsel %vm423, %v1985, 0.0
      %v2042 = vadd.f32 %v2040, %v2041
      %v2043 = vsel %vm423, %v1986, 0.0
      %v2044 = vadd.f32 %v2042, %v2043
      %v2045 = vsel %vm423, %v1987, 0.0
      %v2046 = vadd.f32 %v2044, %v2045
      %v2047 = vsel %vm423, %v1988, 0.0
      %v2048 = vadd.f32 %v2046, %v2047
      %v2049 = vsel %vm423, %v1989, 0.0
      %v2050 = vadd.f32 %v2048, %v2049
      %v2051 = vsel %vm423, %v1990, 0.0
      %v2052 = vadd.f32 %v2050, %v2051
      %v2053 = vsel %vm423, %v1991, 0.0
      %v2054 = vadd.f32 %v2052, %v2053
      %v2055 = vrot.slane %v2054, 4
      %v2056 = vadd.f32 %v2054, %v2055
      %v2057 = vrot.slane %v2056, 2
      %v2058 = vadd.f32 %v2056, %v2057
      %v2059 = vrot.slane %v2058, 1
      %v2060 = vadd.f32 %v2058, %v2059
      %2061 = vst.msk [vmem:[%s235 + $0x1] sm:$0x1] %vm384, %v2060
      %p2062 = scmp.lt.s32.totalorder %s17, 1
      %s2063 = scalar_select %p2062, %s17, 1
      %s2064 = smul.addr %s2063, 32
      %s2065 = smul.addr %s2064, 8
      %s2066 = scalar_lea.vmem %s4, %s2065
      %p2067 = scmp.lt.s32.totalorder %s17, 1
      %s2068 = scalar_select %p2067, %s17, 1
      %s2069 = smul.addr %s2068, 2
      %s2070 = scalar_lea.vmem %s5, %s2069
      // Predicated region
      $region37: #{basic_block_forward.4} parent=35 // pred_check
        %p2071 = pneg %p124
      $region38: #{basic_block_forward.4} parent=35 // pred_check_branch
        %2073 = sbr.rel (%p2071) target = $region40
      $region39: #{basic_block_forward.4} parent=35 // pred_region
        _
      $region40: #{basic_block_forward.4} parent=35 // pred_fallthru
        _
      // Predicated region
      $region41: #{basic_block_forward.4} parent=35 // pred_check
        %p2074 = pneg %p150
      $region42: #{basic_block_forward.4} parent=35 // pred_check_branch
        %2076 = sbr.rel (%p2074) target = $region44
      $region43: #{basic_block_forward.4} parent=35 // pred_region
        _
      $region44: #{basic_block_forward.4} parent=35 // pred_fallthru
        _
    $region36: #{basic_block_forward.4} parent=5 // pred_fallthru
      _
    %p2077 = scmp.le.s32.totalorder 2, %s12
    // Predicated region
    $region45: #{basic_block_forward.4} parent=5 // pred_check
      %p2078 = pneg %p2077
    $region46: #{basic_block_forward.4} parent=5 // pred_check_branch
      %2080 = sbr.rel (%p2078) target = $region48
    $region47: #{basic_block_forward.4} parent=5 // pred_region
      %s2081 = ssub.s32 %s12, 2
      // Predicated region
      $region49: #{basic_block_forward.4} parent=47 // pred_check
        %p2082 = pneg %p130
      $region50: #{basic_block_forward.4} parent=47 // pred_check_branch
        %2084 = sbr.rel (%p2082) target = $region52
      $region51: #{basic_block_forward.4} parent=47 // pred_region
        %p2085 = scmp.lt.s32.totalorder %s18, 1
        %s2086 = scalar_select %p2085, %s18, 1
        %s2087 = smul.addr %s2086, 32
        %s2088 = smul.addr %s2087, 8
        %s2089 = scalar_lea.vmem %s4, %s2088
      $region52: #{basic_block_forward.4} parent=47 // pred_fallthru
        _
      // Predicated region
      $region53: #{basic_block_forward.4} parent=47 // pred_check
        %p2090 = pneg %p156
      $region54: #{basic_block_forward.4} parent=47 // pred_check_branch
        %2092 = sbr.rel (%p2090) target = $region56
      $region55: #{basic_block_forward.4} parent=47 // pred_region
        %p2093 = scmp.lt.s32.totalorder %s18, 1
        %s2094 = scalar_select %p2093, %s18, 1
        %s2095 = smul.addr %s2094, 2
        %s2096 = scalar_lea.vmem %s5, %s2095
      $region56: #{basic_block_forward.4} parent=47 // pred_fallthru
        _
    $region48: #{basic_block_forward.4} parent=5 // pred_fallthru
      _
  $region6: #{basic_block_forward.4} parent=0 // loop_footer
    %s16 = sadd.s32 1, %s12
  $region7: #{basic_block_forward.4} parent=0 // loop_footer_branch
    %11 = sbr.rel target = $region3
  $region8: #{basic_block_forward.4} parent=0 // loop_exit
    _

</llo_original>
